<compile_context>
chip_gen: v6e
topology: v6e:2x2x1
jax: 0.10.0
libtpu: 0.0.40
codegen_flags: <defaults>
</compile_context>

<pallas_src>
import functools

import jax
import jax.numpy as jnp
import numpy as np
from jax import lax
from jax.experimental import pallas as pl
from jax.experimental.pallas import tpu as pltpu

EPS = 1e-3


def _nb1d_kernel(x_ref, w1_ref, b1_ref, wg_ref, bg_ref, o_ref, pad_ref, *,
                 H, W, Cout, dlt, halo):
    """One batch element per grid step; activations kept flattened as (H*W, C).

    x_ref   : (H*W, Cin)          bf16  input (channels on lanes)
    w1_ref  : (Cin, 2*C)          bf16  [conv1x1_1 (BN1 folded) | shortcut conv (BN folded)]
    b1_ref  : (1, 2*C)            f32   matching biases
    wg_ref  : (7*C, C)            bf16  [w3x1 taps (3C) ; w1x3 taps+BN (3C) ; conv1x1_2+BN2 (C)]
    bg_ref  : (3, C)              f32   [b3x1 ; b1x3+BN ; b1x1_2+BN2]
    o_ref   : (H*W, C)            f32   output
    pad_ref : (H*W + 2*halo, C)   f32   scratch with zero halos for shifted taps
    """
    f32, bf16 = jnp.float32, jnp.bfloat16
    C = Cout
    HW = H * W
    dW = dlt * W

    # ---- conv1x1_1 (+BN1) fused with shortcut conv (+BN): one matmul --------
    t = jnp.dot(x_ref[...], w1_ref[...], preferred_element_type=f32) + b1_ref[...]
    y = jnp.maximum(t[:, :C], 0.0)          # relu(bn1(conv1x1_1(x)))  (HW, C) f32
    sc = t[:, C:]                           # bn_s(conv1x1_s(x))       (HW, C) f32

    # Zero the scratch halos; the interior is overwritten below, halos stay 0.
    zeros_halo = jnp.zeros((halo, C), f32)
    pad_ref[0:halo, :] = zeros_halo
    pad_ref[halo + HW:halo + HW + halo, :] = zeros_halo

    w31 = wg_ref[0:3 * C, :]                # (3C, C) bf16
    w13 = wg_ref[3 * C:6 * C, :]            # (3C, C) bf16
    w2 = wg_ref[6 * C:7 * C, :]             # (C, C)  bf16
    bg = bg_ref[...]                        # (3, C)  f32

    # ---- conv3x1 (grouped, dilation dlt along H) + ReLU: one K=3C matmul ----
    # A shift of +/-dlt in H is a shift of +/-dlt*W flattened rows; the zero
    # halos in the scratch provide exact zero padding.
    pad_ref[halo:halo + HW, :] = y
    yb = y.astype(bf16)
    t0 = pad_ref[halo - dW:halo - dW + HW, :].astype(bf16)    # y[r - dW]
    t2 = pad_ref[halo + dW:halo + dW + HW, :].astype(bf16)    # y[r + dW]
    lhs_h = jnp.concatenate([t0, yb, t2], axis=1)             # (HW, 3C) bf16
    y2 = jnp.maximum(jnp.dot(lhs_h, w31, preferred_element_type=f32) + bg[0], 0.0)

    # ---- conv1x3 (grouped, dilation dlt along W) + folded BN + ReLU ---------
    # A shift of +/-dlt in W is +/-dlt flattened rows; rows that would cross an
    # H boundary are zeroed with the hoisted W-column masks.
    wcol = lax.broadcasted_iota(jnp.int32, (HW, 1), 0) % W
    pad_ref[halo:halo + HW, :] = y2
    y2b = y2.astype(bf16)
    r0 = pad_ref[halo - dlt:halo - dlt + HW, :].astype(bf16)  # y2[r - dlt]
    r2 = pad_ref[halo + dlt:halo + dlt + HW, :].astype(bf16)  # y2[r + dlt]
    tap0 = jnp.where(wcol >= dlt, r0, jnp.zeros_like(r0))
    tap2 = jnp.where(wcol < W - dlt, r2, jnp.zeros_like(r2))
    lhs_w = jnp.concatenate([tap0, y2b, tap2], axis=1)        # (HW, 3C) bf16
    y3 = jnp.maximum(jnp.dot(lhs_w, w13, preferred_element_type=f32) + bg[1], 0.0)

    # ---- conv1x1_2 (+BN2) and residual add ----------------------------------
    z = jnp.dot(y3.astype(bf16), w2, preferred_element_type=f32) + bg[2]
    o_ref[...] = z + sc


def _fold_bn(gamma, beta, mean, var, eps=EPS):
    s = gamma / jnp.sqrt(var + eps)
    t = beta - mean * s
    return s, t


def _blockdiag_taps(w_taps, groups):
    """w_taps: (Cout, cpg, K) grouped-conv weight (out, in-within-group, tap).

    Returns (K, Cout, Cout) block-diagonal matrices: rows = input channel,
    cols = output channel (ready for x @ Wk)."""
    w_taps = np.asarray(w_taps, np.float32)
    Cout, cpg, K = w_taps.shape
    out = np.zeros((K, Cout, Cout), np.float32)
    for k in range(K):
        for g in range(groups):
            lo, hi = g * cpg, (g + 1) * cpg
            out[k, lo:hi, lo:hi] = w_taps[lo:hi, :, k].T
    return jnp.asarray(out)


def non_bottleneck_1d_rn_forward(x_nchw, params, *, dlt, groups, stride=1):
    # TODO(synk): stride != 1 and training-mode BatchNorm/Dropout2d not implemented.
    assert stride == 1, "kernel implements stride=1 (shapes preserved)"
    N, Cin, H, W = x_nchw.shape
    Cout = params['w1'].shape[0]
    HW = H * W
    halo = ((max(dlt * W, 8) + 7) // 8) * 8   # zero-halo rows (>= dlt*W, 8-aligned)

    # Fold conv biases + BatchNorm (eval) into effective weights / biases.
    s1, t1 = _fold_bn(*params['bn1'])
    w1e = params['w1'][:, :, 0, 0].T * s1[None, :]
    b1e = params['b1'] * s1 + t1

    ss, ts = _fold_bn(*params['bns'])
    wse = params['ws'][:, :, 0, 0].T * ss[None, :]
    bse = params['bs'] * ss + ts

    # conv1x1_1 and the shortcut conv read the same LHS -> fuse into one matmul.
    w1s = jnp.concatenate([w1e, wse], axis=1).astype(jnp.bfloat16)   # (Cin, 2C)
    b1s = jnp.concatenate([b1e, bse])[None, :].astype(jnp.float32)   # (1, 2C)

    # Grouped 3x1 / 1x3 convs -> block-diagonal per-tap matrices stacked along
    # the contraction axis, so each conv is a single K=3C matmul.
    w31s = _blockdiag_taps(params['w31'][:, :, :, 0], groups).reshape(3 * Cout, Cout)
    b31e = params['b31']

    s3, t3 = _fold_bn(*params['bn'])
    w13s = (_blockdiag_taps(params['w13'][:, :, 0, :], groups)
            * s3[None, None, :]).reshape(3 * Cout, Cout)
    b13e = params['b13'] * s3 + t3

    s2, t2 = _fold_bn(*params['bn2'])
    w2e = params['w2'][:, :, 0, 0].T * s2[None, :]
    b2e = params['b2'] * s2 + t2

    wg = jnp.concatenate([w31s, w13s, w2e], axis=0).astype(jnp.bfloat16)  # (7C, C)
    bg = jnp.stack([b31e, b13e, b2e], axis=0).astype(jnp.float32)         # (3, C)

    # NCHW -> flattened channels-last (N, H*W, C): reshapes stay in the wrapper
    # (free on HBM arrays) so the kernel never relayouts in VMEM.
    x_flat = jnp.transpose(x_nchw, (0, 2, 3, 1)).reshape(N, HW, Cin).astype(jnp.bfloat16)

    kernel = functools.partial(_nb1d_kernel, H=H, W=W, Cout=Cout, dlt=dlt, halo=halo)

    fixed = lambda n: (0, 0)      # noqa: E731 - small untiled weight/bias operands
    out_flat = pl.pallas_call(
        kernel,
        out_shape=jax.ShapeDtypeStruct((N, HW, Cout), jnp.float32),
        grid_spec=pltpu.PrefetchScalarGridSpec(
            num_scalar_prefetch=0,
            grid=(N,),
            in_specs=[
                pl.BlockSpec((pl.Squeezed(), HW, Cin), lambda n: (n, 0, 0)),
                pl.BlockSpec((Cin, 2 * Cout), fixed),
                pl.BlockSpec((1, 2 * Cout), fixed),
                pl.BlockSpec((7 * Cout, Cout), fixed),
                pl.BlockSpec((3, Cout), fixed),
            ],
            out_specs=pl.BlockSpec((pl.Squeezed(), HW, Cout), lambda n: (n, 0, 0)),
            scratch_shapes=[pltpu.VMEM((HW + 2 * halo, Cout), jnp.float32)],
        ),
        compiler_params=pltpu.CompilerParams(dimension_semantics=("parallel",)),
    )(x_flat, w1s, b1s, wg, bg)

    out_nhwc = out_flat.reshape(N, H, W, Cout)
    return jnp.transpose(out_nhwc, (0, 3, 1, 2))


# ----------------------------- pure-JAX reference -----------------------------
def reference_forward(x, params, *, stride, dlt, groups, eps=EPS):
    def conv(x, w, b, strides, pad, dil, g):
        y = lax.conv_general_dilated(
            x, w, window_strides=strides, padding=pad, rhs_dilation=dil,
            dimension_numbers=('NCHW', 'OIHW', 'NCHW'), feature_group_count=g)
        return y + b[None, :, None, None]

    def bn(x, p):
        gamma, beta, mean, var = p
        s = gamma / jnp.sqrt(var + eps)
        return x * s[None, :, None, None] + (beta - mean * s)[None, :, None, None]

    out = jax.nn.relu(bn(conv(x, params['w1'], params['b1'],
                              (1, 1), [(0, 0), (0, 0)], (1, 1), 1), params['bn1']))
    out = jax.nn.relu(conv(out, params['w31'], params['b31'],
                           (stride, stride), [(dlt, dlt), (0, 0)], (dlt, 1), groups))
    out = jax.nn.relu(bn(conv(out, params['w13'], params['b13'],
                              (1, 1), [(0, 0), (dlt, dlt)], (1, dlt), groups), params['bn']))
    out = bn(conv(out, params['w2'], params['b2'],
                  (1, 1), [(0, 0), (0, 0)], (1, 1), 1), params['bn2'])
    sc = bn(conv(x, params['ws'], params['bs'],
                 (stride, stride), [(0, 0), (0, 0)], (1, 1), 1), params['bns'])
    return out + sc


if __name__ == "__main__":
    # Module hyperparameters: C_in=16, C_out=32, stride=1, dropprob=0, dlt=1,
    # group_width=16  ->  cardinality (groups) = 2, shortcut = conv1x1 + BN.
    N, Cin, H, W = 2, 16, 16, 16
    Cout, stride, dlt, group_width = 32, 1, 1, 16
    groups = Cout // group_width
    cpg = Cout // groups

    keys = iter(jax.random.split(jax.random.PRNGKey(0), 32))

    def nrm(shape, scale=0.1):
        return jax.random.normal(next(keys), shape, jnp.float32) * scale

    def uni(shape, lo=0.5, hi=1.5):
        return jax.random.uniform(next(keys), shape, jnp.float32, lo, hi)

    def bn_params():
        # (gamma, beta, running_mean, running_var)
        return (uni((Cout,)), nrm((Cout,)), nrm((Cout,)), uni((Cout,)))

    params = {
        'w1': nrm((Cout, Cin, 1, 1)), 'b1': nrm((Cout,)), 'bn1': bn_params(),
        'w31': nrm((Cout, cpg, 3, 1)), 'b31': nrm((Cout,)),
        'w13': nrm((Cout, cpg, 1, 3)), 'b13': nrm((Cout,)), 'bn': bn_params(),
        'w2': nrm((Cout, Cout, 1, 1)), 'b2': nrm((Cout,)), 'bn2': bn_params(),
        'ws': nrm((Cout, Cin, 1, 1)), 'bs': nrm((Cout,)), 'bns': bn_params(),
    }

    x = jax.random.normal(next(keys), (N, Cin, H, W), jnp.float32)

    out = non_bottleneck_1d_rn_forward(x, params, dlt=dlt, groups=groups, stride=stride)
    out = jax.block_until_ready(out)

    ref = reference_forward(x, params, stride=stride, dlt=dlt, groups=groups)
    assert out.shape == ref.shape == (N, Cout, H, W)
    max_err = float(jnp.max(jnp.abs(out - ref)))
    tol = 2e-2 + 2e-2 * float(jnp.max(jnp.abs(ref)))   # bf16 activations/weights
    assert max_err < tol, f"mismatch vs reference: max abs err = {max_err} (tol {tol})"
    print("KERNEL_OK")
</pallas_src>

<mosaic_0001>
module attributes {stable_mosaic.version = 11 : i64} {
  func.func @_nb1d_kernel(%arg0: i32, %arg1: memref<1x256x16xbf16, #tpu.memory_space<vmem>>, %arg2: memref<16x64xbf16, #tpu.memory_space<vmem>>, %arg3: memref<1x64xf32, #tpu.memory_space<vmem>>, %arg4: memref<224x32xbf16, #tpu.memory_space<vmem>>, %arg5: memref<3x32xf32, #tpu.memory_space<vmem>>, %arg6: memref<1x256x32xf32, #tpu.memory_space<vmem>>, %arg7: memref<288x32xf32, #tpu.memory_space<vmem>>) attributes {dimension_semantics = [#tpu.dimension_semantics<parallel>], iteration_bounds = array<i64: 2>, scalar_prefetch = 0 : i64, scratch_operands = 1 : i64, tpu.core_type = #tpu.core_type<tc>, window_params = [{transform_indices = @transform_0, window_bounds = array<i64: 1, 256, 16>}, {pipeline_mode = #tpu.pipeline_mode<synchronous>, transform_indices = @transform_1, window_bounds = array<i64: 16, 64>}, {pipeline_mode = #tpu.pipeline_mode<synchronous>, transform_indices = @transform_2, window_bounds = array<i64: 1, 64>}, {pipeline_mode = #tpu.pipeline_mode<synchronous>, transform_indices = @transform_3, window_bounds = array<i64: 224, 32>}, {pipeline_mode = #tpu.pipeline_mode<synchronous>, transform_indices = @transform_4, window_bounds = array<i64: 3, 32>}, {transform_indices = @transform_5, window_bounds = array<i64: 1, 256, 32>}]} {
    %c0 = arith.constant 0 : index
    %c0_0 = arith.constant 0 : index
    %c0_1 = arith.constant 0 : index
    %0 = vector.load %arg1[%c0, %c0_0, %c0_1] : memref<1x256x16xbf16, #tpu.memory_space<vmem>>, vector<1x256x16xbf16>
    %1 = vector.shape_cast %0 : vector<1x256x16xbf16> to vector<256x16xbf16>
    %c0_2 = arith.constant 0 : index
    %c0_3 = arith.constant 0 : index
    %2 = vector.load %arg2[%c0_2, %c0_3] : memref<16x64xbf16, #tpu.memory_space<vmem>>, vector<16x64xbf16>
    %cst = arith.constant dense<0.000000e+00> : vector<256x64xf32>
    %3 = tpu.matmul %1, %2, %cst {dimension_numbers = #tpu.dot_dimension_numbers<[1], [0], [0], [1], [0, 0, 1, 1], [], []>} : vector<256x16xbf16>, vector<16x64xbf16>, vector<256x64xf32> -> vector<256x64xf32>
    %c0_4 = arith.constant 0 : index
    %c0_5 = arith.constant 0 : index
    %4 = vector.load %arg3[%c0_4, %c0_5] : memref<1x64xf32, #tpu.memory_space<vmem>>, vector<1x64xf32>
    %5 = vector.broadcast %4 : vector<1x64xf32> to vector<256x64xf32>
    %6 = arith.addf %3, %5 : vector<256x64xf32>
    %7 = vector.extract_strided_slice %6 {offsets = [0, 0], sizes = [256, 32], strides = [1, 1]} : vector<256x64xf32> to vector<256x32xf32>
    %cst_6 = arith.constant 0.000000e+00 : f32
    %8 = vector.broadcast %cst_6 : f32 to vector<256x32xf32>
    %9 = arith.maximumf %7, %8 : vector<256x32xf32>
    %10 = vector.extract_strided_slice %6 {offsets = [0, 32], sizes = [256, 32], strides = [1, 1]} : vector<256x64xf32> to vector<256x32xf32>
    %cst_7 = arith.constant 0.000000e+00 : f32
    %11 = vector.broadcast %cst_7 : f32 to vector<16x32xf32>
    %c0_8 = arith.constant 0 : index
    %c0_9 = arith.constant 0 : index
    %12 = vector.load %arg7[%c0_8, %c0_9] : memref<288x32xf32, #tpu.memory_space<vmem>>, vector<16x32xf32>
    tpu.vector_store %arg7[%c0_8, %c0_9], %11 {strides = array<i32>} : memref<288x32xf32, #tpu.memory_space<vmem>>, vector<16x32xf32>,
    %c272 = arith.constant 272 : index
    %c0_10 = arith.constant 0 : index
    %13 = vector.load %arg7[%c272, %c0_10] : memref<288x32xf32, #tpu.memory_space<vmem>>, vector<16x32xf32>
    tpu.vector_store %arg7[%c272, %c0_10], %11 {strides = array<i32>} : memref<288x32xf32, #tpu.memory_space<vmem>>, vector<16x32xf32>,
    %c0_11 = arith.constant 0 : index
    %c0_12 = arith.constant 0 : index
    %14 = vector.load %arg4[%c0_11, %c0_12] : memref<224x32xbf16, #tpu.memory_space<vmem>>, vector<96x32xbf16>
    %c96 = arith.constant 96 : index
    %c0_13 = arith.constant 0 : index
    %15 = vector.load %arg4[%c96, %c0_13] : memref<224x32xbf16, #tpu.memory_space<vmem>>, vector<96x32xbf16>
    %c192 = arith.constant 192 : index
    %c0_14 = arith.constant 0 : index
    %16 = vector.load %arg4[%c192, %c0_14] : memref<224x32xbf16, #tpu.memory_space<vmem>>, vector<32x32xbf16>
    %c0_15 = arith.constant 0 : index
    %c0_16 = arith.constant 0 : index
    %17 = vector.load %arg5[%c0_15, %c0_16] : memref<3x32xf32, #tpu.memory_space<vmem>>, vector<3x32xf32>
    %c16 = arith.constant 16 : index
    %c0_17 = arith.constant 0 : index
    %18 = vector.load %arg7[%c16, %c0_17] : memref<288x32xf32, #tpu.memory_space<vmem>>, vector<256x32xf32>
    tpu.vector_store %arg7[%c16, %c0_17], %9 {strides = array<i32>} : memref<288x32xf32, #tpu.memory_space<vmem>>, vector<256x32xf32>,
    %19 = arith.truncf %9 : vector<256x32xf32> to vector<256x32xbf16>
    %c0_18 = arith.constant 0 : index
    %c0_19 = arith.constant 0 : index
    %20 = vector.load %arg7[%c0_18, %c0_19] : memref<288x32xf32, #tpu.memory_space<vmem>>, vector<256x32xf32>
    %21 = arith.truncf %20 : vector<256x32xf32> to vector<256x32xbf16>
    %c32 = arith.constant 32 : index
    %c0_20 = arith.constant 0 : index
    %22 = vector.load %arg7[%c32, %c0_20] : memref<288x32xf32, #tpu.memory_space<vmem>>, vector<256x32xf32>
    %23 = arith.truncf %22 : vector<256x32xf32> to vector<256x32xbf16>
    %24 = tpu.concatenate %21, %19, %23 in 1 : vector<256x32xbf16>, vector<256x32xbf16>, vector<256x32xbf16> -> vector<256x96xbf16>
    %cst_21 = arith.constant dense<0.000000e+00> : vector<256x32xf32>
    %25 = tpu.matmul %24, %14, %cst_21 {dimension_numbers = #tpu.dot_dimension_numbers<[1], [0], [0], [1], [0, 0, 1, 1], [], []>} : vector<256x96xbf16>, vector<96x32xbf16>, vector<256x32xf32> -> vector<256x32xf32>
    %26 = vector.extract_strided_slice %17 {offsets = [0, 0], sizes = [1, 32], strides = [1, 1]} : vector<3x32xf32> to vector<1x32xf32>
    %27 = vector.shape_cast %26 : vector<1x32xf32> to vector<32xf32>
    %28 = vector.shape_cast %27 : vector<32xf32> to vector<1x32xf32>
    %29 = vector.broadcast %28 : vector<1x32xf32> to vector<256x32xf32>
    %30 = arith.addf %25, %29 : vector<256x32xf32>
    %cst_22 = arith.constant 0.000000e+00 : f32
    %31 = vector.broadcast %cst_22 : f32 to vector<256x32xf32>
    %32 = arith.maximumf %30, %31 : vector<256x32xf32>
    %33 = tpu.iota {dimensions = array<i32: 0>} : vector<256x1xi32>
    %c16_i32 = arith.constant 16 : i32
    %c0_i32 = arith.constant 0 : i32
    %34 = arith.cmpi eq, %c16_i32, %c0_i32 : i32
    %c1_i32 = arith.constant 1 : i32
    %35 = arith.select %34, %c1_i32, %c16_i32 : i32
    %36 = vector.broadcast %35 : i32 to vector<256x1xi32>
    %37 = arith.remsi %33, %36 : vector<256x1xi32>
    %c0_i32_23 = arith.constant 0 : i32
    %38 = vector.broadcast %c0_i32_23 : i32 to vector<256x1xi32>
    %39 = arith.cmpi ne, %37, %38 : vector<256x1xi32>
    %c0_i32_24 = arith.constant 0 : i32
    %40 = vector.broadcast %c0_i32_24 : i32 to vector<256x1xi32>
    %41 = arith.cmpi slt, %37, %40 : vector<256x1xi32>
    %c0_i32_25 = arith.constant 0 : i32
    %42 = arith.cmpi slt, %35, %c0_i32_25 : i32
    %43 = vector.broadcast %42 : i1 to vector<256x1xi1>
    %44 = vector.broadcast %43 : vector<256x1xi1> to vector<256x1xi1>
    %45 = arith.xori %41, %44 : vector<256x1xi1>
    %46 = arith.andi %45, %39 : vector<256x1xi1>
    %47 = vector.broadcast %35 : i32 to vector<256x1xi32>
    %48 = arith.addi %37, %47 : vector<256x1xi32>
    %49 = arith.select %46, %48, %37 : vector<256x1xi1>, vector<256x1xi32>
    %c16_26 = arith.constant 16 : index
    %c0_27 = arith.constant 0 : index
    %50 = vector.load %arg7[%c16_26, %c0_27] : memref<288x32xf32, #tpu.memory_space<vmem>>, vector<256x32xf32>
    tpu.vector_store %arg7[%c16_26, %c0_27], %32 {strides = array<i32>} : memref<288x32xf32, #tpu.memory_space<vmem>>, vector<256x32xf32>,
    %51 = arith.truncf %32 : vector<256x32xf32> to vector<256x32xbf16>
    %c15 = arith.constant 15 : index
    %c0_28 = arith.constant 0 : index
    %52 = vector.load %arg7[%c15, %c0_28] : memref<288x32xf32, #tpu.memory_space<vmem>>, vector<256x32xf32>
    %53 = arith.truncf %52 : vector<256x32xf32> to vector<256x32xbf16>
    %c17 = arith.constant 17 : index
    %c0_29 = arith.constant 0 : index
    %54 = vector.load %arg7[%c17, %c0_29] : memref<288x32xf32, #tpu.memory_space<vmem>>, vector<256x32xf32>
    %55 = arith.truncf %54 : vector<256x32xf32> to vector<256x32xbf16>
    %c1_i32_30 = arith.constant 1 : i32
    %56 = vector.broadcast %c1_i32_30 : i32 to vector<256x1xi32>
    %57 = arith.cmpi sge, %49, %56 : vector<256x1xi32>
    %cst_31 = arith.constant 0.000000e+00 : bf16
    %58 = vector.broadcast %cst_31 : bf16 to vector<256x32xbf16>
    %59 = vector.shape_cast %57 : vector<256x1xi1> to vector<256x1xi1>
    %60 = vector.broadcast %59 : vector<256x1xi1> to vector<256x32xi1>
    %61 = arith.select %60, %53, %58 : vector<256x32xi1>, vector<256x32xbf16>
    %c15_i32 = arith.constant 15 : i32
    %62 = vector.broadcast %c15_i32 : i32 to vector<256x1xi32>
    %63 = arith.cmpi slt, %49, %62 : vector<256x1xi32>
    %cst_32 = arith.constant 0.000000e+00 : bf16
    %64 = vector.broadcast %cst_32 : bf16 to vector<256x32xbf16>
    %65 = vector.shape_cast %63 : vector<256x1xi1> to vector<256x1xi1>
    %66 = vector.broadcast %65 : vector<256x1xi1> to vector<256x32xi1>
    %67 = arith.select %66, %55, %64 : vector<256x32xi1>, vector<256x32xbf16>
    %68 = tpu.concatenate %61, %51, %67 in 1 : vector<256x32xbf16>, vector<256x32xbf16>, vector<256x32xbf16> -> vector<256x96xbf16>
    %cst_33 = arith.constant dense<0.000000e+00> : vector<256x32xf32>
    %69 = tpu.matmul %68, %15, %cst_33 {dimension_numbers = #tpu.dot_dimension_numbers<[1], [0], [0], [1], [0, 0, 1, 1], [], []>} : vector<256x96xbf16>, vector<96x32xbf16>, vector<256x32xf32> -> vector<256x32xf32>
    %70 = vector.extract_strided_slice %17 {offsets = [1, 0], sizes = [1, 32], strides = [1, 1]} : vector<3x32xf32> to vector<1x32xf32>
    %71 = vector.shape_cast %70 : vector<1x32xf32> to vector<32xf32>
    %72 = vector.shape_cast %71 : vector<32xf32> to vector<1x32xf32>
    %73 = vector.broadcast %72 : vector<1x32xf32> to vector<256x32xf32>
    %74 = arith.addf %69, %73 : vector<256x32xf32>
    %cst_34 = arith.constant 0.000000e+00 : f32
    %75 = vector.broadcast %cst_34 : f32 to vector<256x32xf32>
    %76 = arith.maximumf %74, %75 : vector<256x32xf32>
    %77 = arith.truncf %76 : vector<256x32xf32> to vector<256x32xbf16>
    %cst_35 = arith.constant dense<0.000000e+00> : vector<256x32xf32>
    %78 = tpu.matmul %77, %16, %cst_35 {dimension_numbers = #tpu.dot_dimension_numbers<[1], [0], [0], [1], [0, 0, 1, 1], [], []>} : vector<256x32xbf16>, vector<32x32xbf16>, vector<256x32xf32> -> vector<256x32xf32>
    %79 = vector.extract_strided_slice %17 {offsets = [2, 0], sizes = [1, 32], strides = [1, 1]} : vector<3x32xf32> to vector<1x32xf32>
    %80 = vector.shape_cast %79 : vector<1x32xf32> to vector<32xf32>
    %81 = vector.shape_cast %80 : vector<32xf32> to vector<1x32xf32>
    %82 = vector.broadcast %81 : vector<1x32xf32> to vector<256x32xf32>
    %83 = arith.addf %78, %82 : vector<256x32xf32>
    %84 = arith.addf %83, %10 : vector<256x32xf32>
    %c0_36 = arith.constant 0 : index
    %c0_37 = arith.constant 0 : index
    %c0_38 = arith.constant 0 : index
    %85 = vector.load %arg6[%c0_36, %c0_37, %c0_38] : memref<1x256x32xf32, #tpu.memory_space<vmem>>, vector<1x256x32xf32>
    %86 = vector.shape_cast %85 : vector<1x256x32xf32> to vector<256x32xf32>
    %87 = vector.shape_cast %84 : vector<256x32xf32> to vector<1x256x32xf32>
    tpu.vector_store %arg6[%c0_36, %c0_37, %c0_38], %87 {strides = array<i32>} : memref<1x256x32xf32, #tpu.memory_space<vmem>>, vector<1x256x32xf32>,
    return
  }
  func.func @transform_0(%arg0: i32) -> (i32, i32, i32) {
    %c0_i32 = arith.constant 0 : i32
    %c0_i32_0 = arith.constant 0 : i32
    %c0_i32_1 = arith.constant 0 : i32
    return %arg0, %c0_i32, %c0_i32_0 : i32, i32, i32
  }
  func.func @transform_1(%arg0: i32) -> (i32, i32) {
    %c0_i32 = arith.constant 0 : i32
    %c0_i32_0 = arith.constant 0 : i32
    %c0_i32_1 = arith.constant 0 : i32
    return %c0_i32, %c0_i32_0 : i32, i32
  }
  func.func @transform_2(%arg0: i32) -> (i32, i32) {
    %c0_i32 = arith.constant 0 : i32
    %c0_i32_0 = arith.constant 0 : i32
    %c0_i32_1 = arith.constant 0 : i32
    return %c0_i32, %c0_i32_0 : i32, i32
  }
  func.func @transform_3(%arg0: i32) -> (i32, i32) {
    %c0_i32 = arith.constant 0 : i32
    %c0_i32_0 = arith.constant 0 : i32
    %c0_i32_1 = arith.constant 0 : i32
    return %c0_i32, %c0_i32_0 : i32, i32
  }
  func.func @transform_4(%arg0: i32) -> (i32, i32) {
    %c0_i32 = arith.constant 0 : i32
    %c0_i32_0 = arith.constant 0 : i32
    %c0_i32_1 = arith.constant 0 : i32
    return %c0_i32, %c0_i32_0 : i32, i32
  }
  func.func @transform_5(%arg0: i32) -> (i32, i32, i32) {
    %c0_i32 = arith.constant 0 : i32
    %c0_i32_0 = arith.constant 0 : i32
    %c0_i32_1 = arith.constant 0 : i32
    return %arg0, %c0_i32, %c0_i32_0 : i32, i32, i32
  }
}

</mosaic_0001>

<llo_original>
// kernel: tpu_custom_call.1
$region0: #{tpu_custom_call.1}
  #allocation0 [shape = 'u32[]', space=smem, size = 0x4, offset = 0x4, fixed_abs, tag = 'smem constant byte address 0x4 - core index']
  #allocation1 [shape = 'u32[144,128]{1,0:T(1,128)}', space=vmem, size = 0x12000, scoped, tag = 'internal scratch']
  #allocation2 [shape = 'f32[288,32]{1,0:T(8,128)}', space=vmem, size = 0x24000, scoped, tag = 'scratch operand']
  %s0 = inlined_call_operand.vmem [shape: bf16[2,256,16], index: 0, kind: input, shape index: {}]
  %s1 = inlined_call_operand.vmem [shape: bf16[16,64], index: 1, kind: input, shape index: {}]
  %s2 = inlined_call_operand.vmem [shape: f32[1,64], index: 2, kind: input, shape index: {}]
  %s3 = inlined_call_operand.vmem [shape: bf16[224,32], index: 3, kind: input, shape index: {}]
  %s4 = inlined_call_operand.vmem [shape: f32[3,32], index: 4, kind: input, shape index: {}]
  %s5 = inlined_call_operand.vmem [shape: f32[2,256,32], index: 5, kind: output, shape index: {}]
  %s6 = sld [smem:[#allocation0]]
  $region53: #{tpu_custom_call.1} parent=0
    _
  %s8 = ssub.s32 1, %s6
  %s9 = scalar_select 0, %s8, %s6
  loop: start=0, step=1, limit=4
  $region2: #{tpu_custom_call.1} parent=0 // loop_pre_header
    _
  $region3: #{tpu_custom_call.1} parent=0 // loop_header
    %s11 = sphi 0, %s15
    %p12 = scmp.ge.s32.totalorder %s11, 4
    %s21 = sphi 0, %s23
    %s24 = sphi 0, %s21
    %s25 = sphi 0, %s24
    %s41 = sphi 0, %s25
    %s45 = sphi 0, %s45
    %s47 = sphi 0, %s45
    %s48 = sphi 0, %s47
    %s62 = sphi 0, %s48
    %s66 = sphi 0, %s66
    %s68 = sphi 0, %s66
    %s69 = sphi 0, %s68
    %s83 = sphi 0, %s69
    %s87 = sphi 0, %s87
    %s89 = sphi 0, %s87
    %s90 = sphi 0, %s89
    %s104 = sphi 0, %s90
    %s108 = sphi 0, %s108
    %s110 = sphi 0, %s108
    %s111 = sphi 0, %s110
    %s125 = sphi 0, %s111
    %s131 = sphi 0, %s133
    %s134 = sphi 0, %s131
    %s135 = sphi 0, %s134
    %s151 = sphi 0, %s135
  $region4: #{tpu_custom_call.1} parent=0 // loop_header_branch
    %14 = sbr.rel (%p12) target = $region8
  $region5: #{tpu_custom_call.1} parent=0 // loop_body
    %s16 = ssub.s32 %s11, 1
    %s17 = ssub.s32 %s11, 2
    %s18 = sadd.s32 %s11, 1
    %s19 = ssub.s32 %s11, %s18
    %p20 = scmp.eq.s32.totalorder %s19, 0
    %s22 = sadd.s32 %s21, 1
    %s23 = scalar_select %p20, %s21, %s22
    %p26 = pneg %p20
    %p27 = scmp.eq.s32.totalorder %s11, 1
    %p28 = por %p26, %p27
    %p29 = scmp.ne.s32.totalorder %s21, %s24
    %p30 = scmp.eq.s32.totalorder %s11, 0
    %p31 = por %p29, %p30
    %p32 = scmp.ne.s32.totalorder %s21, %s24
    %p33 = scmp.eq.s32.totalorder %s16, 1
    %p34 = por %p32, %p33
    %p35 = scmp.ne.s32.totalorder %s24, %s25
    %p36 = scmp.eq.s32.totalorder %s16, 0
    %p37 = por %p35, %p36
    %p38 = scmp.ne.s32.totalorder %s24, %s25
    %p39 = scmp.eq.s32.totalorder %s17, 1
    %p40 = por %p38, %p39
    %p42 = scmp.ne.s32.totalorder %s25, %s41
    %p43 = scmp.eq.s32.totalorder %s17, 0
    %p44 = por %p42, %p43
    %s46 = sadd.s32 %s45, 1
    %p49 = scmp.eq.s32.totalorder %s11, 1
    %p50 = scmp.ne.s32.totalorder %s45, %s47
    %p51 = scmp.eq.s32.totalorder %s11, 0
    %p52 = por %p50, %p51
    %p53 = scmp.ne.s32.totalorder %s45, %s47
    %p54 = scmp.eq.s32.totalorder %s16, 1
    %p55 = por %p53, %p54
    %p56 = scmp.ne.s32.totalorder %s47, %s48
    %p57 = scmp.eq.s32.totalorder %s16, 0
    %p58 = por %p56, %p57
    %p59 = scmp.ne.s32.totalorder %s47, %s48
    %p60 = scmp.eq.s32.totalorder %s17, 1
    %p61 = por %p59, %p60
    %p63 = scmp.ne.s32.totalorder %s48, %s62
    %p64 = scmp.eq.s32.totalorder %s17, 0
    %p65 = por %p63, %p64
    %s67 = sadd.s32 %s66, 1
    %p70 = scmp.eq.s32.totalorder %s11, 1
    %p71 = scmp.ne.s32.totalorder %s66, %s68
    %p72 = scmp.eq.s32.totalorder %s11, 0
    %p73 = por %p71, %p72
    %p74 = scmp.ne.s32.totalorder %s66, %s68
    %p75 = scmp.eq.s32.totalorder %s16, 1
    %p76 = por %p74, %p75
    %p77 = scmp.ne.s32.totalorder %s68, %s69
    %p78 = scmp.eq.s32.totalorder %s16, 0
    %p79 = por %p77, %p78
    %p80 = scmp.ne.s32.totalorder %s68, %s69
    %p81 = scmp.eq.s32.totalorder %s17, 1
    %p82 = por %p80, %p81
    %p84 = scmp.ne.s32.totalorder %s69, %s83
    %p85 = scmp.eq.s32.totalorder %s17, 0
    %p86 = por %p84, %p85
    %s88 = sadd.s32 %s87, 1
    %p91 = scmp.eq.s32.totalorder %s11, 1
    %p92 = scmp.ne.s32.totalorder %s87, %s89
    %p93 = scmp.eq.s32.totalorder %s11, 0
    %p94 = por %p92, %p93
    %p95 = scmp.ne.s32.totalorder %s87, %s89
    %p96 = scmp.eq.s32.totalorder %s16, 1
    %p97 = por %p95, %p96
    %p98 = scmp.ne.s32.totalorder %s89, %s90
    %p99 = scmp.eq.s32.totalorder %s16, 0
    %p100 = por %p98, %p99
    %p101 = scmp.ne.s32.totalorder %s89, %s90
    %p102 = scmp.eq.s32.totalorder %s17, 1
    %p103 = por %p101, %p102
    %p105 = scmp.ne.s32.totalorder %s90, %s104
    %p106 = scmp.eq.s32.totalorder %s17, 0
    %p107 = por %p105, %p106
    %s109 = sadd.s32 %s108, 1
    %p112 = scmp.eq.s32.totalorder %s11, 1
    %p113 = scmp.ne.s32.totalorder %s108, %s110
    %p114 = scmp.eq.s32.totalorder %s11, 0
    %p115 = por %p113, %p114
    %p116 = scmp.ne.s32.totalorder %s108, %s110
    %p117 = scmp.eq.s32.totalorder %s16, 1
    %p118 = por %p116, %p117
    %p119 = scmp.ne.s32.totalorder %s110, %s111
    %p120 = scmp.eq.s32.totalorder %s16, 0
    %p121 = por %p119, %p120
    %p122 = scmp.ne.s32.totalorder %s110, %s111
    %p123 = scmp.eq.s32.totalorder %s17, 1
    %p124 = por %p122, %p123
    %p126 = scmp.ne.s32.totalorder %s111, %s125
    %p127 = scmp.eq.s32.totalorder %s17, 0
    %p128 = por %p126, %p127
    %s129 = ssub.s32 %s11, %s18
    %p130 = scmp.eq.s32.totalorder %s129, 0
    %s132 = sadd.s32 %s131, 1
    %s133 = scalar_select %p130, %s131, %s132
    %p136 = pneg %p130
    %p137 = scmp.eq.s32.totalorder %s11, 1
    %p138 = por %p136, %p137
    %p139 = scmp.ne.s32.totalorder %s131, %s134
    %p140 = scmp.eq.s32.totalorder %s11, 0
    %p141 = por %p139, %p140
    %p142 = scmp.ne.s32.totalorder %s131, %s134
    %p143 = scmp.eq.s32.totalorder %s16, 1
    %p144 = por %p142, %p143
    %p145 = scmp.ne.s32.totalorder %s134, %s135
    %p146 = scmp.eq.s32.totalorder %s16, 0
    %p147 = por %p145, %p146
    %p148 = scmp.ne.s32.totalorder %s134, %s135
    %p149 = scmp.eq.s32.totalorder %s17, 1
    %p150 = por %p148, %p149
    %p152 = scmp.ne.s32.totalorder %s135, %s151
    %p153 = scmp.eq.s32.totalorder %s17, 0
    %p154 = por %p152, %p153
    %p155 = scmp.le.s32.totalorder 1, %s11
    %p156 = scmp.lt.s32.totalorder %s11, 3
    %p157 = pnand %p155, %p156
    %p158 = pneg %p157
    // Predicated region
    $region9: #{tpu_custom_call.1} parent=5 // pred_check
      _
    $region10: #{tpu_custom_call.1} parent=5 // pred_check_branch
      %160 = sbr.rel (%p157) target = $region12
    $region11: #{tpu_custom_call.1} parent=5 // pred_region
      %s161 = ssub.s32 %s11, 1
      // Predicated region
      $region13: #{tpu_custom_call.1} parent=11 // pred_check
        %p162 = pneg %p58
      $region14: #{tpu_custom_call.1} parent=11 // pred_check_branch
        %164 = sbr.rel (%p162) target = $region16
      $region15: #{tpu_custom_call.1} parent=11 // pred_region
        _
      $region16: #{tpu_custom_call.1} parent=11 // pred_fallthru
        _
      // Predicated region
      $region17: #{tpu_custom_call.1} parent=11 // pred_check
        %p165 = pneg %p79
      $region18: #{tpu_custom_call.1} parent=11 // pred_check_branch
        %167 = sbr.rel (%p165) target = $region20
      $region19: #{tpu_custom_call.1} parent=11 // pred_region
        _
      $region20: #{tpu_custom_call.1} parent=11 // pred_fallthru
        _
      // Predicated region
      $region21: #{tpu_custom_call.1} parent=11 // pred_check
        %p168 = pneg %p100
      $region22: #{tpu_custom_call.1} parent=11 // pred_check_branch
        %170 = sbr.rel (%p168) target = $region24
      $region23: #{tpu_custom_call.1} parent=11 // pred_region
        _
      $region24: #{tpu_custom_call.1} parent=11 // pred_fallthru
        _
      // Predicated region
      $region25: #{tpu_custom_call.1} parent=11 // pred_check
        %p171 = pneg %p121
      $region26: #{tpu_custom_call.1} parent=11 // pred_check_branch
        %173 = sbr.rel (%p171) target = $region28
      $region27: #{tpu_custom_call.1} parent=11 // pred_region
        _
      $region28: #{tpu_custom_call.1} parent=11 // pred_fallthru
        _
    $region12: #{tpu_custom_call.1} parent=5 // pred_fallthru
      _
    %p174 = scmp.lt.s32.totalorder %s11, 2
    // Predicated region
    $region29: #{tpu_custom_call.1} parent=5 // pred_check
      %p175 = pneg %p174
    $region30: #{tpu_custom_call.1} parent=5 // pred_check_branch
      %177 = sbr.rel (%p175) target = $region32
    $region31: #{tpu_custom_call.1} parent=5 // pred_region
      // Predicated region
      $region33: #{tpu_custom_call.1} parent=31 // pred_check
        %p178 = pneg %p31
      $region34: #{tpu_custom_call.1} parent=31 // pred_check_branch
        %180 = sbr.rel (%p178) target = $region36
      $region35: #{tpu_custom_call.1} parent=31 // pred_region
        %p181 = scmp.lt.s32.totalorder %s11, 1
        %s182 = scalar_select %p181, %s11, 1
        %s183 = smul.addr %s182, 32
        %s184 = smul.addr %s183, 4
        %s185 = scalar_lea.vmem %s0, %s184
      $region36: #{tpu_custom_call.1} parent=31 // pred_fallthru
        _
    $region32: #{tpu_custom_call.1} parent=5 // pred_fallthru
      _
    %p186 = scmp.le.s32.totalorder 1, %s11
    %p187 = scmp.lt.s32.totalorder %s11, 3
    %p188 = pnand %p186, %p187
    %p189 = pneg %p188
    // Predicated region
    $region37: #{tpu_custom_call.1} parent=5 // pred_check
      _
    $region38: #{tpu_custom_call.1} parent=5 // pred_check_branch
      %191 = sbr.rel (%p188) target = $region40
    $region39: #{tpu_custom_call.1} parent=5 // pred_region
      %s192 = ssub.s32 %s11, 1
      %p193 = scmp.lt.s32.totalorder %s16, 1
      %s194 = scalar_select %p193, %s16, 1
      %s195 = smul.addr %s194, 32
      %s196 = smul.addr %s195, 4
      %s197 = scalar_lea.vmem %s0, %s196
      %p198 = pneg %p37
      %p199 = pneg %p34
      %p200 = pneg %p58
      %p201 = pneg %p55
      %p202 = pneg %p79
      %p203 = pneg %p76
      %p204 = pneg %p100
      %p205 = pneg %p97
      %p206 = pneg %p121
      %p207 = pneg %p118
      %p208 = pneg %p147
      %p209 = pneg %p144
      %p210 = scmp.lt.s32.totalorder %s16, 1
      %s211 = scalar_select %p210, %s16, 1
      %s212 = smul.addr %s211, 32
      %s213 = smul.addr %s212, 8
      %s214 = scalar_lea.vmem %s5, %s213
      %p215 = scmp.lt.s32.totalorder %s16, 1
      %s216 = scalar_select %p215, %s16, 1
      %s217 = smul.addr %s216, 32
      %s218 = smul.addr %s217, 4
      %s219 = scalar_lea.vmem %s0, %s218
      %p220 = scmp.lt.s32.totalorder %s16, 1
      %s221 = scalar_select %p220, %s16, 1
      %s222 = smul.addr %s221, 32
      %s223 = smul.addr %s222, 8
      %s224 = scalar_lea.vmem %s5, %s223
      %v228 = vld [vmem:[%s219] sm:$0xf]
      %v229 = vld [vmem:[%s219 + $0x4] sm:$0xf]
      %v230 = vld [vmem:[%s219 + $0x8] sm:$0xf]
      %v231 = vld [vmem:[%s219 + $0xc] sm:$0xf]
      %v232 = vld [vmem:[%s219 + $0x10] sm:$0xf]
      %v233 = vld [vmem:[%s219 + $0x14] sm:$0xf]
      %v234 = vld [vmem:[%s219 + $0x18] sm:$0xf]
      %v235 = vld [vmem:[%s219 + $0x1c] sm:$0xf]
      %v236 = vld [vmem:[%s219 + $0x20] sm:$0xf]
      %v237 = vld [vmem:[%s219 + $0x24] sm:$0xf]
      %v238 = vld [vmem:[%s219 + $0x28] sm:$0xf]
      %v239 = vld [vmem:[%s219 + $0x2c] sm:$0xf]
      %v240 = vld [vmem:[%s219 + $0x30] sm:$0xf]
      %v241 = vld [vmem:[%s219 + $0x34] sm:$0xf]
      %v242 = vld [vmem:[%s219 + $0x38] sm:$0xf]
      %v243 = vld [vmem:[%s219 + $0x3c] sm:$0xf]
      %v244 = vld [vmem:[%s219 + $0x40] sm:$0xf]
      %v245 = vld [vmem:[%s219 + $0x44] sm:$0xf]
      %v246 = vld [vmem:[%s219 + $0x48] sm:$0xf]
      %v247 = vld [vmem:[%s219 + $0x4c] sm:$0xf]
      %v248 = vld [vmem:[%s219 + $0x50] sm:$0xf]
      %v249 = vld [vmem:[%s219 + $0x54] sm:$0xf]
      %v250 = vld [vmem:[%s219 + $0x58] sm:$0xf]
      %v251 = vld [vmem:[%s219 + $0x5c] sm:$0xf]
      %v252 = vld [vmem:[%s219 + $0x60] sm:$0xf]
      %v253 = vld [vmem:[%s219 + $0x64] sm:$0xf]
      %v254 = vld [vmem:[%s219 + $0x68] sm:$0xf]
      %v255 = vld [vmem:[%s219 + $0x6c] sm:$0xf]
      %v256 = vld [vmem:[%s219 + $0x70] sm:$0xf]
      %v257 = vld [vmem:[%s219 + $0x74] sm:$0xf]
      %v258 = vld [vmem:[%s219 + $0x78] sm:$0xf]
      %v259 = vld [vmem:[%s219 + $0x7c] sm:$0xf]
      %v260 = vld [vmem:[%s1] sm:$0xf]
      %v261 = vld [vmem:[%s1 + $0x4] sm:$0xf]
      %v262 = vld [vmem:[%s2] sm:$0x1]
      %v264 = vlaneseq
      %v265 = vshrl.u32 %v264, 7
      %v266 = vsub.s32 0, %v265
      %v267 = vrot.slane %v262, %v266
      %v301 = vunpack.c.l.b16 %v228
      %v302 = vunpack.c.l.b16 %v229
      %v303 = vunpack.c.l.b16 %v230
      %v304 = vunpack.c.l.b16 %v231
      %v305 = vunpack.c.l.b16 %v232
      %v306 = vunpack.c.l.b16 %v233
      %v307 = vunpack.c.l.b16 %v234
      %v308 = vunpack.c.l.b16 %v235
      %v309 = vunpack.c.l.b16 %v236
      %v310 = vunpack.c.l.b16 %v237
      %v311 = vunpack.c.l.b16 %v238
      %v312 = vunpack.c.l.b16 %v239
      %v313 = vunpack.c.l.b16 %v240
      %v314 = vunpack.c.l.b16 %v241
      %v315 = vunpack.c.l.b16 %v242
      %v316 = vunpack.c.l.b16 %v243
      %v317 = vunpack.c.l.b16 %v244
      %v318 = vunpack.c.l.b16 %v245
      %v319 = vunpack.c.l.b16 %v246
      %v320 = vunpack.c.l.b16 %v247
      %v321 = vunpack.c.l.b16 %v248
      %v322 = vunpack.c.l.b16 %v249
      %v323 = vunpack.c.l.b16 %v250
      %v324 = vunpack.c.l.b16 %v251
      %v325 = vunpack.c.l.b16 %v252
      %v326 = vunpack.c.l.b16 %v253
      %v327 = vunpack.c.l.b16 %v254
      %v328 = vunpack.c.l.b16 %v255
      %v329 = vunpack.c.l.b16 %v256
      %v330 = vunpack.c.l.b16 %v257
      %v331 = vunpack.c.l.b16 %v258
      %v332 = vunpack.c.l.b16 %v259
      %v333 = vpack.c.b16 %v302, %v301
      %v334 = vpack.c.b16 %v304, %v303
      %v335 = vpack.c.b16 %v306, %v305
      %v336 = vpack.c.b16 %v308, %v307
      %v337 = vpack.c.b16 %v310, %v309
      %v338 = vpack.c.b16 %v312, %v311
      %v339 = vpack.c.b16 %v314, %v313
      %v340 = vpack.c.b16 %v316, %v315
      %v341 = vpack.c.b16 %v318, %v317
      %v342 = vpack.c.b16 %v320, %v319
      %v343 = vpack.c.b16 %v322, %v321
      %v344 = vpack.c.b16 %v324, %v323
      %v345 = vpack.c.b16 %v326, %v325
      %v346 = vpack.c.b16 %v328, %v327
      %v347 = vpack.c.b16 %v330, %v329
      %v348 = vpack.c.b16 %v332, %v331
      %v351 = vunpack.c.l.b16 %v260
      %v352 = vunpack.c.l.b16 %v261
      %v353 = vpack.c.b16 %v352, %v351
      %vm355 = vcmask 130048
      %v357 = vsel %vm355, %v333, 0
      %v360 = vsel %vm355, %v334, 0
      %v363 = vsel %vm355, %v335, 0
      %v366 = vsel %vm355, %v336, 0
      %v369 = vsel %vm355, %v337, 0
      %v372 = vsel %vm355, %v338, 0
      %v375 = vsel %vm355, %v339, 0
      %v378 = vsel %vm355, %v340, 0
      %v381 = vsel %vm355, %v341, 0
      %v384 = vsel %vm355, %v342, 0
      %v387 = vsel %vm355, %v343, 0
      %v390 = vsel %vm355, %v344, 0
      %v393 = vsel %vm355, %v345, 0
      %v396 = vsel %vm355, %v346, 0
      %v399 = vsel %vm355, %v347, 0
      %v402 = vsel %vm355, %v348, 0
      %404 = vmatprep.subr.bf16.mxu0 0
      %405 = vmatpush1.bf16.msra.mxu0 0
      %406 = vmatprep.subr.bf16.mxu0 0
      %407 = vmatpush1.bf16.msra.mxu0 0
      %408 = vmatprep.subr.bf16.mxu0 0
      %409 = vmatpush1.bf16.msra.mxu0 0
      %410 = vmatprep.subr.bf16.mxu0 0
      %411 = vmatpush1.bf16.msra.mxu0 0
      %412 = vmatprep.subr.bf16.mxu0 0
      %413 = vmatpush1.bf16.msra.mxu0 0
      %414 = vmatprep.subr.bf16.mxu0 0
      %415 = vmatpush1.bf16.msra.mxu0 0
      %416 = vmatprep.subr.bf16.mxu0 0
      %417 = vmatpush1.bf16.msra.mxu0 0
      %418 = vmatprep.subr.bf16.mxu0 0
      %419 = vmatpush1.bf16.msra.mxu0 %v353
      %420 = vmatprep.subr.bf16.mxu0 0
      %421 = vmatpush2.bf16.msra.mxu0 0
      %422 = vmatprep.subr.bf16.mxu0 0
      %423 = vmatpush2.bf16.msra.mxu0 0
      %424 = vmatprep.subr.bf16.mxu0 0
      %425 = vmatpush2.bf16.msra.mxu0 0
      %426 = vmatprep.subr.bf16.mxu0 0
      %427 = vmatpush2.bf16.msra.mxu0 0
      %428 = vmatprep.subr.bf16.mxu0 0
      %429 = vmatpush2.bf16.msra.mxu0 0
      %430 = vmatprep.subr.bf16.mxu0 0
      %431 = vmatpush2.bf16.msra.mxu0 0
      %432 = vmatprep.subr.bf16.mxu0 0
      %433 = vmatpush2.bf16.msra.mxu0 0
      %434 = vmatprep.subr.bf16.mxu0 0
      %435 = vmatpush2.bf16.msra.mxu0 0
      %436 = vmatprep.mubr.bf16.mxu0 0
      %437 = vmatmul.mubr.bf16.gmra.mxu0 %v357
      %v438 = vpop.f32.mrf.mxu0
      %v439 = vadd.f32 %v267, %v438
      %v440 = vpop.f32.mrf.mxu0
      %v441 = vpop.f32.mrf.mxu0
      %v442 = vadd.f32 %v267, %v441
      %v443 = vpop.f32.mrf.mxu0
      %444 = vmatprep.mubr.bf16.mxu0 0
      %445 = vmatmul.mubr.bf16.gmra.mxu0 %v360
      %v446 = vpop.f32.mrf.mxu0
      %v447 = vadd.f32 %v267, %v446
      %v448 = vpop.f32.mrf.mxu0
      %v449 = vpop.f32.mrf.mxu0
      %v450 = vadd.f32 %v267, %v449
      %v451 = vpop.f32.mrf.mxu0
      %452 = vmatprep.mubr.bf16.mxu0 0
      %453 = vmatmul.mubr.bf16.gmra.mxu0 %v363
      %v454 = vpop.f32.mrf.mxu0
      %v455 = vadd.f32 %v267, %v454
      %v456 = vpop.f32.mrf.mxu0
      %v457 = vpop.f32.mrf.mxu0
      %v458 = vadd.f32 %v267, %v457
      %v459 = vpop.f32.mrf.mxu0
      %460 = vmatprep.mubr.bf16.mxu0 0
      %461 = vmatmul.mubr.bf16.gmra.mxu0 %v366
      %v462 = vpop.f32.mrf.mxu0
      %v463 = vadd.f32 %v267, %v462
      %v464 = vpop.f32.mrf.mxu0
      %v465 = vpop.f32.mrf.mxu0
      %v466 = vadd.f32 %v267, %v465
      %v467 = vpop.f32.mrf.mxu0
      %468 = vmatprep.mubr.bf16.mxu0 0
      %469 = vmatmul.mubr.bf16.gmra.mxu0 %v369
      %v470 = vpop.f32.mrf.mxu0
      %v471 = vadd.f32 %v267, %v470
      %v472 = vpop.f32.mrf.mxu0
      %v473 = vpop.f32.mrf.mxu0
      %v474 = vadd.f32 %v267, %v473
      %v475 = vpop.f32.mrf.mxu0
      %476 = vmatprep.mubr.bf16.mxu0 0
      %477 = vmatmul.mubr.bf16.gmra.mxu0 %v372
      %v478 = vpop.f32.mrf.mxu0
      %v479 = vadd.f32 %v267, %v478
      %v480 = vpop.f32.mrf.mxu0
      %v481 = vpop.f32.mrf.mxu0
      %v482 = vadd.f32 %v267, %v481
      %v483 = vpop.f32.mrf.mxu0
      %484 = vmatprep.mubr.bf16.mxu0 0
      %485 = vmatmul.mubr.bf16.gmra.mxu0 %v375
      %v486 = vpop.f32.mrf.mxu0
      %v487 = vadd.f32 %v267, %v486
      %v488 = vpop.f32.mrf.mxu0
      %v489 = vpop.f32.mrf.mxu0
      %v490 = vadd.f32 %v267, %v489
      %v491 = vpop.f32.mrf.mxu0
      %492 = vmatprep.mubr.bf16.mxu0 0
      %493 = vmatmul.mubr.bf16.gmra.mxu0 %v378
      %v494 = vpop.f32.mrf.mxu0
      %v495 = vadd.f32 %v267, %v494
      %v496 = vpop.f32.mrf.mxu0
      %v497 = vpop.f32.mrf.mxu0
      %v498 = vadd.f32 %v267, %v497
      %v499 = vpop.f32.mrf.mxu0
      %500 = vmatprep.mubr.bf16.mxu0 0
      %501 = vmatmul.mubr.bf16.gmra.mxu0 %v381
      %v502 = vpop.f32.mrf.mxu0
      %v503 = vadd.f32 %v267, %v502
      %v504 = vpop.f32.mrf.mxu0
      %v505 = vpop.f32.mrf.mxu0
      %v506 = vadd.f32 %v267, %v505
      %v507 = vpop.f32.mrf.mxu0
      %508 = vmatprep.mubr.bf16.mxu0 0
      %509 = vmatmul.mubr.bf16.gmra.mxu0 %v384
      %v510 = vpop.f32.mrf.mxu0
      %v511 = vadd.f32 %v267, %v510
      %v512 = vpop.f32.mrf.mxu0
      %v513 = vpop.f32.mrf.mxu0
      %v514 = vadd.f32 %v267, %v513
      %v515 = vpop.f32.mrf.mxu0
      %516 = vmatprep.mubr.bf16.mxu0 0
      %517 = vmatmul.mubr.bf16.gmra.mxu0 %v387
      %v518 = vpop.f32.mrf.mxu0
      %v519 = vadd.f32 %v267, %v518
      %v520 = vpop.f32.mrf.mxu0
      %v521 = vpop.f32.mrf.mxu0
      %v522 = vadd.f32 %v267, %v521
      %v523 = vpop.f32.mrf.mxu0
      %524 = vmatprep.mubr.bf16.mxu0 0
      %525 = vmatmul.mubr.bf16.gmra.mxu0 %v390
      %v526 = vpop.f32.mrf.mxu0
      %v527 = vadd.f32 %v267, %v526
      %v528 = vpop.f32.mrf.mxu0
      %v529 = vpop.f32.mrf.mxu0
      %v530 = vadd.f32 %v267, %v529
      %v531 = vpop.f32.mrf.mxu0
      %532 = vmatprep.mubr.bf16.mxu0 0
      %533 = vmatmul.mubr.bf16.gmra.mxu0 %v393
      %v534 = vpop.f32.mrf.mxu0
      %v535 = vadd.f32 %v267, %v534
      %v536 = vpop.f32.mrf.mxu0
      %v537 = vpop.f32.mrf.mxu0
      %v538 = vadd.f32 %v267, %v537
      %v539 = vpop.f32.mrf.mxu0
      %540 = vmatprep.mubr.bf16.mxu0 0
      %541 = vmatmul.mubr.bf16.gmra.mxu0 %v396
      %v542 = vpop.f32.mrf.mxu0
      %v543 = vadd.f32 %v267, %v542
      %v544 = vpop.f32.mrf.mxu0
      %v545 = vpop.f32.mrf.mxu0
      %v546 = vadd.f32 %v267, %v545
      %v547 = vpop.f32.mrf.mxu0
      %548 = vmatprep.mubr.bf16.mxu0 0
      %549 = vmatmul.mubr.bf16.gmra.mxu0 %v399
      %v550 = vpop.f32.mrf.mxu0
      %v551 = vadd.f32 %v267, %v550
      %v552 = vpop.f32.mrf.mxu0
      %v553 = vpop.f32.mrf.mxu0
      %v554 = vadd.f32 %v267, %v553
      %v555 = vpop.f32.mrf.mxu0
      %556 = vmatprep.mubr.bf16.mxu0 0
      %557 = vmatmul.mubr.bf16.gmra.mxu0 %v402
      %v558 = vpop.f32.mrf.mxu0
      %v559 = vadd.f32 %v267, %v558
      %v560 = vpop.f32.mrf.mxu0
      %v561 = vpop.f32.mrf.mxu0
      %v562 = vadd.f32 %v267, %v561
      %v563 = vpop.f32.mrf.mxu0
      %564 = vdwg.mxu0
      %v565 = vmax.f32 %v439, 0.0
      %v566 = vmax.f32 %v442, 0.0
      %v567 = vmax.f32 %v447, 0.0
      %v568 = vmax.f32 %v450, 0.0
      %v569 = vmax.f32 %v455, 0.0
      %v570 = vmax.f32 %v458, 0.0
      %v571 = vmax.f32 %v463, 0.0
      %v572 = vmax.f32 %v466, 0.0
      %v573 = vmax.f32 %v471, 0.0
      %v574 = vmax.f32 %v474, 0.0
      %v575 = vmax.f32 %v479, 0.0
      %v576 = vmax.f32 %v482, 0.0
      %v577 = vmax.f32 %v487, 0.0
      %v578 = vmax.f32 %v490, 0.0
      %v579 = vmax.f32 %v495, 0.0
      %v580 = vmax.f32 %v498, 0.0
      %v581 = vmax.f32 %v503, 0.0
      %v582 = vmax.f32 %v506, 0.0
      %v583 = vmax.f32 %v511, 0.0
      %v584 = vmax.f32 %v514, 0.0
      %v585 = vmax.f32 %v519, 0.0
      %v586 = vmax.f32 %v522, 0.0
      %v587 = vmax.f32 %v527, 0.0
      %v588 = vmax.f32 %v530, 0.0
      %v589 = vmax.f32 %v535, 0.0
      %v590 = vmax.f32 %v538, 0.0
      %v591 = vmax.f32 %v543, 0.0
      %v592 = vmax.f32 %v546, 0.0
      %v593 = vmax.f32 %v551, 0.0
      %v594 = vmax.f32 %v554, 0.0
      %v595 = vmax.f32 %v559, 0.0
      %v596 = vmax.f32 %v562, 0.0
      %vm597 = vcmask 261120
      %598 = vst.msk [vmem:[#allocation2] sm:$0xff] %vm597, 0.0
      %599 = vst.msk [vmem:[#allocation2 + $0x8] sm:$0xff] %vm597, 0.0
      %600 = vst.msk [vmem:[#allocation2 + $0x110] sm:$0xff] %vm597, 0.0
      %601 = vst.msk [vmem:[#allocation2 + $0x118] sm:$0xff] %vm597, 0.0
      %v602 = vld [vmem:[%s3] sm:$0xf]
      %v603 = vld [vmem:[%s3 + $0x4] sm:$0xf]
      %v604 = vld [vmem:[%s3 + $0x8] sm:$0xf]
      %v605 = vld [vmem:[%s3 + $0xc] sm:$0xf]
      %v606 = vld [vmem:[%s3 + $0x10] sm:$0xf]
      %v607 = vld [vmem:[%s3 + $0x14] sm:$0xf]
      %v608 = vld [vmem:[%s3 + $0x18] sm:$0xf]
      %v609 = vld [vmem:[%s3 + $0x1c] sm:$0xf]
      %v610 = vld [vmem:[%s3 + $0x20] sm:$0xf]
      %v611 = vld [vmem:[%s3 + $0x24] sm:$0xf]
      %v612 = vld [vmem:[%s3 + $0x28] sm:$0xf]
      %v613 = vld [vmem:[%s3 + $0x2c] sm:$0xf]
      %v614 = vld [vmem:[%s3 + $0x30] sm:$0xf]
      %v615 = vld [vmem:[%s3 + $0x34] sm:$0xf]
      %v616 = vld [vmem:[%s3 + $0x38] sm:$0xf]
      %v617 = vld [vmem:[%s3 + $0x3c] sm:$0xf]
      %v618 = vld [vmem:[%s3 + $0x40] sm:$0xf]
      %v619 = vld [vmem:[%s3 + $0x44] sm:$0xf]
      %v620 = vld [vmem:[%s3 + $0x48] sm:$0xf]
      %v621 = vld [vmem:[%s3 + $0x4c] sm:$0xf]
      %v622 = vld [vmem:[%s3 + $0x50] sm:$0xf]
      %v623 = vld [vmem:[%s3 + $0x54] sm:$0xf]
      %v624 = vld [vmem:[%s3 + $0x58] sm:$0xf]
      %v625 = vld [vmem:[%s3 + $0x5c] sm:$0xf]
      %v626 = vld [vmem:[%s3 + $0x60] sm:$0xf]
      %v627 = vld [vmem:[%s3 + $0x64] sm:$0xf]
      %v628 = vld [vmem:[%s3 + $0x68] sm:$0xf]
      %v629 = vld [vmem:[%s3 + $0x6c] sm:$0xf]
      %v630 = vld [vmem:[%s4] sm:$0x7]
      %631 = vst.msk [vmem:[#allocation2 + $0x10] sm:$0xff] %vm597, %v565
      %632 = vst.msk [vmem:[#allocation2 + $0x18] sm:$0xff] %vm597, %v566
      %633 = vst.msk [vmem:[#allocation2 + $0x20] sm:$0xff] %vm597, %v567
      %634 = vst.msk [vmem:[#allocation2 + $0x28] sm:$0xff] %vm597, %v568
      %635 = vst.msk [vmem:[#allocation2 + $0x30] sm:$0xff] %vm597, %v569
      %636 = vst.msk [vmem:[#allocation2 + $0x38] sm:$0xff] %vm597, %v570
      %637 = vst.msk [vmem:[#allocation2 + $0x40] sm:$0xff] %vm597, %v571
      %638 = vst.msk [vmem:[#allocation2 + $0x48] sm:$0xff] %vm597, %v572
      %639 = vst.msk [vmem:[#allocation2 + $0x50] sm:$0xff] %vm597, %v573
      %640 = vst.msk [vmem:[#allocation2 + $0x58] sm:$0xff] %vm597, %v574
      %641 = vst.msk [vmem:[#allocation2 + $0x60] sm:$0xff] %vm597, %v575
      %642 = vst.msk [vmem:[#allocation2 + $0x68] sm:$0xff] %vm597, %v576
      %643 = vst.msk [vmem:[#allocation2 + $0x70] sm:$0xff] %vm597, %v577
      %644 = vst.msk [vmem:[#allocation2 + $0x78] sm:$0xff] %vm597, %v578
      %645 = vst.msk [vmem:[#allocation2 + $0x80] sm:$0xff] %vm597, %v579
      %646 = vst.msk [vmem:[#allocation2 + $0x88] sm:$0xff] %vm597, %v580
      %647 = vst.msk [vmem:[#allocation2 + $0x90] sm:$0xff] %vm597, %v581
      %648 = vst.msk [vmem:[#allocation2 + $0x98] sm:$0xff] %vm597, %v582
      %649 = vst.msk [vmem:[#allocation2 + $0xa0] sm:$0xff] %vm597, %v583
      %650 = vst.msk [vmem:[#allocation2 + $0xa8] sm:$0xff] %vm597, %v584
      %651 = vst.msk [vmem:[#allocation2 + $0xb0] sm:$0xff] %vm597, %v585
      %652 = vst.msk [vmem:[#allocation2 + $0xb8] sm:$0xff] %vm597, %v586
      %653 = vst.msk [vmem:[#allocation2 + $0xc0] sm:$0xff] %vm597, %v587
      %654 = vst.msk [vmem:[#allocation2 + $0xc8] sm:$0xff] %vm597, %v588
      %655 = vst.msk [vmem:[#allocation2 + $0xd0] sm:$0xff] %vm597, %v589
      %656 = vst.msk [vmem:[#allocation2 + $0xd8] sm:$0xff] %vm597, %v590
      %657 = vst.msk [vmem:[#allocation2 + $0xe0] sm:$0xff] %vm597, %v591
      %658 = vst.msk [vmem:[#allocation2 + $0xe8] sm:$0xff] %vm597, %v592
      %659 = vst.msk [vmem:[#allocation2 + $0xf0] sm:$0xff] %vm597, %v593
      %660 = vst.msk [vmem:[#allocation2 + $0xf8] sm:$0xff] %vm597, %v594
      %661 = vst.msk [vmem:[#allocation2 + $0x100] sm:$0xff] %vm597, %v595
      %662 = vst.msk [vmem:[#allocation2 + $0x108] sm:$0xff] %vm597, %v596
      %v663 = vpack.c.bf16 %v566, %v565
      %v664 = vpack.c.bf16 %v568, %v567
      %v665 = vpack.c.bf16 %v570, %v569
      %v666 = vpack.c.bf16 %v572, %v571
      %v667 = vpack.c.bf16 %v574, %v573
      %v668 = vpack.c.bf16 %v576, %v575
      %v669 = vpack.c.bf16 %v578, %v577
      %v670 = vpack.c.bf16 %v580, %v579
      %v671 = vpack.c.bf16 %v582, %v581
      %v672 = vpack.c.bf16 %v584, %v583
      %v673 = vpack.c.bf16 %v586, %v585
      %v674 = vpack.c.bf16 %v588, %v587
      %v675 = vpack.c.bf16 %v590, %v589
      %v676 = vpack.c.bf16 %v592, %v591
      %v677 = vpack.c.bf16 %v594, %v593
      %v678 = vpack.c.bf16 %v596, %v595
      %v679 = vld [vmem:[#allocation2] sm:$0xff]
      %v680 = vld [vmem:[#allocation2 + $0x8] sm:$0xff]
      %v681 = vld [vmem:[#allocation2 + $0x10] sm:$0xff]
      %v682 = vld [vmem:[#allocation2 + $0x18] sm:$0xff]
      %v683 = vld [vmem:[#allocation2 + $0x20] sm:$0xff]
      %v684 = vld [vmem:[#allocation2 + $0x28] sm:$0xff]
      %v685 = vld [vmem:[#allocation2 + $0x30] sm:$0xff]
      %v686 = vld [vmem:[#allocation2 + $0x38] sm:$0xff]
      %v687 = vld [vmem:[#allocation2 + $0x40] sm:$0xff]
      %v688 = vld [vmem:[#allocation2 + $0x48] sm:$0xff]
      %v689 = vld [vmem:[#allocation2 + $0x50] sm:$0xff]
      %v690 = vld [vmem:[#allocation2 + $0x58] sm:$0xff]
      %v691 = vld [vmem:[#allocation2 + $0x60] sm:$0xff]
      %v692 = vld [vmem:[#allocation2 + $0x68] sm:$0xff]
      %v693 = vld [vmem:[#allocation2 + $0x70] sm:$0xff]
      %v694 = vld [vmem:[#allocation2 + $0x78] sm:$0xff]
      %v695 = vld [vmem:[#allocation2 + $0x80] sm:$0xff]
      %v696 = vld [vmem:[#allocation2 + $0x88] sm:$0xff]
      %v697 = vld [vmem:[#allocation2 + $0x90] sm:$0xff]
      %v698 = vld [vmem:[#allocation2 + $0x98] sm:$0xff]
      %v699 = vld [vmem:[#allocation2 + $0xa0] sm:$0xff]
      %v700 = vld [vmem:[#allocation2 + $0xa8] sm:$0xff]
      %v701 = vld [vmem:[#allocation2 + $0xb0] sm:$0xff]
      %v702 = vld [vmem:[#allocation2 + $0xb8] sm:$0xff]
      %v703 = vld [vmem:[#allocation2 + $0xc0] sm:$0xff]
      %v704 = vld [vmem:[#allocation2 + $0xc8] sm:$0xff]
      %v705 = vld [vmem:[#allocation2 + $0xd0] sm:$0xff]
      %v706 = vld [vmem:[#allocation2 + $0xd8] sm:$0xff]
      %v707 = vld [vmem:[#allocation2 + $0xe0] sm:$0xff]
      %v708 = vld [vmem:[#allocation2 + $0xe8] sm:$0xff]
      %v709 = vld [vmem:[#allocation2 + $0xf0] sm:$0xff]
      %v710 = vld [vmem:[#allocation2 + $0xf8] sm:$0xff]
      %v711 = vpack.c.bf16 %v680, %v679
      %v712 = vpack.c.bf16 %v682, %v681
      %v713 = vpack.c.bf16 %v684, %v683
      %v714 = vpack.c.bf16 %v686, %v685
      %v715 = vpack.c.bf16 %v688, %v687
      %v716 = vpack.c.bf16 %v690, %v689
      %v717 = vpack.c.bf16 %v692, %v691
      %v718 = vpack.c.bf16 %v694, %v693
      %v719 = vpack.c.bf16 %v696, %v695
      %v720 = vpack.c.bf16 %v698, %v697
      %v721 = vpack.c.bf16 %v700, %v699
      %v722 = vpack.c.bf16 %v702, %v701
      %v723 = vpack.c.bf16 %v704, %v703
      %v724 = vpack.c.bf16 %v706, %v705
      %v725 = vpack.c.bf16 %v708, %v707
      %v726 = vpack.c.bf16 %v710, %v709
      %v727 = vld [vmem:[#allocation2 + $0x100] sm:$0xff]
      %v728 = vld [vmem:[#allocation2 + $0x108] sm:$0xff]
      %v729 = vld [vmem:[#allocation2 + $0x110] sm:$0xff]
      %v730 = vld [vmem:[#allocation2 + $0x118] sm:$0xff]
      %v731 = vpack.c.bf16 %v728, %v727
      %v732 = vpack.c.bf16 %v730, %v729
      %749 = vrot.lane.b32.xlu0 %v663, 32
      %v750 = vpop.permute.xlu0 %749
      %751 = vrot.lane.b32.xlu0 %v664, 32
      %v752 = vpop.permute.xlu0 %751
      %753 = vrot.lane.b32.xlu0 %v665, 32
      %v754 = vpop.permute.xlu0 %753
      %755 = vrot.lane.b32.xlu0 %v666, 32
      %v756 = vpop.permute.xlu0 %755
      %757 = vrot.lane.b32.xlu0 %v667, 32
      %v758 = vpop.permute.xlu0 %757
      %759 = vrot.lane.b32.xlu0 %v668, 32
      %v760 = vpop.permute.xlu0 %759
      %761 = vrot.lane.b32.xlu0 %v669, 32
      %v762 = vpop.permute.xlu0 %761
      %763 = vrot.lane.b32.xlu0 %v670, 32
      %v764 = vpop.permute.xlu0 %763
      %765 = vrot.lane.b32.xlu0 %v671, 32
      %v766 = vpop.permute.xlu0 %765
      %767 = vrot.lane.b32.xlu0 %v672, 32
      %v768 = vpop.permute.xlu0 %767
      %769 = vrot.lane.b32.xlu0 %v673, 32
      %v770 = vpop.permute.xlu0 %769
      %771 = vrot.lane.b32.xlu0 %v674, 32
      %v772 = vpop.permute.xlu0 %771
      %773 = vrot.lane.b32.xlu0 %v675, 32
      %v774 = vpop.permute.xlu0 %773
      %775 = vrot.lane.b32.xlu0 %v676, 32
      %v776 = vpop.permute.xlu0 %775
      %777 = vrot.lane.b32.xlu0 %v677, 32
      %v778 = vpop.permute.xlu0 %777
      %779 = vrot.lane.b32.xlu0 %v678, 32
      %v780 = vpop.permute.xlu0 %779
      %797 = vrot.lane.b32.xlu0 %v713, 64
      %v798 = vpop.permute.xlu0 %797
      %799 = vrot.lane.b32.xlu0 %v714, 64
      %v800 = vpop.permute.xlu0 %799
      %801 = vrot.lane.b32.xlu0 %v715, 64
      %v802 = vpop.permute.xlu0 %801
      %803 = vrot.lane.b32.xlu0 %v716, 64
      %v804 = vpop.permute.xlu0 %803
      %805 = vrot.lane.b32.xlu0 %v717, 64
      %v806 = vpop.permute.xlu0 %805
      %807 = vrot.lane.b32.xlu0 %v718, 64
      %v808 = vpop.permute.xlu0 %807
      %809 = vrot.lane.b32.xlu0 %v719, 64
      %v810 = vpop.permute.xlu0 %809
      %811 = vrot.lane.b32.xlu0 %v720, 64
      %v812 = vpop.permute.xlu0 %811
      %813 = vrot.lane.b32.xlu0 %v721, 64
      %v814 = vpop.permute.xlu0 %813
      %815 = vrot.lane.b32.xlu0 %v722, 64
      %v816 = vpop.permute.xlu0 %815
      %817 = vrot.lane.b32.xlu0 %v723, 64
      %v818 = vpop.permute.xlu0 %817
      %819 = vrot.lane.b32.xlu0 %v724, 64
      %v820 = vpop.permute.xlu0 %819
      %821 = vrot.lane.b32.xlu0 %v725, 64
      %v822 = vpop.permute.xlu0 %821
      %823 = vrot.lane.b32.xlu0 %v726, 64
      %v824 = vpop.permute.xlu0 %823
      %825 = vrot.lane.b32.xlu0 %v731, 64
      %v826 = vpop.permute.xlu0 %825
      %827 = vrot.lane.b32.xlu0 %v732, 64
      %v828 = vpop.permute.xlu0 %827
      %v831 = vsel %vm597, %v711, %v750
      %v834 = vsel %vm597, %v712, %v752
      %v837 = vsel %vm597, %v713, %v754
      %v840 = vsel %vm597, %v714, %v756
      %v843 = vsel %vm597, %v715, %v758
      %v846 = vsel %vm597, %v716, %v760
      %v849 = vsel %vm597, %v717, %v762
      %v852 = vsel %vm597, %v718, %v764
      %v855 = vsel %vm597, %v719, %v766
      %v858 = vsel %vm597, %v720, %v768
      %v861 = vsel %vm597, %v721, %v770
      %v864 = vsel %vm597, %v722, %v772
      %v867 = vsel %vm597, %v723, %v774
      %v870 = vsel %vm597, %v724, %v776
      %v873 = vsel %vm597, %v725, %v778
      %v876 = vsel %vm597, %v726, %v780
      %vm877 = vcmask 523264
      %v879 = vsel %vm877, %v831, %v798
      %v881 = vsel %vm877, %v834, %v800
      %v883 = vsel %vm877, %v837, %v802
      %v885 = vsel %vm877, %v840, %v804
      %v887 = vsel %vm877, %v843, %v806
      %v889 = vsel %vm877, %v846, %v808
      %v891 = vsel %vm877, %v849, %v810
      %v893 = vsel %vm877, %v852, %v812
      %v895 = vsel %vm877, %v855, %v814
      %v897 = vsel %vm877, %v858, %v816
      %v899 = vsel %vm877, %v861, %v818
      %v901 = vsel %vm877, %v864, %v820
      %v903 = vsel %vm877, %v867, %v822
      %v905 = vsel %vm877, %v870, %v824
      %v907 = vsel %vm877, %v873, %v826
      %v909 = vsel %vm877, %v876, %v828
      %v910 = vlaneseq
      %v911 = vshrl.u32 %v910, 7
      %v912 = vsub.s32 0, %v911
      %v913 = vrot.slane %v630, %v912
      %v926 = vunpack.c.l.b16 %v602
      %v927 = vunpack.c.l.b16 %v603
      %v928 = vunpack.c.l.b16 %v604
      %v929 = vunpack.c.l.b16 %v605
      %v930 = vunpack.c.l.b16 %v606
      %v931 = vunpack.c.l.b16 %v607
      %v932 = vunpack.c.l.b16 %v608
      %v933 = vunpack.c.l.b16 %v609
      %v934 = vunpack.c.l.b16 %v610
      %v935 = vunpack.c.l.b16 %v611
      %v936 = vunpack.c.l.b16 %v612
      %v937 = vunpack.c.l.b16 %v613
      %v938 = vpack.c.b16 %v927, %v926
      %v939 = vpack.c.b16 %v929, %v928
      %v940 = vpack.c.b16 %v931, %v930
      %v941 = vpack.c.b16 %v933, %v932
      %v942 = vpack.c.b16 %v935, %v934
      %v943 = vpack.c.b16 %v937, %v936
      %vm950 = vcmask 785408
      %v951 = vsel %vm950, %v879, 0
      %v953 = vsel %vm950, %v881, 0
      %v955 = vsel %vm950, %v883, 0
      %v957 = vsel %vm950, %v885, 0
      %v959 = vsel %vm950, %v887, 0
      %v961 = vsel %vm950, %v889, 0
      %v963 = vsel %vm950, %v891, 0
      %v965 = vsel %vm950, %v893, 0
      %v967 = vsel %vm950, %v895, 0
      %v969 = vsel %vm950, %v897, 0
      %v971 = vsel %vm950, %v899, 0
      %v973 = vsel %vm950, %v901, 0
      %v975 = vsel %vm950, %v903, 0
      %v977 = vsel %vm950, %v905, 0
      %v979 = vsel %vm950, %v907, 0
      %v981 = vsel %vm950, %v909, 0
      %983 = vmatprep.subr.bf16.mxu0 0
      %984 = vmatpush1.bf16.msra.mxu0 0
      %985 = vmatprep.subr.bf16.mxu0 0
      %986 = vmatpush1.bf16.msra.mxu0 0
      %987 = vmatprep.subr.bf16.mxu0 0
      %988 = vmatpush1.bf16.msra.mxu0 %v943
      %989 = vmatprep.subr.bf16.mxu0 0
      %990 = vmatpush1.bf16.msra.mxu0 %v942
      %991 = vmatprep.subr.bf16.mxu0 0
      %992 = vmatpush1.bf16.msra.mxu0 %v941
      %993 = vmatprep.subr.bf16.mxu0 0
      %994 = vmatpush1.bf16.msra.mxu0 %v940
      %995 = vmatprep.subr.bf16.mxu0 0
      %996 = vmatpush1.bf16.msra.mxu0 %v939
      %997 = vmatprep.subr.bf16.mxu0 0
      %998 = vmatpush1.bf16.msra.mxu0 %v938
      %999 = vmatprep.subr.bf16.mxu0 0
      %1000 = vmatpush2.bf16.msra.mxu0 0
      %1001 = vmatprep.subr.bf16.mxu0 0
      %1002 = vmatpush2.bf16.msra.mxu0 0
      %1003 = vmatprep.subr.bf16.mxu0 0
      %1004 = vmatpush2.bf16.msra.mxu0 0
      %1005 = vmatprep.subr.bf16.mxu0 0
      %1006 = vmatpush2.bf16.msra.mxu0 0
      %1007 = vmatprep.subr.bf16.mxu0 0
      %1008 = vmatpush2.bf16.msra.mxu0 0
      %1009 = vmatprep.subr.bf16.mxu0 0
      %1010 = vmatpush2.bf16.msra.mxu0 0
      %1011 = vmatprep.subr.bf16.mxu0 0
      %1012 = vmatpush2.bf16.msra.mxu0 0
      %1013 = vmatprep.subr.bf16.mxu0 0
      %1014 = vmatpush2.bf16.msra.mxu0 0
      %1015 = vmatprep.mubr.bf16.mxu0 0
      %1016 = vmatmul.mubr.bf16.gmra.mxu0 %v951
      %v1017 = vpop.f32.mrf.mxu0
      %v1018 = vadd.f32 %v913, %v1017
      %v1019 = vpop.f32.mrf.mxu0
      %v1020 = vpop.f32.mrf.mxu0
      %v1021 = vadd.f32 %v913, %v1020
      %v1022 = vpop.f32.mrf.mxu0
      %1023 = vmatprep.mubr.bf16.mxu0 0
      %1024 = vmatmul.mubr.bf16.gmra.mxu0 %v953
      %v1025 = vpop.f32.mrf.mxu0
      %v1026 = vadd.f32 %v913, %v1025
      %v1027 = vpop.f32.mrf.mxu0
      %v1028 = vpop.f32.mrf.mxu0
      %v1029 = vadd.f32 %v913, %v1028
      %v1030 = vpop.f32.mrf.mxu0
      %1031 = vmatprep.mubr.bf16.mxu0 0
      %1032 = vmatmul.mubr.bf16.gmra.mxu0 %v955
      %v1033 = vpop.f32.mrf.mxu0
      %v1034 = vadd.f32 %v913, %v1033
      %v1035 = vpop.f32.mrf.mxu0
      %v1036 = vpop.f32.mrf.mxu0
      %v1037 = vadd.f32 %v913, %v1036
      %v1038 = vpop.f32.mrf.mxu0
      %1039 = vmatprep.mubr.bf16.mxu0 0
      %1040 = vmatmul.mubr.bf16.gmra.mxu0 %v957
      %v1041 = vpop.f32.mrf.mxu0
      %v1042 = vadd.f32 %v913, %v1041
      %v1043 = vpop.f32.mrf.mxu0
      %v1044 = vpop.f32.mrf.mxu0
      %v1045 = vadd.f32 %v913, %v1044
      %v1046 = vpop.f32.mrf.mxu0
      %1047 = vmatprep.mubr.bf16.mxu0 0
      %1048 = vmatmul.mubr.bf16.gmra.mxu0 %v959
      %v1049 = vpop.f32.mrf.mxu0
      %v1050 = vadd.f32 %v913, %v1049
      %v1051 = vpop.f32.mrf.mxu0
      %v1052 = vpop.f32.mrf.mxu0
      %v1053 = vadd.f32 %v913, %v1052
      %v1054 = vpop.f32.mrf.mxu0
      %1055 = vmatprep.mubr.bf16.mxu0 0
      %1056 = vmatmul.mubr.bf16.gmra.mxu0 %v961
      %v1057 = vpop.f32.mrf.mxu0
      %v1058 = vadd.f32 %v913, %v1057
      %v1059 = vpop.f32.mrf.mxu0
      %v1060 = vpop.f32.mrf.mxu0
      %v1061 = vadd.f32 %v913, %v1060
      %v1062 = vpop.f32.mrf.mxu0
      %1063 = vmatprep.mubr.bf16.mxu0 0
      %1064 = vmatmul.mubr.bf16.gmra.mxu0 %v963
      %v1065 = vpop.f32.mrf.mxu0
      %v1066 = vadd.f32 %v913, %v1065
      %v1067 = vpop.f32.mrf.mxu0
      %v1068 = vpop.f32.mrf.mxu0
      %v1069 = vadd.f32 %v913, %v1068
      %v1070 = vpop.f32.mrf.mxu0
      %1071 = vmatprep.mubr.bf16.mxu0 0
      %1072 = vmatmul.mubr.bf16.gmra.mxu0 %v965
      %v1073 = vpop.f32.mrf.mxu0
      %v1074 = vadd.f32 %v913, %v1073
      %v1075 = vpop.f32.mrf.mxu0
      %v1076 = vpop.f32.mrf.mxu0
      %v1077 = vadd.f32 %v913, %v1076
      %v1078 = vpop.f32.mrf.mxu0
      %1079 = vmatprep.mubr.bf16.mxu0 0
      %1080 = vmatmul.mubr.bf16.gmra.mxu0 %v967
      %v1081 = vpop.f32.mrf.mxu0
      %v1082 = vadd.f32 %v913, %v1081
      %v1083 = vpop.f32.mrf.mxu0
      %v1084 = vpop.f32.mrf.mxu0
      %v1085 = vadd.f32 %v913, %v1084
      %v1086 = vpop.f32.mrf.mxu0
      %1087 = vmatprep.mubr.bf16.mxu0 0
      %1088 = vmatmul.mubr.bf16.gmra.mxu0 %v969
      %v1089 = vpop.f32.mrf.mxu0
      %v1090 = vadd.f32 %v913, %v1089
      %v1091 = vpop.f32.mrf.mxu0
      %v1092 = vpop.f32.mrf.mxu0
      %v1093 = vadd.f32 %v913, %v1092
      %v1094 = vpop.f32.mrf.mxu0
      %1095 = vmatprep.mubr.bf16.mxu0 0
      %1096 = vmatmul.mubr.bf16.gmra.mxu0 %v971
      %v1097 = vpop.f32.mrf.mxu0
      %v1098 = vadd.f32 %v913, %v1097
      %v1099 = vpop.f32.mrf.mxu0
      %v1100 = vpop.f32.mrf.mxu0
      %v1101 = vadd.f32 %v913, %v1100
      %v1102 = vpop.f32.mrf.mxu0
      %1103 = vmatprep.mubr.bf16.mxu0 0
      %1104 = vmatmul.mubr.bf16.gmra.mxu0 %v973
      %v1105 = vpop.f32.mrf.mxu0
      %v1106 = vadd.f32 %v913, %v1105
      %v1107 = vpop.f32.mrf.mxu0
      %v1108 = vpop.f32.mrf.mxu0
      %v1109 = vadd.f32 %v913, %v1108
      %v1110 = vpop.f32.mrf.mxu0
      %1111 = vmatprep.mubr.bf16.mxu0 0
      %1112 = vmatmul.mubr.bf16.gmra.mxu0 %v975
      %v1113 = vpop.f32.mrf.mxu0
      %v1114 = vadd.f32 %v913, %v1113
      %v1115 = vpop.f32.mrf.mxu0
      %v1116 = vpop.f32.mrf.mxu0
      %v1117 = vadd.f32 %v913, %v1116
      %v1118 = vpop.f32.mrf.mxu0
      %1119 = vmatprep.mubr.bf16.mxu0 0
      %1120 = vmatmul.mubr.bf16.gmra.mxu0 %v977
      %v1121 = vpop.f32.mrf.mxu0
      %v1122 = vadd.f32 %v913, %v1121
      %v1123 = vpop.f32.mrf.mxu0
      %v1124 = vpop.f32.mrf.mxu0
      %v1125 = vadd.f32 %v913, %v1124
      %v1126 = vpop.f32.mrf.mxu0
      %1127 = vmatprep.mubr.bf16.mxu0 0
      %1128 = vmatmul.mubr.bf16.gmra.mxu0 %v979
      %v1129 = vpop.f32.mrf.mxu0
      %v1130 = vadd.f32 %v913, %v1129
      %v1131 = vpop.f32.mrf.mxu0
      %v1132 = vpop.f32.mrf.mxu0
      %v1133 = vadd.f32 %v913, %v1132
      %v1134 = vpop.f32.mrf.mxu0
      %1135 = vmatprep.mubr.bf16.mxu0 0
      %1136 = vmatmul.mubr.bf16.gmra.mxu0 %v981
      %v1137 = vpop.f32.mrf.mxu0
      %v1138 = vadd.f32 %v913, %v1137
      %v1139 = vpop.f32.mrf.mxu0
      %v1140 = vpop.f32.mrf.mxu0
      %v1141 = vadd.f32 %v913, %v1140
      %v1142 = vpop.f32.mrf.mxu0
      %1143 = vdwg.mxu0
      %v1144 = vmax.f32 %v1018, 0.0
      %v1145 = vmax.f32 %v1021, 0.0
      %v1146 = vmax.f32 %v1026, 0.0
      %v1147 = vmax.f32 %v1029, 0.0
      %v1148 = vmax.f32 %v1034, 0.0
      %v1149 = vmax.f32 %v1037, 0.0
      %v1150 = vmax.f32 %v1042, 0.0
      %v1151 = vmax.f32 %v1045, 0.0
      %v1152 = vmax.f32 %v1050, 0.0
      %v1153 = vmax.f32 %v1053, 0.0
      %v1154 = vmax.f32 %v1058, 0.0
      %v1155 = vmax.f32 %v1061, 0.0
      %v1156 = vmax.f32 %v1066, 0.0
      %v1157 = vmax.f32 %v1069, 0.0
      %v1158 = vmax.f32 %v1074, 0.0
      %v1159 = vmax.f32 %v1077, 0.0
      %v1160 = vmax.f32 %v1082, 0.0
      %v1161 = vmax.f32 %v1085, 0.0
      %v1162 = vmax.f32 %v1090, 0.0
      %v1163 = vmax.f32 %v1093, 0.0
      %v1164 = vmax.f32 %v1098, 0.0
      %v1165 = vmax.f32 %v1101, 0.0
      %v1166 = vmax.f32 %v1106, 0.0
      %v1167 = vmax.f32 %v1109, 0.0
      %v1168 = vmax.f32 %v1114, 0.0
      %v1169 = vmax.f32 %v1117, 0.0
      %v1170 = vmax.f32 %v1122, 0.0
      %v1171 = vmax.f32 %v1125, 0.0
      %v1172 = vmax.f32 %v1130, 0.0
      %v1173 = vmax.f32 %v1133, 0.0
      %v1174 = vmax.f32 %v1138, 0.0
      %v1175 = vmax.f32 %v1141, 0.0
      %v1176 = vlaneseq
      %v1177 = vshrl.u32 %v1176, 7
      %v1178 = vadd.s32 %v1177, 8
      %v1179 = vadd.s32 %v1177, 16
      %v1180 = vadd.s32 %v1177, 24
      %v1181 = vadd.s32 %v1177, 32
      %v1182 = vadd.s32 %v1177, 40
      %v1183 = vadd.s32 %v1177, 48
      %v1184 = vadd.s32 %v1177, 56
      %v1185 = vadd.s32 %v1177, 64
      %v1186 = vadd.s32 %v1177, 72
      %v1187 = vadd.s32 %v1177, 80
      %v1188 = vadd.s32 %v1177, 88
      %v1189 = vadd.s32 %v1177, 96
      %v1190 = vadd.s32 %v1177, 104
      %v1191 = vadd.s32 %v1177, 112
      %v1192 = vadd.s32 %v1177, 120
      %v1193 = vadd.s32 %v1177, 128
      %v1194 = vadd.s32 %v1177, 136
      %v1195 = vadd.s32 %v1177, 144
      %v1196 = vadd.s32 %v1177, 152
      %v1197 = vadd.s32 %v1177, 160
      %v1198 = vadd.s32 %v1177, 168
      %v1199 = vadd.s32 %v1177, 176
      %v1200 = vadd.s32 %v1177, 184
      %v1201 = vadd.s32 %v1177, 192
      %v1202 = vadd.s32 %v1177, 200
      %v1203 = vadd.s32 %v1177, 208
      %v1204 = vadd.s32 %v1177, 216
      %v1205 = vadd.s32 %v1177, 224
      %v1206 = vadd.s32 %v1177, 232
      %v1207 = vadd.s32 %v1177, 240
      %v1208 = vadd.s32 %v1177, 248
      %vm1209 = vcmp.lt.s32.totalorder %v1177, 0
      %v1210 = vsub.s32 0, %v1177
      %v1211 = vsel %vm1209, %v1210, %v1177
      %v1212 = vshrl.u32 %v1211, 4
      %v1213 = vand.u32 %v1211, 15
      %v1214 = vsub.s32 0, %v1213
      %v1215 = vsel %vm1209, %v1214, %v1213
      %vm1216 = vcmp.lt.s32.totalorder %v1178, 0
      %v1217 = vsub.s32 0, %v1178
      %v1218 = vsel %vm1216, %v1217, %v1178
      %v1219 = vshrl.u32 %v1218, 4
      %v1220 = vand.u32 %v1218, 15
      %v1221 = vsub.s32 0, %v1220
      %v1222 = vsel %vm1216, %v1221, %v1220
      %vm1223 = vcmp.lt.s32.totalorder %v1179, 0
      %v1224 = vsub.s32 0, %v1179
      %v1225 = vsel %vm1223, %v1224, %v1179
      %v1226 = vshrl.u32 %v1225, 4
      %v1227 = vand.u32 %v1225, 15
      %v1228 = vsub.s32 0, %v1227
      %v1229 = vsel %vm1223, %v1228, %v1227
      %vm1230 = vcmp.lt.s32.totalorder %v1180, 0
      %v1231 = vsub.s32 0, %v1180
      %v1232 = vsel %vm1230, %v1231, %v1180
      %v1233 = vshrl.u32 %v1232, 4
      %v1234 = vand.u32 %v1232, 15
      %v1235 = vsub.s32 0, %v1234
      %v1236 = vsel %vm1230, %v1235, %v1234
      %vm1237 = vcmp.lt.s32.totalorder %v1181, 0
      %v1238 = vsub.s32 0, %v1181
      %v1239 = vsel %vm1237, %v1238, %v1181
      %v1240 = vshrl.u32 %v1239, 4
      %v1241 = vand.u32 %v1239, 15
      %v1242 = vsub.s32 0, %v1241
      %v1243 = vsel %vm1237, %v1242, %v1241
      %vm1244 = vcmp.lt.s32.totalorder %v1182, 0
      %v1245 = vsub.s32 0, %v1182
      %v1246 = vsel %vm1244, %v1245, %v1182
      %v1247 = vshrl.u32 %v1246, 4
      %v1248 = vand.u32 %v1246, 15
      %v1249 = vsub.s32 0, %v1248
      %v1250 = vsel %vm1244, %v1249, %v1248
      %vm1251 = vcmp.lt.s32.totalorder %v1183, 0
      %v1252 = vsub.s32 0, %v1183
      %v1253 = vsel %vm1251, %v1252, %v1183
      %v1254 = vshrl.u32 %v1253, 4
      %v1255 = vand.u32 %v1253, 15
      %v1256 = vsub.s32 0, %v1255
      %v1257 = vsel %vm1251, %v1256, %v1255
      %vm1258 = vcmp.lt.s32.totalorder %v1184, 0
      %v1259 = vsub.s32 0, %v1184
      %v1260 = vsel %vm1258, %v1259, %v1184
      %v1261 = vshrl.u32 %v1260, 4
      %v1262 = vand.u32 %v1260, 15
      %v1263 = vsub.s32 0, %v1262
      %v1264 = vsel %vm1258, %v1263, %v1262
      %vm1265 = vcmp.lt.s32.totalorder %v1185, 0
      %v1266 = vsub.s32 0, %v1185
      %v1267 = vsel %vm1265, %v1266, %v1185
      %v1268 = vshrl.u32 %v1267, 4
      %v1269 = vand.u32 %v1267, 15
      %v1270 = vsub.s32 0, %v1269
      %v1271 = vsel %vm1265, %v1270, %v1269
      %vm1272 = vcmp.lt.s32.totalorder %v1186, 0
      %v1273 = vsub.s32 0, %v1186
      %v1274 = vsel %vm1272, %v1273, %v1186
      %v1275 = vshrl.u32 %v1274, 4
      %v1276 = vand.u32 %v1274, 15
      %v1277 = vsub.s32 0, %v1276
      %v1278 = vsel %vm1272, %v1277, %v1276
      %vm1279 = vcmp.lt.s32.totalorder %v1187, 0
      %v1280 = vsub.s32 0, %v1187
      %v1281 = vsel %vm1279, %v1280, %v1187
      %v1282 = vshrl.u32 %v1281, 4
      %v1283 = vand.u32 %v1281, 15
      %v1284 = vsub.s32 0, %v1283
      %v1285 = vsel %vm1279, %v1284, %v1283
      %vm1286 = vcmp.lt.s32.totalorder %v1188, 0
      %v1287 = vsub.s32 0, %v1188
      %v1288 = vsel %vm1286, %v1287, %v1188
      %v1289 = vshrl.u32 %v1288, 4
      %v1290 = vand.u32 %v1288, 15
      %v1291 = vsub.s32 0, %v1290
      %v1292 = vsel %vm1286, %v1291, %v1290
      %vm1293 = vcmp.lt.s32.totalorder %v1189, 0
      %v1294 = vsub.s32 0, %v1189
      %v1295 = vsel %vm1293, %v1294, %v1189
      %v1296 = vshrl.u32 %v1295, 4
      %v1297 = vand.u32 %v1295, 15
      %v1298 = vsub.s32 0, %v1297
      %v1299 = vsel %vm1293, %v1298, %v1297
      %vm1300 = vcmp.lt.s32.totalorder %v1190, 0
      %v1301 = vsub.s32 0, %v1190
      %v1302 = vsel %vm1300, %v1301, %v1190
      %v1303 = vshrl.u32 %v1302, 4
      %v1304 = vand.u32 %v1302, 15
      %v1305 = vsub.s32 0, %v1304
      %v1306 = vsel %vm1300, %v1305, %v1304
      %vm1307 = vcmp.lt.s32.totalorder %v1191, 0
      %v1308 = vsub.s32 0, %v1191
      %v1309 = vsel %vm1307, %v1308, %v1191
      %v1310 = vshrl.u32 %v1309, 4
      %v1311 = vand.u32 %v1309, 15
      %v1312 = vsub.s32 0, %v1311
      %v1313 = vsel %vm1307, %v1312, %v1311
      %vm1314 = vcmp.lt.s32.totalorder %v1192, 0
      %v1315 = vsub.s32 0, %v1192
      %v1316 = vsel %vm1314, %v1315, %v1192
      %v1317 = vshrl.u32 %v1316, 4
      %v1318 = vand.u32 %v1316, 15
      %v1319 = vsub.s32 0, %v1318
      %v1320 = vsel %vm1314, %v1319, %v1318
      %vm1321 = vcmp.lt.s32.totalorder %v1193, 0
      %v1322 = vsub.s32 0, %v1193
      %v1323 = vsel %vm1321, %v1322, %v1193
      %v1324 = vshrl.u32 %v1323, 4
      %v1325 = vand.u32 %v1323, 15
      %v1326 = vsub.s32 0, %v1325
      %v1327 = vsel %vm1321, %v1326, %v1325
      %vm1328 = vcmp.lt.s32.totalorder %v1194, 0
      %v1329 = vsub.s32 0, %v1194
      %v1330 = vsel %vm1328, %v1329, %v1194
      %v1331 = vshrl.u32 %v1330, 4
      %v1332 = vand.u32 %v1330, 15
      %v1333 = vsub.s32 0, %v1332
      %v1334 = vsel %vm1328, %v1333, %v1332
      %vm1335 = vcmp.lt.s32.totalorder %v1195, 0
      %v1336 = vsub.s32 0, %v1195
      %v1337 = vsel %vm1335, %v1336, %v1195
      %v1338 = vshrl.u32 %v1337, 4
      %v1339 = vand.u32 %v1337, 15
      %v1340 = vsub.s32 0, %v1339
      %v1341 = vsel %vm1335, %v1340, %v1339
      %vm1342 = vcmp.lt.s32.totalorder %v1196, 0
      %v1343 = vsub.s32 0, %v1196
      %v1344 = vsel %vm1342, %v1343, %v1196
      %v1345 = vshrl.u32 %v1344, 4
      %v1346 = vand.u32 %v1344, 15
      %v1347 = vsub.s32 0, %v1346
      %v1348 = vsel %vm1342, %v1347, %v1346
      %vm1349 = vcmp.lt.s32.totalorder %v1197, 0
      %v1350 = vsub.s32 0, %v1197
      %v1351 = vsel %vm1349, %v1350, %v1197
      %v1352 = vshrl.u32 %v1351, 4
      %v1353 = vand.u32 %v1351, 15
      %v1354 = vsub.s32 0, %v1353
      %v1355 = vsel %vm1349, %v1354, %v1353
      %vm1356 = vcmp.lt.s32.totalorder %v1198, 0
      %v1357 = vsub.s32 0, %v1198
      %v1358 = vsel %vm1356, %v1357, %v1198
      %v1359 = vshrl.u32 %v1358, 4
      %v1360 = vand.u32 %v1358, 15
      %v1361 = vsub.s32 0, %v1360
      %v1362 = vsel %vm1356, %v1361, %v1360
      %vm1363 = vcmp.lt.s32.totalorder %v1199, 0
      %v1364 = vsub.s32 0, %v1199
      %v1365 = vsel %vm1363, %v1364, %v1199
      %v1366 = vshrl.u32 %v1365, 4
      %v1367 = vand.u32 %v1365, 15
      %v1368 = vsub.s32 0, %v1367
      %v1369 = vsel %vm1363, %v1368, %v1367
      %vm1370 = vcmp.lt.s32.totalorder %v1200, 0
      %v1371 = vsub.s32 0, %v1200
      %v1372 = vsel %vm1370, %v1371, %v1200
      %v1373 = vshrl.u32 %v1372, 4
      %v1374 = vand.u32 %v1372, 15
      %v1375 = vsub.s32 0, %v1374
      %v1376 = vsel %vm1370, %v1375, %v1374
      %vm1377 = vcmp.lt.s32.totalorder %v1201, 0
      %v1378 = vsub.s32 0, %v1201
      %v1379 = vsel %vm1377, %v1378, %v1201
      %v1380 = vshrl.u32 %v1379, 4
      %v1381 = vand.u32 %v1379, 15
      %v1382 = vsub.s32 0, %v1381
      %v1383 = vsel %vm1377, %v1382, %v1381
      %vm1384 = vcmp.lt.s32.totalorder %v1202, 0
      %v1385 = vsub.s32 0, %v1202
      %v1386 = vsel %vm1384, %v1385, %v1202
      %v1387 = vshrl.u32 %v1386, 4
      %v1388 = vand.u32 %v1386, 15
      %v1389 = vsub.s32 0, %v1388
      %v1390 = vsel %vm1384, %v1389, %v1388
      %vm1391 = vcmp.lt.s32.totalorder %v1203, 0
      %v1392 = vsub.s32 0, %v1203
      %v1393 = vsel %vm1391, %v1392, %v1203
      %v1394 = vshrl.u32 %v1393, 4
      %v1395 = vand.u32 %v1393, 15
      %v1396 = vsub.s32 0, %v1395
      %v1397 = vsel %vm1391, %v1396, %v1395
      %vm1398 = vcmp.lt.s32.totalorder %v1204, 0
      %v1399 = vsub.s32 0, %v1204
      %v1400 = vsel %vm1398, %v1399, %v1204
      %v1401 = vshrl.u32 %v1400, 4
      %v1402 = vand.u32 %v1400, 15
      %v1403 = vsub.s32 0, %v1402
      %v1404 = vsel %vm1398, %v1403, %v1402
      %vm1405 = vcmp.lt.s32.totalorder %v1205, 0
      %v1406 = vsub.s32 0, %v1205
      %v1407 = vsel %vm1405, %v1406, %v1205
      %v1408 = vshrl.u32 %v1407, 4
      %v1409 = vand.u32 %v1407, 15
      %v1410 = vsub.s32 0, %v1409
      %v1411 = vsel %vm1405, %v1410, %v1409
      %vm1412 = vcmp.lt.s32.totalorder %v1206, 0
      %v1413 = vsub.s32 0, %v1206
      %v1414 = vsel %vm1412, %v1413, %v1206
      %v1415 = vshrl.u32 %v1414, 4
      %v1416 = vand.u32 %v1414, 15
      %v1417 = vsub.s32 0, %v1416
      %v1418 = vsel %vm1412, %v1417, %v1416
      %vm1419 = vcmp.lt.s32.totalorder %v1207, 0
      %v1420 = vsub.s32 0, %v1207
      %v1421 = vsel %vm1419, %v1420, %v1207
      %v1422 = vshrl.u32 %v1421, 4
      %v1423 = vand.u32 %v1421, 15
      %v1424 = vsub.s32 0, %v1423
      %v1425 = vsel %vm1419, %v1424, %v1423
      %vm1426 = vcmp.lt.s32.totalorder %v1208, 0
      %v1427 = vsub.s32 0, %v1208
      %v1428 = vsel %vm1426, %v1427, %v1208
      %v1429 = vshrl.u32 %v1428, 4
      %v1430 = vand.u32 %v1428, 15
      %v1431 = vsub.s32 0, %v1430
      %v1432 = vsel %vm1426, %v1431, %v1430
      %vm1433 = vcmp.ne.s32.totalorder %v1215, 0
      %vm1434 = vcmp.ne.s32.totalorder %v1222, 0
      %vm1435 = vcmp.ne.s32.totalorder %v1229, 0
      %vm1436 = vcmp.ne.s32.totalorder %v1236, 0
      %vm1437 = vcmp.ne.s32.totalorder %v1243, 0
      %vm1438 = vcmp.ne.s32.totalorder %v1250, 0
      %vm1439 = vcmp.ne.s32.totalorder %v1257, 0
      %vm1440 = vcmp.ne.s32.totalorder %v1264, 0
      %vm1441 = vcmp.ne.s32.totalorder %v1271, 0
      %vm1442 = vcmp.ne.s32.totalorder %v1278, 0
      %vm1443 = vcmp.ne.s32.totalorder %v1285, 0
      %vm1444 = vcmp.ne.s32.totalorder %v1292, 0
      %vm1445 = vcmp.ne.s32.totalorder %v1299, 0
      %vm1446 = vcmp.ne.s32.totalorder %v1306, 0
      %vm1447 = vcmp.ne.s32.totalorder %v1313, 0
      %vm1448 = vcmp.ne.s32.totalorder %v1320, 0
      %vm1449 = vcmp.ne.s32.totalorder %v1327, 0
      %vm1450 = vcmp.ne.s32.totalorder %v1334, 0
      %vm1451 = vcmp.ne.s32.totalorder %v1341, 0
      %vm1452 = vcmp.ne.s32.totalorder %v1348, 0
      %vm1453 = vcmp.ne.s32.totalorder %v1355, 0
      %vm1454 = vcmp.ne.s32.totalorder %v1362, 0
      %vm1455 = vcmp.ne.s32.totalorder %v1369, 0
      %vm1456 = vcmp.ne.s32.totalorder %v1376, 0
      %vm1457 = vcmp.ne.s32.totalorder %v1383, 0
      %vm1458 = vcmp.ne.s32.totalorder %v1390, 0
      %vm1459 = vcmp.ne.s32.totalorder %v1397, 0
      %vm1460 = vcmp.ne.s32.totalorder %v1404, 0
      %vm1461 = vcmp.ne.s32.totalorder %v1411, 0
      %vm1462 = vcmp.ne.s32.totalorder %v1418, 0
      %vm1463 = vcmp.ne.s32.totalorder %v1425, 0
      %vm1464 = vcmp.ne.s32.totalorder %v1432, 0
      %vm1465 = vcmp.lt.s32.totalorder %v1215, 0
      %vm1466 = vcmp.lt.s32.totalorder %v1222, 0
      %vm1467 = vcmp.lt.s32.totalorder %v1229, 0
      %vm1468 = vcmp.lt.s32.totalorder %v1236, 0
      %vm1469 = vcmp.lt.s32.totalorder %v1243, 0
      %vm1470 = vcmp.lt.s32.totalorder %v1250, 0
      %vm1471 = vcmp.lt.s32.totalorder %v1257, 0
      %vm1472 = vcmp.lt.s32.totalorder %v1264, 0
      %vm1473 = vcmp.lt.s32.totalorder %v1271, 0
      %vm1474 = vcmp.lt.s32.totalorder %v1278, 0
      %vm1475 = vcmp.lt.s32.totalorder %v1285, 0
      %vm1476 = vcmp.lt.s32.totalorder %v1292, 0
      %vm1477 = vcmp.lt.s32.totalorder %v1299, 0
      %vm1478 = vcmp.lt.s32.totalorder %v1306, 0
      %vm1479 = vcmp.lt.s32.totalorder %v1313, 0
      %vm1480 = vcmp.lt.s32.totalorder %v1320, 0
      %vm1481 = vcmp.lt.s32.totalorder %v1327, 0
      %vm1482 = vcmp.lt.s32.totalorder %v1334, 0
      %vm1483 = vcmp.lt.s32.totalorder %v1341, 0
      %vm1484 = vcmp.lt.s32.totalorder %v1348, 0
      %vm1485 = vcmp.lt.s32.totalorder %v1355, 0
      %vm1486 = vcmp.lt.s32.totalorder %v1362, 0
      %vm1487 = vcmp.lt.s32.totalorder %v1369, 0
      %vm1488 = vcmp.lt.s32.totalorder %v1376, 0
      %vm1489 = vcmp.lt.s32.totalorder %v1383, 0
      %vm1490 = vcmp.lt.s32.totalorder %v1390, 0
      %vm1491 = vcmp.lt.s32.totalorder %v1397, 0
      %vm1492 = vcmp.lt.s32.totalorder %v1404, 0
      %vm1493 = vcmp.lt.s32.totalorder %v1411, 0
      %vm1494 = vcmp.lt.s32.totalorder %v1418, 0
      %vm1495 = vcmp.lt.s32.totalorder %v1425, 0
      %vm1496 = vcmp.lt.s32.totalorder %v1432, 0
      %vm1497 = vmand %vm1465, %vm1433
      %vm1498 = vmand %vm1466, %vm1434
      %vm1499 = vmand %vm1467, %vm1435
      %vm1500 = vmand %vm1468, %vm1436
      %vm1501 = vmand %vm1469, %vm1437
      %vm1502 = vmand %vm1470, %vm1438
      %vm1503 = vmand %vm1471, %vm1439
      %vm1504 = vmand %vm1472, %vm1440
      %vm1505 = vmand %vm1473, %vm1441
      %vm1506 = vmand %vm1474, %vm1442
      %vm1507 = vmand %vm1475, %vm1443
      %vm1508 = vmand %vm1476, %vm1444
      %vm1509 = vmand %vm1477, %vm1445
      %vm1510 = vmand %vm1478, %vm1446
      %vm1511 = vmand %vm1479, %vm1447
      %vm1512 = vmand %vm1480, %vm1448
      %vm1513 = vmand %vm1481, %vm1449
      %vm1514 = vmand %vm1482, %vm1450
      %vm1515 = vmand %vm1483, %vm1451
      %vm1516 = vmand %vm1484, %vm1452
      %vm1517 = vmand %vm1485, %vm1453
      %vm1518 = vmand %vm1486, %vm1454
      %vm1519 = vmand %vm1487, %vm1455
      %vm1520 = vmand %vm1488, %vm1456
      %vm1521 = vmand %vm1489, %vm1457
      %vm1522 = vmand %vm1490, %vm1458
      %vm1523 = vmand %vm1491, %vm1459
      %vm1524 = vmand %vm1492, %vm1460
      %vm1525 = vmand %vm1493, %vm1461
      %vm1526 = vmand %vm1494, %vm1462
      %vm1527 = vmand %vm1495, %vm1463
      %vm1528 = vmand %vm1496, %vm1464
      %v1529 = vadd.s32 %v1215, 16
      %v1530 = vadd.s32 %v1222, 16
      %v1531 = vadd.s32 %v1229, 16
      %v1532 = vadd.s32 %v1236, 16
      %v1533 = vadd.s32 %v1243, 16
      %v1534 = vadd.s32 %v1250, 16
      %v1535 = vadd.s32 %v1257, 16
      %v1536 = vadd.s32 %v1264, 16
      %v1537 = vadd.s32 %v1271, 16
      %v1538 = vadd.s32 %v1278, 16
      %v1539 = vadd.s32 %v1285, 16
      %v1540 = vadd.s32 %v1292, 16
      %v1541 = vadd.s32 %v1299, 16
      %v1542 = vadd.s32 %v1306, 16
      %v1543 = vadd.s32 %v1313, 16
      %v1544 = vadd.s32 %v1320, 16
      %v1545 = vadd.s32 %v1327, 16
      %v1546 = vadd.s32 %v1334, 16
      %v1547 = vadd.s32 %v1341, 16
      %v1548 = vadd.s32 %v1348, 16
      %v1549 = vadd.s32 %v1355, 16
      %v1550 = vadd.s32 %v1362, 16
      %v1551 = vadd.s32 %v1369, 16
      %v1552 = vadd.s32 %v1376, 16
      %v1553 = vadd.s32 %v1383, 16
      %v1554 = vadd.s32 %v1390, 16
      %v1555 = vadd.s32 %v1397, 16
      %v1556 = vadd.s32 %v1404, 16
      %v1557 = vadd.s32 %v1411, 16
      %v1558 = vadd.s32 %v1418, 16
      %v1559 = vadd.s32 %v1425, 16
      %v1560 = vadd.s32 %v1432, 16
      %v1561 = vsel %vm1497, %v1529, %v1215
      %v1562 = vsel %vm1498, %v1530, %v1222
      %v1563 = vsel %vm1499, %v1531, %v1229
      %v1564 = vsel %vm1500, %v1532, %v1236
      %v1565 = vsel %vm1501, %v1533, %v1243
      %v1566 = vsel %vm1502, %v1534, %v1250
      %v1567 = vsel %vm1503, %v1535, %v1257
      %v1568 = vsel %vm1504, %v1536, %v1264
      %v1569 = vsel %vm1505, %v1537, %v1271
      %v1570 = vsel %vm1506, %v1538, %v1278
      %v1571 = vsel %vm1507, %v1539, %v1285
      %v1572 = vsel %vm1508, %v1540, %v1292
      %v1573 = vsel %vm1509, %v1541, %v1299
      %v1574 = vsel %vm1510, %v1542, %v1306
      %v1575 = vsel %vm1511, %v1543, %v1313
      %v1576 = vsel %vm1512, %v1544, %v1320
      %v1577 = vsel %vm1513, %v1545, %v1327
      %v1578 = vsel %vm1514, %v1546, %v1334
      %v1579 = vsel %vm1515, %v1547, %v1341
      %v1580 = vsel %vm1516, %v1548, %v1348
      %v1581 = vsel %vm1517, %v1549, %v1355
      %v1582 = vsel %vm1518, %v1550, %v1362
      %v1583 = vsel %vm1519, %v1551, %v1369
      %v1584 = vsel %vm1520, %v1552, %v1376
      %v1585 = vsel %vm1521, %v1553, %v1383
      %v1586 = vsel %vm1522, %v1554, %v1390
      %v1587 = vsel %vm1523, %v1555, %v1397
      %v1588 = vsel %vm1524, %v1556, %v1404
      %v1589 = vsel %vm1525, %v1557, %v1411
      %v1590 = vsel %vm1526, %v1558, %v1418
      %v1591 = vsel %vm1527, %v1559, %v1425
      %v1592 = vsel %vm1528, %v1560, %v1432
      %1593 = vst.msk [vmem:[#allocation2 + $0x10] sm:$0xff] %vm597, %v1144
      %1594 = vst.msk [vmem:[#allocation2 + $0x18] sm:$0xff] %vm597, %v1145
      %1595 = vst.msk [vmem:[#allocation2 + $0x20] sm:$0xff] %vm597, %v1146
      %1596 = vst.msk [vmem:[#allocation2 + $0x28] sm:$0xff] %vm597, %v1147
      %1597 = vst.msk [vmem:[#allocation2 + $0x30] sm:$0xff] %vm597, %v1148
      %1598 = vst.msk [vmem:[#allocation2 + $0x38] sm:$0xff] %vm597, %v1149
      %1599 = vst.msk [vmem:[#allocation2 + $0x40] sm:$0xff] %vm597, %v1150
      %1600 = vst.msk [vmem:[#allocation2 + $0x48] sm:$0xff] %vm597, %v1151
      %1601 = vst.msk [vmem:[#allocation2 + $0x50] sm:$0xff] %vm597, %v1152
      %1602 = vst.msk [vmem:[#allocation2 + $0x58] sm:$0xff] %vm597, %v1153
      %1603 = vst.msk [vmem:[#allocation2 + $0x60] sm:$0xff] %vm597, %v1154
      %1604 = vst.msk [vmem:[#allocation2 + $0x68] sm:$0xff] %vm597, %v1155
      %1605 = vst.msk [vmem:[#allocation2 + $0x70] sm:$0xff] %vm597, %v1156
      %1606 = vst.msk [vmem:[#allocation2 + $0x78] sm:$0xff] %vm597, %v1157
      %1607 = vst.msk [vmem:[#allocation2 + $0x80] sm:$0xff] %vm597, %v1158
      %1608 = vst.msk [vmem:[#allocation2 + $0x88] sm:$0xff] %vm597, %v1159
      %1609 = vst.msk [vmem:[#allocation2 + $0x90] sm:$0xff] %vm597, %v1160
      %1610 = vst.msk [vmem:[#allocation2 + $0x98] sm:$0xff] %vm597, %v1161
      %1611 = vst.msk [vmem:[#allocation2 + $0xa0] sm:$0xff] %vm597, %v1162
      %1612 = vst.msk [vmem:[#allocation2 + $0xa8] sm:$0xff] %vm597, %v1163
      %1613 = vst.msk [vmem:[#allocation2 + $0xb0] sm:$0xff] %vm597, %v1164
      %1614 = vst.msk [vmem:[#allocation2 + $0xb8] sm:$0xff] %vm597, %v1165
      %1615 = vst.msk [vmem:[#allocation2 + $0xc0] sm:$0xff] %vm597, %v1166
      %1616 = vst.msk [vmem:[#allocation2 + $0xc8] sm:$0xff] %vm597, %v1167
      %1617 = vst.msk [vmem:[#allocation2 + $0xd0] sm:$0xff] %vm597, %v1168
      %1618 = vst.msk [vmem:[#allocation2 + $0xd8] sm:$0xff] %vm597, %v1169
      %1619 = vst.msk [vmem:[#allocation2 + $0xe0] sm:$0xff] %vm597, %v1170
      %1620 = vst.msk [vmem:[#allocation2 + $0xe8] sm:$0xff] %vm597, %v1171
      %1621 = vst.msk [vmem:[#allocation2 + $0xf0] sm:$0xff] %vm597, %v1172
      %1622 = vst.msk [vmem:[#allocation2 + $0xf8] sm:$0xff] %vm597, %v1173
      %1623 = vst.msk [vmem:[#allocation2 + $0x100] sm:$0xff] %vm597, %v1174
      %1624 = vst.msk [vmem:[#allocation2 + $0x108] sm:$0xff] %vm597, %v1175
      %v1625 = vpack.c.bf16 %v1145, %v1144
      %v1626 = vpack.c.bf16 %v1147, %v1146
      %v1627 = vpack.c.bf16 %v1149, %v1148
      %v1628 = vpack.c.bf16 %v1151, %v1150
      %v1629 = vpack.c.bf16 %v1153, %v1152
      %v1630 = vpack.c.bf16 %v1155, %v1154
      %v1631 = vpack.c.bf16 %v1157, %v1156
      %v1632 = vpack.c.bf16 %v1159, %v1158
      %v1633 = vpack.c.bf16 %v1161, %v1160
      %v1634 = vpack.c.bf16 %v1163, %v1162
      %v1635 = vpack.c.bf16 %v1165, %v1164
      %v1636 = vpack.c.bf16 %v1167, %v1166
      %v1637 = vpack.c.bf16 %v1169, %v1168
      %v1638 = vpack.c.bf16 %v1171, %v1170
      %v1639 = vpack.c.bf16 %v1173, %v1172
      %v1640 = vpack.c.bf16 %v1175, %v1174
      %v1641 = vld [vmem:[#allocation2 + $0xf] sm:$0xff]
      %v1642 = vld [vmem:[#allocation2 + $0x17] sm:$0xff]
      %v1643 = vld [vmem:[#allocation2 + $0x1f] sm:$0xff]
      %v1644 = vld [vmem:[#allocation2 + $0x27] sm:$0xff]
      %v1645 = vld [vmem:[#allocation2 + $0x2f] sm:$0xff]
      %v1646 = vld [vmem:[#allocation2 + $0x37] sm:$0xff]
      %v1647 = vld [vmem:[#allocation2 + $0x3f] sm:$0xff]
      %v1648 = vld [vmem:[#allocation2 + $0x47] sm:$0xff]
      %v1649 = vld [vmem:[#allocation2 + $0x4f] sm:$0xff]
      %v1650 = vld [vmem:[#allocation2 + $0x57] sm:$0xff]
      %v1651 = vld [vmem:[#allocation2 + $0x5f] sm:$0xff]
      %v1652 = vld [vmem:[#allocation2 + $0x67] sm:$0xff]
      %v1653 = vld [vmem:[#allocation2 + $0x6f] sm:$0xff]
      %v1654 = vld [vmem:[#allocation2 + $0x77] sm:$0xff]
      %v1655 = vld [vmem:[#allocation2 + $0x7f] sm:$0xff]
      %v1656 = vld [vmem:[#allocation2 + $0x87] sm:$0xff]
      %v1657 = vld [vmem:[#allocation2 + $0x8f] sm:$0xff]
      %v1658 = vld [vmem:[#allocation2 + $0x97] sm:$0xff]
      %v1659 = vld [vmem:[#allocation2 + $0x9f] sm:$0xff]
      %v1660 = vld [vmem:[#allocation2 + $0xa7] sm:$0xff]
      %v1661 = vld [vmem:[#allocation2 + $0xaf] sm:$0xff]
      %v1662 = vld [vmem:[#allocation2 + $0xb7] sm:$0xff]
      %v1663 = vld [vmem:[#allocation2 + $0xbf] sm:$0xff]
      %v1664 = vld [vmem:[#allocation2 + $0xc7] sm:$0xff]
      %v1665 = vld [vmem:[#allocation2 + $0xcf] sm:$0xff]
      %v1666 = vld [vmem:[#allocation2 + $0xd7] sm:$0xff]
      %v1667 = vld [vmem:[#allocation2 + $0xdf] sm:$0xff]
      %v1668 = vld [vmem:[#allocation2 + $0xe7] sm:$0xff]
      %v1669 = vld [vmem:[#allocation2 + $0xef] sm:$0xff]
      %v1670 = vld [vmem:[#allocation2 + $0xf7] sm:$0xff]
      %v1671 = vld [vmem:[#allocation2 + $0xff] sm:$0xff]
      %v1672 = vld [vmem:[#allocation2 + $0x107] sm:$0xff]
      %v1673 = vpack.c.bf16 %v1642, %v1641
      %v1674 = vpack.c.bf16 %v1644, %v1643
      %v1675 = vpack.c.bf16 %v1646, %v1645
      %v1676 = vpack.c.bf16 %v1648, %v1647
      %v1677 = vpack.c.bf16 %v1650, %v1649
      %v1678 = vpack.c.bf16 %v1652, %v1651
      %v1679 = vpack.c.bf16 %v1654, %v1653
      %v1680 = vpack.c.bf16 %v1656, %v1655
      %v1681 = vpack.c.bf16 %v1658, %v1657
      %v1682 = vpack.c.bf16 %v1660, %v1659
      %v1683 = vpack.c.bf16 %v1662, %v1661
      %v1684 = vpack.c.bf16 %v1664, %v1663
      %v1685 = vpack.c.bf16 %v1666, %v1665
      %v1686 = vpack.c.bf16 %v1668, %v1667
      %v1687 = vpack.c.bf16 %v1670, %v1669
      %v1688 = vpack.c.bf16 %v1672, %v1671
      %v1689 = vld [vmem:[#allocation2 + $0x11] sm:$0xff]
      %v1690 = vld [vmem:[#allocation2 + $0x19] sm:$0xff]
      %v1691 = vld [vmem:[#allocation2 + $0x21] sm:$0xff]
      %v1692 = vld [vmem:[#allocation2 + $0x29] sm:$0xff]
      %v1693 = vld [vmem:[#allocation2 + $0x31] sm:$0xff]
      %v1694 = vld [vmem:[#allocation2 + $0x39] sm:$0xff]
      %v1695 = vld [vmem:[#allocation2 + $0x41] sm:$0xff]
      %v1696 = vld [vmem:[#allocation2 + $0x49] sm:$0xff]
      %v1697 = vld [vmem:[#allocation2 + $0x51] sm:$0xff]
      %v1698 = vld [vmem:[#allocation2 + $0x59] sm:$0xff]
      %v1699 = vld [vmem:[#allocation2 + $0x61] sm:$0xff]
      %v1700 = vld [vmem:[#allocation2 + $0x69] sm:$0xff]
      %v1701 = vld [vmem:[#allocation2 + $0x71] sm:$0xff]
      %v1702 = vld [vmem:[#allocation2 + $0x79] sm:$0xff]
      %v1703 = vld [vmem:[#allocation2 + $0x81] sm:$0xff]
      %v1704 = vld [vmem:[#allocation2 + $0x89] sm:$0xff]
      %v1705 = vld [vmem:[#allocation2 + $0x91] sm:$0xff]
      %v1706 = vld [vmem:[#allocation2 + $0x99] sm:$0xff]
      %v1707 = vld [vmem:[#allocation2 + $0xa1] sm:$0xff]
      %v1708 = vld [vmem:[#allocation2 + $0xa9] sm:$0xff]
      %v1709 = vld [vmem:[#allocation2 + $0xb1] sm:$0xff]
      %v1710 = vld [vmem:[#allocation2 + $0xb9] sm:$0xff]
      %v1711 = vld [vmem:[#allocation2 + $0xc1] sm:$0xff]
      %v1712 = vld [vmem:[#allocation2 + $0xc9] sm:$0xff]
      %v1713 = vld [vmem:[#allocation2 + $0xd1] sm:$0xff]
      %v1714 = vld [vmem:[#allocation2 + $0xd9] sm:$0xff]
      %v1715 = vld [vmem:[#allocation2 + $0xe1] sm:$0xff]
      %v1716 = vld [vmem:[#allocation2 + $0xe9] sm:$0xff]
      %v1717 = vld [vmem:[#allocation2 + $0xf1] sm:$0xff]
      %v1718 = vld [vmem:[#allocation2 + $0xf9] sm:$0xff]
      %v1719 = vld [vmem:[#allocation2 + $0x101] sm:$0xff]
      %v1720 = vld [vmem:[#allocation2 + $0x109] sm:$0xff]
      %v1721 = vpack.c.bf16 %v1690, %v1689
      %v1722 = vpack.c.bf16 %v1692, %v1691
      %v1723 = vpack.c.bf16 %v1694, %v1693
      %v1724 = vpack.c.bf16 %v1696, %v1695
      %v1725 = vpack.c.bf16 %v1698, %v1697
      %v1726 = vpack.c.bf16 %v1700, %v1699
      %v1727 = vpack.c.bf16 %v1702, %v1701
      %v1728 = vpack.c.bf16 %v1704, %v1703
      %v1729 = vpack.c.bf16 %v1706, %v1705
      %v1730 = vpack.c.bf16 %v1708, %v1707
      %v1731 = vpack.c.bf16 %v1710, %v1709
      %v1732 = vpack.c.bf16 %v1712, %v1711
      %v1733 = vpack.c.bf16 %v1714, %v1713
      %v1734 = vpack.c.bf16 %v1716, %v1715
      %v1735 = vpack.c.bf16 %v1718, %v1717
      %v1736 = vpack.c.bf16 %v1720, %v1719
      %vm1737 = vcmp.ge.s32.totalorder %v1561, 1
      %vm1738 = vcmp.ge.s32.totalorder %v1562, 1
      %vm1739 = vcmp.ge.s32.totalorder %v1563, 1
      %vm1740 = vcmp.ge.s32.totalorder %v1564, 1
      %vm1741 = vcmp.ge.s32.totalorder %v1565, 1
      %vm1742 = vcmp.ge.s32.totalorder %v1566, 1
      %vm1743 = vcmp.ge.s32.totalorder %v1567, 1
      %vm1744 = vcmp.ge.s32.totalorder %v1568, 1
      %vm1745 = vcmp.ge.s32.totalorder %v1569, 1
      %vm1746 = vcmp.ge.s32.totalorder %v1570, 1
      %vm1747 = vcmp.ge.s32.totalorder %v1571, 1
      %vm1748 = vcmp.ge.s32.totalorder %v1572, 1
      %vm1749 = vcmp.ge.s32.totalorder %v1573, 1
      %vm1750 = vcmp.ge.s32.totalorder %v1574, 1
      %vm1751 = vcmp.ge.s32.totalorder %v1575, 1
      %vm1752 = vcmp.ge.s32.totalorder %v1576, 1
      %vm1753 = vcmp.ge.s32.totalorder %v1577, 1
      %vm1754 = vcmp.ge.s32.totalorder %v1578, 1
      %vm1755 = vcmp.ge.s32.totalorder %v1579, 1
      %vm1756 = vcmp.ge.s32.totalorder %v1580, 1
      %vm1757 = vcmp.ge.s32.totalorder %v1581, 1
      %vm1758 = vcmp.ge.s32.totalorder %v1582, 1
      %vm1759 = vcmp.ge.s32.totalorder %v1583, 1
      %vm1760 = vcmp.ge.s32.totalorder %v1584, 1
      %vm1761 = vcmp.ge.s32.totalorder %v1585, 1
      %vm1762 = vcmp.ge.s32.totalorder %v1586, 1
      %vm1763 = vcmp.ge.s32.totalorder %v1587, 1
      %vm1764 = vcmp.ge.s32.totalorder %v1588, 1
      %vm1765 = vcmp.ge.s32.totalorder %v1589, 1
      %vm1766 = vcmp.ge.s32.totalorder %v1590, 1
      %vm1767 = vcmp.ge.s32.totalorder %v1591, 1
      %vm1768 = vcmp.ge.s32.totalorder %v1592, 1
      %v1769 = vsel %vm1737, 1, 0
      %v1770 = vsel %vm1738, 1, 0
      %v1771 = vsel %vm1739, 1, 0
      %v1772 = vsel %vm1740, 1, 0
      %v1773 = vsel %vm1741, 1, 0
      %v1774 = vsel %vm1742, 1, 0
      %v1775 = vsel %vm1743, 1, 0
      %v1776 = vsel %vm1744, 1, 0
      %v1777 = vsel %vm1745, 1, 0
      %v1778 = vsel %vm1746, 1, 0
      %v1779 = vsel %vm1747, 1, 0
      %v1780 = vsel %vm1748, 1, 0
      %v1781 = vsel %vm1749, 1, 0
      %v1782 = vsel %vm1750, 1, 0
      %v1783 = vsel %vm1751, 1, 0
      %v1784 = vsel %vm1752, 1, 0
      %v1785 = vsel %vm1753, 1, 0
      %v1786 = vsel %vm1754, 1, 0
      %v1787 = vsel %vm1755, 1, 0
      %v1788 = vsel %vm1756, 1, 0
      %v1789 = vsel %vm1757, 1, 0
      %v1790 = vsel %vm1758, 1, 0
      %v1791 = vsel %vm1759, 1, 0
      %v1792 = vsel %vm1760, 1, 0
      %v1793 = vsel %vm1761, 1, 0
      %v1794 = vsel %vm1762, 1, 0
      %v1795 = vsel %vm1763, 1, 0
      %v1796 = vsel %vm1764, 1, 0
      %v1797 = vsel %vm1765, 1, 0
      %v1798 = vsel %vm1766, 1, 0
      %v1799 = vsel %vm1767, 1, 0
      %v1800 = vsel %vm1768, 1, 0
      %vm1801 = vcmp.eq.s32.totalorder %v1769, 1
      %vm1802 = vcmp.eq.s32.totalorder %v1770, 1
      %vm1803 = vcmp.eq.s32.totalorder %v1771, 1
      %vm1804 = vcmp.eq.s32.totalorder %v1772, 1
      %vm1805 = vcmp.eq.s32.totalorder %v1773, 1
      %vm1806 = vcmp.eq.s32.totalorder %v1774, 1
      %vm1807 = vcmp.eq.s32.totalorder %v1775, 1
      %vm1808 = vcmp.eq.s32.totalorder %v1776, 1
      %vm1809 = vcmp.eq.s32.totalorder %v1777, 1
      %vm1810 = vcmp.eq.s32.totalorder %v1778, 1
      %vm1811 = vcmp.eq.s32.totalorder %v1779, 1
      %vm1812 = vcmp.eq.s32.totalorder %v1780, 1
      %vm1813 = vcmp.eq.s32.totalorder %v1781, 1
      %vm1814 = vcmp.eq.s32.totalorder %v1782, 1
      %vm1815 = vcmp.eq.s32.totalorder %v1783, 1
      %vm1816 = vcmp.eq.s32.totalorder %v1784, 1
      %vm1817 = vcmp.eq.s32.totalorder %v1785, 1
      %vm1818 = vcmp.eq.s32.totalorder %v1786, 1
      %vm1819 = vcmp.eq.s32.totalorder %v1787, 1
      %vm1820 = vcmp.eq.s32.totalorder %v1788, 1
      %vm1821 = vcmp.eq.s32.totalorder %v1789, 1
      %vm1822 = vcmp.eq.s32.totalorder %v1790, 1
      %vm1823 = vcmp.eq.s32.totalorder %v1791, 1
      %vm1824 = vcmp.eq.s32.totalorder %v1792, 1
      %vm1825 = vcmp.eq.s32.totalorder %v1793, 1
      %vm1826 = vcmp.eq.s32.totalorder %v1794, 1
      %vm1827 = vcmp.eq.s32.totalorder %v1795, 1
      %vm1828 = vcmp.eq.s32.totalorder %v1796, 1
      %vm1829 = vcmp.eq.s32.totalorder %v1797, 1
      %vm1830 = vcmp.eq.s32.totalorder %v1798, 1
      %vm1831 = vcmp.eq.s32.totalorder %v1799, 1
      %vm1832 = vcmp.eq.s32.totalorder %v1800, 1
      %vm1833 = vmpackc.low %vm1801, %vm1801
      %vm1834 = vmpackc.low %vm1802, %vm1802
      %vm1835 = vmpackc.low %vm1803, %vm1803
      %vm1836 = vmpackc.low %vm1804, %vm1804
      %vm1837 = vmpackc.low %vm1805, %vm1805
      %vm1838 = vmpackc.low %vm1806, %vm1806
      %vm1839 = vmpackc.low %vm1807, %vm1807
      %vm1840 = vmpackc.low %vm1808, %vm1808
      %vm1841 = vmpackc.low %vm1809, %vm1809
      %vm1842 = vmpackc.low %vm1810, %vm1810
      %vm1843 = vmpackc.low %vm1811, %vm1811
      %vm1844 = vmpackc.low %vm1812, %vm1812
      %vm1845 = vmpackc.low %vm1813, %vm1813
      %vm1846 = vmpackc.low %vm1814, %vm1814
      %vm1847 = vmpackc.low %vm1815, %vm1815
      %vm1848 = vmpackc.low %vm1816, %vm1816
      %vm1849 = vmpackc.low %vm1817, %vm1817
      %vm1850 = vmpackc.low %vm1818, %vm1818
      %vm1851 = vmpackc.low %vm1819, %vm1819
      %vm1852 = vmpackc.low %vm1820, %vm1820
      %vm1853 = vmpackc.low %vm1821, %vm1821
      %vm1854 = vmpackc.low %vm1822, %vm1822
      %vm1855 = vmpackc.low %vm1823, %vm1823
      %vm1856 = vmpackc.low %vm1824, %vm1824
      %vm1857 = vmpackc.low %vm1825, %vm1825
      %vm1858 = vmpackc.low %vm1826, %vm1826
      %vm1859 = vmpackc.low %vm1827, %vm1827
      %vm1860 = vmpackc.low %vm1828, %vm1828
      %vm1861 = vmpackc.low %vm1829, %vm1829
      %vm1862 = vmpackc.low %vm1830, %vm1830
      %vm1863 = vmpackc.low %vm1831, %vm1831
      %vm1864 = vmpackc.low %vm1832, %vm1832
      %v1865 = vsel %vm1833, 65537, 0
      %v1866 = vsel %vm1834, 65537, 0
      %v1867 = vsel %vm1835, 65537, 0
      %v1868 = vsel %vm1836, 65537, 0
      %v1869 = vsel %vm1837, 65537, 0
      %v1870 = vsel %vm1838, 65537, 0
      %v1871 = vsel %vm1839, 65537, 0
      %v1872 = vsel %vm1840, 65537, 0
      %v1873 = vsel %vm1841, 65537, 0
      %v1874 = vsel %vm1842, 65537, 0
      %v1875 = vsel %vm1843, 65537, 0
      %v1876 = vsel %vm1844, 65537, 0
      %v1877 = vsel %vm1845, 65537, 0
      %v1878 = vsel %vm1846, 65537, 0
      %v1879 = vsel %vm1847, 65537, 0
      %v1880 = vsel %vm1848, 65537, 0
      %v1881 = vsel %vm1849, 65537, 0
      %v1882 = vsel %vm1850, 65537, 0
      %v1883 = vsel %vm1851, 65537, 0
      %v1884 = vsel %vm1852, 65537, 0
      %v1885 = vsel %vm1853, 65537, 0
      %v1886 = vsel %vm1854, 65537, 0
      %v1887 = vsel %vm1855, 65537, 0
      %v1888 = vsel %vm1856, 65537, 0
      %v1889 = vsel %vm1857, 65537, 0
      %v1890 = vsel %vm1858, 65537, 0
      %v1891 = vsel %vm1859, 65537, 0
      %v1892 = vsel %vm1860, 65537, 0
      %v1893 = vsel %vm1861, 65537, 0
      %v1894 = vsel %vm1862, 65537, 0
      %v1895 = vsel %vm1863, 65537, 0
      %v1896 = vsel %vm1864, 65537, 0
      %v1897 = vunpack.c.l.b16 %v1865
      %v1898 = vunpack.c.l.b16 %v1866
      %v1899 = vunpack.c.l.b16 %v1867
      %v1900 = vunpack.c.l.b16 %v1868
      %v1901 = vunpack.c.l.b16 %v1869
      %v1902 = vunpack.c.l.b16 %v1870
      %v1903 = vunpack.c.l.b16 %v1871
      %v1904 = vunpack.c.l.b16 %v1872
      %v1905 = vunpack.c.l.b16 %v1873
      %v1906 = vunpack.c.l.b16 %v1874
      %v1907 = vunpack.c.l.b16 %v1875
      %v1908 = vunpack.c.l.b16 %v1876
      %v1909 = vunpack.c.l.b16 %v1877
      %v1910 = vunpack.c.l.b16 %v1878
      %v1911 = vunpack.c.l.b16 %v1879
      %v1912 = vunpack.c.l.b16 %v1880
      %v1913 = vunpack.c.l.b16 %v1881
      %v1914 = vunpack.c.l.b16 %v1882
      %v1915 = vunpack.c.l.b16 %v1883
      %v1916 = vunpack.c.l.b16 %v1884
      %v1917 = vunpack.c.l.b16 %v1885
      %v1918 = vunpack.c.l.b16 %v1886
      %v1919 = vunpack.c.l.b16 %v1887
      %v1920 = vunpack.c.l.b16 %v1888
      %v1921 = vunpack.c.l.b16 %v1889
      %v1922 = vunpack.c.l.b16 %v1890
      %v1923 = vunpack.c.l.b16 %v1891
      %v1924 = vunpack.c.l.b16 %v1892
      %v1925 = vunpack.c.l.b16 %v1893
      %v1926 = vunpack.c.l.b16 %v1894
      %v1927 = vunpack.c.l.b16 %v1895
      %v1928 = vunpack.c.l.b16 %v1896
      %v1929 = vpack.c.b16 %v1898, %v1897
      %v1930 = vpack.c.b16 %v1900, %v1899
      %v1931 = vpack.c.b16 %v1902, %v1901
      %v1932 = vpack.c.b16 %v1904, %v1903
      %v1933 = vpack.c.b16 %v1906, %v1905
      %v1934 = vpack.c.b16 %v1908, %v1907
      %v1935 = vpack.c.b16 %v1910, %v1909
      %v1936 = vpack.c.b16 %v1912, %v1911
      %v1937 = vpack.c.b16 %v1914, %v1913
      %v1938 = vpack.c.b16 %v1916, %v1915
      %v1939 = vpack.c.b16 %v1918, %v1917
      %v1940 = vpack.c.b16 %v1920, %v1919
      %v1941 = vpack.c.b16 %v1922, %v1921
      %v1942 = vpack.c.b16 %v1924, %v1923
      %v1943 = vpack.c.b16 %v1926, %v1925
      %v1944 = vpack.c.b16 %v1928, %v1927
      %vm1945 = vcmp.ne.s16.totalorder %v1929, 0
      %vm1946 = vcmp.ne.s16.totalorder %v1930, 0
      %vm1947 = vcmp.ne.s16.totalorder %v1931, 0
      %vm1948 = vcmp.ne.s16.totalorder %v1932, 0
      %vm1949 = vcmp.ne.s16.totalorder %v1933, 0
      %vm1950 = vcmp.ne.s16.totalorder %v1934, 0
      %vm1951 = vcmp.ne.s16.totalorder %v1935, 0
      %vm1952 = vcmp.ne.s16.totalorder %v1936, 0
      %vm1953 = vcmp.ne.s16.totalorder %v1937, 0
      %vm1954 = vcmp.ne.s16.totalorder %v1938, 0
      %vm1955 = vcmp.ne.s16.totalorder %v1939, 0
      %vm1956 = vcmp.ne.s16.totalorder %v1940, 0
      %vm1957 = vcmp.ne.s16.totalorder %v1941, 0
      %vm1958 = vcmp.ne.s16.totalorder %v1942, 0
      %vm1959 = vcmp.ne.s16.totalorder %v1943, 0
      %vm1960 = vcmp.ne.s16.totalorder %v1944, 0
      %v1961 = vsel %vm1945, %v1673, 0
      %v1962 = vsel %vm1946, %v1674, 0
      %v1963 = vsel %vm1947, %v1675, 0
      %v1964 = vsel %vm1948, %v1676, 0
      %v1965 = vsel %vm1949, %v1677, 0
      %v1966 = vsel %vm1950, %v1678, 0
      %v1967 = vsel %vm1951, %v1679, 0
      %v1968 = vsel %vm1952, %v1680, 0
      %v1969 = vsel %vm1953, %v1681, 0
      %v1970 = vsel %vm1954, %v1682, 0
      %v1971 = vsel %vm1955, %v1683, 0
      %v1972 = vsel %vm1956, %v1684, 0
      %v1973 = vsel %vm1957, %v1685, 0
      %v1974 = vsel %vm1958, %v1686, 0
      %v1975 = vsel %vm1959, %v1687, 0
      %v1976 = vsel %vm1960, %v1688, 0
      %vm1977 = vcmp.lt.s32.totalorder %v1561, 15
      %vm1978 = vcmp.lt.s32.totalorder %v1562, 15
      %vm1979 = vcmp.lt.s32.totalorder %v1563, 15
      %vm1980 = vcmp.lt.s32.totalorder %v1564, 15
      %vm1981 = vcmp.lt.s32.totalorder %v1565, 15
      %vm1982 = vcmp.lt.s32.totalorder %v1566, 15
      %vm1983 = vcmp.lt.s32.totalorder %v1567, 15
      %vm1984 = vcmp.lt.s32.totalorder %v1568, 15
      %vm1985 = vcmp.lt.s32.totalorder %v1569, 15
      %vm1986 = vcmp.lt.s32.totalorder %v1570, 15
      %vm1987 = vcmp.lt.s32.totalorder %v1571, 15
      %vm1988 = vcmp.lt.s32.totalorder %v1572, 15
      %vm1989 = vcmp.lt.s32.totalorder %v1573, 15
      %vm1990 = vcmp.lt.s32.totalorder %v1574, 15
      %vm1991 = vcmp.lt.s32.totalorder %v1575, 15
      %vm1992 = vcmp.lt.s32.totalorder %v1576, 15
      %vm1993 = vcmp.lt.s32.totalorder %v1577, 15
      %vm1994 = vcmp.lt.s32.totalorder %v1578, 15
      %vm1995 = vcmp.lt.s32.totalorder %v1579, 15
      %vm1996 = vcmp.lt.s32.totalorder %v1580, 15
      %vm1997 = vcmp.lt.s32.totalorder %v1581, 15
      %vm1998 = vcmp.lt.s32.totalorder %v1582, 15
      %vm1999 = vcmp.lt.s32.totalorder %v1583, 15
      %vm2000 = vcmp.lt.s32.totalorder %v1584, 15
      %vm2001 = vcmp.lt.s32.totalorder %v1585, 15
      %vm2002 = vcmp.lt.s32.totalorder %v1586, 15
      %vm2003 = vcmp.lt.s32.totalorder %v1587, 15
      %vm2004 = vcmp.lt.s32.totalorder %v1588, 15
      %vm2005 = vcmp.lt.s32.totalorder %v1589, 15
      %vm2006 = vcmp.lt.s32.totalorder %v1590, 15
      %vm2007 = vcmp.lt.s32.totalorder %v1591, 15
      %vm2008 = vcmp.lt.s32.totalorder %v1592, 15
      %v2009 = vsel %vm1977, 1, 0
      %v2010 = vsel %vm1978, 1, 0
      %v2011 = vsel %vm1979, 1, 0
      %v2012 = vsel %vm1980, 1, 0
      %v2013 = vsel %vm1981, 1, 0
      %v2014 = vsel %vm1982, 1, 0
      %v2015 = vsel %vm1983, 1, 0
      %v2016 = vsel %vm1984, 1, 0
      %v2017 = vsel %vm1985, 1, 0
      %v2018 = vsel %vm1986, 1, 0
      %v2019 = vsel %vm1987, 1, 0
      %v2020 = vsel %vm1988, 1, 0
      %v2021 = vsel %vm1989, 1, 0
      %v2022 = vsel %vm1990, 1, 0
      %v2023 = vsel %vm1991, 1, 0
      %v2024 = vsel %vm1992, 1, 0
      %v2025 = vsel %vm1993, 1, 0
      %v2026 = vsel %vm1994, 1, 0
      %v2027 = vsel %vm1995, 1, 0
      %v2028 = vsel %vm1996, 1, 0
      %v2029 = vsel %vm1997, 1, 0
      %v2030 = vsel %vm1998, 1, 0
      %v2031 = vsel %vm1999, 1, 0
      %v2032 = vsel %vm2000, 1, 0
      %v2033 = vsel %vm2001, 1, 0
      %v2034 = vsel %vm2002, 1, 0
      %v2035 = vsel %vm2003, 1, 0
      %v2036 = vsel %vm2004, 1, 0
      %v2037 = vsel %vm2005, 1, 0
      %v2038 = vsel %vm2006, 1, 0
      %v2039 = vsel %vm2007, 1, 0
      %v2040 = vsel %vm2008, 1, 0
      %vm2041 = vcmp.eq.s32.totalorder %v2009, 1
      %vm2042 = vcmp.eq.s32.totalorder %v2010, 1
      %vm2043 = vcmp.eq.s32.totalorder %v2011, 1
      %vm2044 = vcmp.eq.s32.totalorder %v2012, 1
      %vm2045 = vcmp.eq.s32.totalorder %v2013, 1
      %vm2046 = vcmp.eq.s32.totalorder %v2014, 1
      %vm2047 = vcmp.eq.s32.totalorder %v2015, 1
      %vm2048 = vcmp.eq.s32.totalorder %v2016, 1
      %vm2049 = vcmp.eq.s32.totalorder %v2017, 1
      %vm2050 = vcmp.eq.s32.totalorder %v2018, 1
      %vm2051 = vcmp.eq.s32.totalorder %v2019, 1
      %vm2052 = vcmp.eq.s32.totalorder %v2020, 1
      %vm2053 = vcmp.eq.s32.totalorder %v2021, 1
      %vm2054 = vcmp.eq.s32.totalorder %v2022, 1
      %vm2055 = vcmp.eq.s32.totalorder %v2023, 1
      %vm2056 = vcmp.eq.s32.totalorder %v2024, 1
      %vm2057 = vcmp.eq.s32.totalorder %v2025, 1
      %vm2058 = vcmp.eq.s32.totalorder %v2026, 1
      %vm2059 = vcmp.eq.s32.totalorder %v2027, 1
      %vm2060 = vcmp.eq.s32.totalorder %v2028, 1
      %vm2061 = vcmp.eq.s32.totalorder %v2029, 1
      %vm2062 = vcmp.eq.s32.totalorder %v2030, 1
      %vm2063 = vcmp.eq.s32.totalorder %v2031, 1
      %vm2064 = vcmp.eq.s32.totalorder %v2032, 1
      %vm2065 = vcmp.eq.s32.totalorder %v2033, 1
      %vm2066 = vcmp.eq.s32.totalorder %v2034, 1
      %vm2067 = vcmp.eq.s32.totalorder %v2035, 1
      %vm2068 = vcmp.eq.s32.totalorder %v2036, 1
      %vm2069 = vcmp.eq.s32.totalorder %v2037, 1
      %vm2070 = vcmp.eq.s32.totalorder %v2038, 1
      %vm2071 = vcmp.eq.s32.totalorder %v2039, 1
      %vm2072 = vcmp.eq.s32.totalorder %v2040, 1
      %vm2073 = vmpackc.low %vm2041, %vm2041
      %vm2074 = vmpackc.low %vm2042, %vm2042
      %vm2075 = vmpackc.low %vm2043, %vm2043
      %vm2076 = vmpackc.low %vm2044, %vm2044
      %vm2077 = vmpackc.low %vm2045, %vm2045
      %vm2078 = vmpackc.low %vm2046, %vm2046
      %vm2079 = vmpackc.low %vm2047, %vm2047
      %vm2080 = vmpackc.low %vm2048, %vm2048
      %vm2081 = vmpackc.low %vm2049, %vm2049
      %vm2082 = vmpackc.low %vm2050, %vm2050
      %vm2083 = vmpackc.low %vm2051, %vm2051
      %vm2084 = vmpackc.low %vm2052, %vm2052
      %vm2085 = vmpackc.low %vm2053, %vm2053
      %vm2086 = vmpackc.low %vm2054, %vm2054
      %vm2087 = vmpackc.low %vm2055, %vm2055
      %vm2088 = vmpackc.low %vm2056, %vm2056
      %vm2089 = vmpackc.low %vm2057, %vm2057
      %vm2090 = vmpackc.low %vm2058, %vm2058
      %vm2091 = vmpackc.low %vm2059, %vm2059
      %vm2092 = vmpackc.low %vm2060, %vm2060
      %vm2093 = vmpackc.low %vm2061, %vm2061
      %vm2094 = vmpackc.low %vm2062, %vm2062
      %vm2095 = vmpackc.low %vm2063, %vm2063
      %vm2096 = vmpackc.low %vm2064, %vm2064
      %vm2097 = vmpackc.low %vm2065, %vm2065
      %vm2098 = vmpackc.low %vm2066, %vm2066
      %vm2099 = vmpackc.low %vm2067, %vm2067
      %vm2100 = vmpackc.low %vm2068, %vm2068
      %vm2101 = vmpackc.low %vm2069, %vm2069
      %vm2102 = vmpackc.low %vm2070, %vm2070
      %vm2103 = vmpackc.low %vm2071, %vm2071
      %vm2104 = vmpackc.low %vm2072, %vm2072
      %v2105 = vsel %vm2073, 65537, 0
      %v2106 = vsel %vm2074, 65537, 0
      %v2107 = vsel %vm2075, 65537, 0
      %v2108 = vsel %vm2076, 65537, 0
      %v2109 = vsel %vm2077, 65537, 0
      %v2110 = vsel %vm2078, 65537, 0
      %v2111 = vsel %vm2079, 65537, 0
      %v2112 = vsel %vm2080, 65537, 0
      %v2113 = vsel %vm2081, 65537, 0
      %v2114 = vsel %vm2082, 65537, 0
      %v2115 = vsel %vm2083, 65537, 0
      %v2116 = vsel %vm2084, 65537, 0
      %v2117 = vsel %vm2085, 65537, 0
      %v2118 = vsel %vm2086, 65537, 0
      %v2119 = vsel %vm2087, 65537, 0
      %v2120 = vsel %vm2088, 65537, 0
      %v2121 = vsel %vm2089, 65537, 0
      %v2122 = vsel %vm2090, 65537, 0
      %v2123 = vsel %vm2091, 65537, 0
      %v2124 = vsel %vm2092, 65537, 0
      %v2125 = vsel %vm2093, 65537, 0
      %v2126 = vsel %vm2094, 65537, 0
      %v2127 = vsel %vm2095, 65537, 0
      %v2128 = vsel %vm2096, 65537, 0
      %v2129 = vsel %vm2097, 65537, 0
      %v2130 = vsel %vm2098, 65537, 0
      %v2131 = vsel %vm2099, 65537, 0
      %v2132 = vsel %vm2100, 65537, 0
      %v2133 = vsel %vm2101, 65537, 0
      %v2134 = vsel %vm2102, 65537, 0
      %v2135 = vsel %vm2103, 65537, 0
      %v2136 = vsel %vm2104, 65537, 0
      %v2137 = vunpack.c.l.b16 %v2105
      %v2138 = vunpack.c.l.b16 %v2106
      %v2139 = vunpack.c.l.b16 %v2107
      %v2140 = vunpack.c.l.b16 %v2108
      %v2141 = vunpack.c.l.b16 %v2109
      %v2142 = vunpack.c.l.b16 %v2110
      %v2143 = vunpack.c.l.b16 %v2111
      %v2144 = vunpack.c.l.b16 %v2112
      %v2145 = vunpack.c.l.b16 %v2113
      %v2146 = vunpack.c.l.b16 %v2114
      %v2147 = vunpack.c.l.b16 %v2115
      %v2148 = vunpack.c.l.b16 %v2116
      %v2149 = vunpack.c.l.b16 %v2117
      %v2150 = vunpack.c.l.b16 %v2118
      %v2151 = vunpack.c.l.b16 %v2119
      %v2152 = vunpack.c.l.b16 %v2120
      %v2153 = vunpack.c.l.b16 %v2121
      %v2154 = vunpack.c.l.b16 %v2122
      %v2155 = vunpack.c.l.b16 %v2123
      %v2156 = vunpack.c.l.b16 %v2124
      %v2157 = vunpack.c.l.b16 %v2125
      %v2158 = vunpack.c.l.b16 %v2126
      %v2159 = vunpack.c.l.b16 %v2127
      %v2160 = vunpack.c.l.b16 %v2128
      %v2161 = vunpack.c.l.b16 %v2129
      %v2162 = vunpack.c.l.b16 %v2130
      %v2163 = vunpack.c.l.b16 %v2131
      %v2164 = vunpack.c.l.b16 %v2132
      %v2165 = vunpack.c.l.b16 %v2133
      %v2166 = vunpack.c.l.b16 %v2134
      %v2167 = vunpack.c.l.b16 %v2135
      %v2168 = vunpack.c.l.b16 %v2136
      %v2169 = vpack.c.b16 %v2138, %v2137
      %v2170 = vpack.c.b16 %v2140, %v2139
      %v2171 = vpack.c.b16 %v2142, %v2141
      %v2172 = vpack.c.b16 %v2144, %v2143
      %v2173 = vpack.c.b16 %v2146, %v2145
      %v2174 = vpack.c.b16 %v2148, %v2147
      %v2175 = vpack.c.b16 %v2150, %v2149
      %v2176 = vpack.c.b16 %v2152, %v2151
      %v2177 = vpack.c.b16 %v2154, %v2153
      %v2178 = vpack.c.b16 %v2156, %v2155
      %v2179 = vpack.c.b16 %v2158, %v2157
      %v2180 = vpack.c.b16 %v2160, %v2159
      %v2181 = vpack.c.b16 %v2162, %v2161
      %v2182 = vpack.c.b16 %v2164, %v2163
      %v2183 = vpack.c.b16 %v2166, %v2165
      %v2184 = vpack.c.b16 %v2168, %v2167
      %vm2185 = vcmp.ne.s16.totalorder %v2169, 0
      %vm2186 = vcmp.ne.s16.totalorder %v2170, 0
      %vm2187 = vcmp.ne.s16.totalorder %v2171, 0
      %vm2188 = vcmp.ne.s16.totalorder %v2172, 0
      %vm2189 = vcmp.ne.s16.totalorder %v2173, 0
      %vm2190 = vcmp.ne.s16.totalorder %v2174, 0
      %vm2191 = vcmp.ne.s16.totalorder %v2175, 0
      %vm2192 = vcmp.ne.s16.totalorder %v2176, 0
      %vm2193 = vcmp.ne.s16.totalorder %v2177, 0
      %vm2194 = vcmp.ne.s16.totalorder %v2178, 0
      %vm2195 = vcmp.ne.s16.totalorder %v2179, 0
      %vm2196 = vcmp.ne.s16.totalorder %v2180, 0
      %vm2197 = vcmp.ne.s16.totalorder %v2181, 0
      %vm2198 = vcmp.ne.s16.totalorder %v2182, 0
      %vm2199 = vcmp.ne.s16.totalorder %v2183, 0
      %vm2200 = vcmp.ne.s16.totalorder %v2184, 0
      %v2201 = vsel %vm2185, %v1721, 0
      %v2202 = vsel %vm2186, %v1722, 0
      %v2203 = vsel %vm2187, %v1723, 0
      %v2204 = vsel %vm2188, %v1724, 0
      %v2205 = vsel %vm2189, %v1725, 0
      %v2206 = vsel %vm2190, %v1726, 0
      %v2207 = vsel %vm2191, %v1727, 0
      %v2208 = vsel %vm2192, %v1728, 0
      %v2209 = vsel %vm2193, %v1729, 0
      %v2210 = vsel %vm2194, %v1730, 0
      %v2211 = vsel %vm2195, %v1731, 0
      %v2212 = vsel %vm2196, %v1732, 0
      %v2213 = vsel %vm2197, %v1733, 0
      %v2214 = vsel %vm2198, %v1734, 0
      %v2215 = vsel %vm2199, %v1735, 0
      %v2216 = vsel %vm2200, %v1736, 0
      %2233 = vrot.lane.b32.xlu0 %v1625, 32
      %v2234 = vpop.permute.xlu0 %2233
      %2235 = vrot.lane.b32.xlu0 %v1626, 32
      %v2236 = vpop.permute.xlu0 %2235
      %2237 = vrot.lane.b32.xlu0 %v1627, 32
      %v2238 = vpop.permute.xlu0 %2237
      %2239 = vrot.lane.b32.xlu0 %v1628, 32
      %v2240 = vpop.permute.xlu0 %2239
      %2241 = vrot.lane.b32.xlu0 %v1629, 32
      %v2242 = vpop.permute.xlu0 %2241
      %2243 = vrot.lane.b32.xlu0 %v1630, 32
      %v2244 = vpop.permute.xlu0 %2243
      %2245 = vrot.lane.b32.xlu0 %v1631, 32
      %v2246 = vpop.permute.xlu0 %2245
      %2247 = vrot.lane.b32.xlu0 %v1632, 32
      %v2248 = vpop.permute.xlu0 %2247
      %2249 = vrot.lane.b32.xlu0 %v1633, 32
      %v2250 = vpop.permute.xlu0 %2249
      %2251 = vrot.lane.b32.xlu0 %v1634, 32
      %v2252 = vpop.permute.xlu0 %2251
      %2253 = vrot.lane.b32.xlu0 %v1635, 32
      %v2254 = vpop.permute.xlu0 %2253
      %2255 = vrot.lane.b32.xlu0 %v1636, 32
      %v2256 = vpop.permute.xlu0 %2255
      %2257 = vrot.lane.b32.xlu0 %v1637, 32
      %v2258 = vpop.permute.xlu0 %2257
      %2259 = vrot.lane.b32.xlu0 %v1638, 32
      %v2260 = vpop.permute.xlu0 %2259
      %2261 = vrot.lane.b32.xlu0 %v1639, 32
      %v2262 = vpop.permute.xlu0 %2261
      %2263 = vrot.lane.b32.xlu0 %v1640, 32
      %v2264 = vpop.permute.xlu0 %2263
      %2281 = vrot.lane.b32.xlu0 %v2201, 64
      %v2282 = vpop.permute.xlu0 %2281
      %2283 = vrot.lane.b32.xlu0 %v2202, 64
      %v2284 = vpop.permute.xlu0 %2283
      %2285 = vrot.lane.b32.xlu0 %v2203, 64
      %v2286 = vpop.permute.xlu0 %2285
      %2287 = vrot.lane.b32.xlu0 %v2204, 64
      %v2288 = vpop.permute.xlu0 %2287
      %2289 = vrot.lane.b32.xlu0 %v2205, 64
      %v2290 = vpop.permute.xlu0 %2289
      %2291 = vrot.lane.b32.xlu0 %v2206, 64
      %v2292 = vpop.permute.xlu0 %2291
      %2293 = vrot.lane.b32.xlu0 %v2207, 64
      %v2294 = vpop.permute.xlu0 %2293
      %2295 = vrot.lane.b32.xlu0 %v2208, 64
      %v2296 = vpop.permute.xlu0 %2295
      %2297 = vrot.lane.b32.xlu0 %v2209, 64
      %v2298 = vpop.permute.xlu0 %2297
      %2299 = vrot.lane.b32.xlu0 %v2210, 64
      %v2300 = vpop.permute.xlu0 %2299
      %2301 = vrot.lane.b32.xlu0 %v2211, 64
      %v2302 = vpop.permute.xlu0 %2301
      %2303 = vrot.lane.b32.xlu0 %v2212, 64
      %v2304 = vpop.permute.xlu0 %2303
      %2305 = vrot.lane.b32.xlu0 %v2213, 64
      %v2306 = vpop.permute.xlu0 %2305
      %2307 = vrot.lane.b32.xlu0 %v2214, 64
      %v2308 = vpop.permute.xlu0 %2307
      %2309 = vrot.lane.b32.xlu0 %v2215, 64
      %v2310 = vpop.permute.xlu0 %2309
      %2311 = vrot.lane.b32.xlu0 %v2216, 64
      %v2312 = vpop.permute.xlu0 %2311
      %v2315 = vsel %vm597, %v1961, %v2234
      %v2318 = vsel %vm597, %v1962, %v2236
      %v2321 = vsel %vm597, %v1963, %v2238
      %v2324 = vsel %vm597, %v1964, %v2240
      %v2327 = vsel %vm597, %v1965, %v2242
      %v2330 = vsel %vm597, %v1966, %v2244
      %v2333 = vsel %vm597, %v1967, %v2246
      %v2336 = vsel %vm597, %v1968, %v2248
      %v2339 = vsel %vm597, %v1969, %v2250
      %v2342 = vsel %vm597, %v1970, %v2252
      %v2345 = vsel %vm597, %v1971, %v2254
      %v2348 = vsel %vm597, %v1972, %v2256
      %v2351 = vsel %vm597, %v1973, %v2258
      %v2354 = vsel %vm597, %v1974, %v2260
      %v2357 = vsel %vm597, %v1975, %v2262
      %v2360 = vsel %vm597, %v1976, %v2264
      %v2362 = vsel %vm877, %v2315, %v2282
      %v2364 = vsel %vm877, %v2318, %v2284
      %v2366 = vsel %vm877, %v2321, %v2286
      %v2368 = vsel %vm877, %v2324, %v2288
      %v2370 = vsel %vm877, %v2327, %v2290
      %v2372 = vsel %vm877, %v2330, %v2292
      %v2374 = vsel %vm877, %v2333, %v2294
      %v2376 = vsel %vm877, %v2336, %v2296
      %v2378 = vsel %vm877, %v2339, %v2298
      %v2380 = vsel %vm877, %v2342, %v2300
      %v2382 = vsel %vm877, %v2345, %v2302
      %v2384 = vsel %vm877, %v2348, %v2304
      %v2386 = vsel %vm877, %v2351, %v2306
      %v2388 = vsel %vm877, %v2354, %v2308
      %v2390 = vsel %vm877, %v2357, %v2310
      %v2392 = vsel %vm877, %v2360, %v2312
      %v2393 = vlaneseq
      %v2394 = vshrl.u32 %v2393, 7
      %v2395 = vsub.s32 1, %v2394
      %v2396 = vrot.slane %v630, %v2395
      %v2409 = vunpack.c.l.b16 %v614
      %v2410 = vunpack.c.l.b16 %v615
      %v2411 = vunpack.c.l.b16 %v616
      %v2412 = vunpack.c.l.b16 %v617
      %v2413 = vunpack.c.l.b16 %v618
      %v2414 = vunpack.c.l.b16 %v619
      %v2415 = vunpack.c.l.b16 %v620
      %v2416 = vunpack.c.l.b16 %v621
      %v2417 = vunpack.c.l.b16 %v622
      %v2418 = vunpack.c.l.b16 %v623
      %v2419 = vunpack.c.l.b16 %v624
      %v2420 = vunpack.c.l.b16 %v625
      %v2421 = vpack.c.b16 %v2410, %v2409
      %v2422 = vpack.c.b16 %v2412, %v2411
      %v2423 = vpack.c.b16 %v2414, %v2413
      %v2424 = vpack.c.b16 %v2416, %v2415
      %v2425 = vpack.c.b16 %v2418, %v2417
      %v2426 = vpack.c.b16 %v2420, %v2419
      %v2433 = vsel %vm950, %v2362, 0
      %v2435 = vsel %vm950, %v2364, 0
      %v2437 = vsel %vm950, %v2366, 0
      %v2439 = vsel %vm950, %v2368, 0
      %v2441 = vsel %vm950, %v2370, 0
      %v2443 = vsel %vm950, %v2372, 0
      %v2445 = vsel %vm950, %v2374, 0
      %v2447 = vsel %vm950, %v2376, 0
      %v2449 = vsel %vm950, %v2378, 0
      %v2451 = vsel %vm950, %v2380, 0
      %v2453 = vsel %vm950, %v2382, 0
      %v2455 = vsel %vm950, %v2384, 0
      %v2457 = vsel %vm950, %v2386, 0
      %v2459 = vsel %vm950, %v2388, 0
      %v2461 = vsel %vm950, %v2390, 0
      %v2463 = vsel %vm950, %v2392, 0
      %2465 = vmatprep.subr.bf16.mxu0 0
      %2466 = vmatpush1.bf16.msra.mxu0 0
      %2467 = vmatprep.subr.bf16.mxu0 0
      %2468 = vmatpush1.bf16.msra.mxu0 0
      %2469 = vmatprep.subr.bf16.mxu0 0
      %2470 = vmatpush1.bf16.msra.mxu0 %v2426
      %2471 = vmatprep.subr.bf16.mxu0 0
      %2472 = vmatpush1.bf16.msra.mxu0 %v2425
      %2473 = vmatprep.subr.bf16.mxu0 0
      %2474 = vmatpush1.bf16.msra.mxu0 %v2424
      %2475 = vmatprep.subr.bf16.mxu0 0
      %2476 = vmatpush1.bf16.msra.mxu0 %v2423
      %2477 = vmatprep.subr.bf16.mxu0 0
      %2478 = vmatpush1.bf16.msra.mxu0 %v2422
      %2479 = vmatprep.subr.bf16.mxu0 0
      %2480 = vmatpush1.bf16.msra.mxu0 %v2421
      %2481 = vmatprep.subr.bf16.mxu0 0
      %2482 = vmatpush2.bf16.msra.mxu0 0
      %2483 = vmatprep.subr.bf16.mxu0 0
      %2484 = vmatpush2.bf16.msra.mxu0 0
      %2485 = vmatprep.subr.bf16.mxu0 0
      %2486 = vmatpush2.bf16.msra.mxu0 0
      %2487 = vmatprep.subr.bf16.mxu0 0
      %2488 = vmatpush2.bf16.msra.mxu0 0
      %2489 = vmatprep.subr.bf16.mxu0 0
      %2490 = vmatpush2.bf16.msra.mxu0 0
      %2491 = vmatprep.subr.bf16.mxu0 0
      %2492 = vmatpush2.bf16.msra.mxu0 0
      %2493 = vmatprep.subr.bf16.mxu0 0
      %2494 = vmatpush2.bf16.msra.mxu0 0
      %2495 = vmatprep.subr.bf16.mxu0 0
      %2496 = vmatpush2.bf16.msra.mxu0 0
      %2497 = vmatprep.mubr.bf16.mxu0 0
      %2498 = vmatmul.mubr.bf16.gmra.mxu0 %v2433
      %v2499 = vpop.f32.mrf.mxu0
      %v2500 = vadd.f32 %v2396, %v2499
      %v2501 = vpop.f32.mrf.mxu0
      %v2502 = vpop.f32.mrf.mxu0
      %v2503 = vadd.f32 %v2396, %v2502
      %v2504 = vpop.f32.mrf.mxu0
      %2505 = vmatprep.mubr.bf16.mxu0 0
      %2506 = vmatmul.mubr.bf16.gmra.mxu0 %v2435
      %v2507 = vpop.f32.mrf.mxu0
      %v2508 = vadd.f32 %v2396, %v2507
      %v2509 = vpop.f32.mrf.mxu0
      %v2510 = vpop.f32.mrf.mxu0
      %v2511 = vadd.f32 %v2396, %v2510
      %v2512 = vpop.f32.mrf.mxu0
      %2513 = vmatprep.mubr.bf16.mxu0 0
      %2514 = vmatmul.mubr.bf16.gmra.mxu0 %v2437
      %v2515 = vpop.f32.mrf.mxu0
      %v2516 = vadd.f32 %v2396, %v2515
      %v2517 = vpop.f32.mrf.mxu0
      %v2518 = vpop.f32.mrf.mxu0
      %v2519 = vadd.f32 %v2396, %v2518
      %v2520 = vpop.f32.mrf.mxu0
      %2521 = vmatprep.mubr.bf16.mxu0 0
      %2522 = vmatmul.mubr.bf16.gmra.mxu0 %v2439
      %v2523 = vpop.f32.mrf.mxu0
      %v2524 = vadd.f32 %v2396, %v2523
      %v2525 = vpop.f32.mrf.mxu0
      %v2526 = vpop.f32.mrf.mxu0
      %v2527 = vadd.f32 %v2396, %v2526
      %v2528 = vpop.f32.mrf.mxu0
      %2529 = vmatprep.mubr.bf16.mxu0 0
      %2530 = vmatmul.mubr.bf16.gmra.mxu0 %v2441
      %v2531 = vpop.f32.mrf.mxu0
      %v2532 = vadd.f32 %v2396, %v2531
      %v2533 = vpop.f32.mrf.mxu0
      %v2534 = vpop.f32.mrf.mxu0
      %v2535 = vadd.f32 %v2396, %v2534
      %v2536 = vpop.f32.mrf.mxu0
      %2537 = vmatprep.mubr.bf16.mxu0 0
      %2538 = vmatmul.mubr.bf16.gmra.mxu0 %v2443
      %v2539 = vpop.f32.mrf.mxu0
      %v2540 = vadd.f32 %v2396, %v2539
      %v2541 = vpop.f32.mrf.mxu0
      %v2542 = vpop.f32.mrf.mxu0
      %v2543 = vadd.f32 %v2396, %v2542
      %v2544 = vpop.f32.mrf.mxu0
      %2545 = vmatprep.mubr.bf16.mxu0 0
      %2546 = vmatmul.mubr.bf16.gmra.mxu0 %v2445
      %v2547 = vpop.f32.mrf.mxu0
      %v2548 = vadd.f32 %v2396, %v2547
      %v2549 = vpop.f32.mrf.mxu0
      %v2550 = vpop.f32.mrf.mxu0
      %v2551 = vadd.f32 %v2396, %v2550
      %v2552 = vpop.f32.mrf.mxu0
      %2553 = vmatprep.mubr.bf16.mxu0 0
      %2554 = vmatmul.mubr.bf16.gmra.mxu0 %v2447
      %v2555 = vpop.f32.mrf.mxu0
      %v2556 = vadd.f32 %v2396, %v2555
      %v2557 = vpop.f32.mrf.mxu0
      %v2558 = vpop.f32.mrf.mxu0
      %v2559 = vadd.f32 %v2396, %v2558
      %v2560 = vpop.f32.mrf.mxu0
      %2561 = vmatprep.mubr.bf16.mxu0 0
      %2562 = vmatmul.mubr.bf16.gmra.mxu0 %v2449
      %v2563 = vpop.f32.mrf.mxu0
      %v2564 = vadd.f32 %v2396, %v2563
      %v2565 = vpop.f32.mrf.mxu0
      %v2566 = vpop.f32.mrf.mxu0
      %v2567 = vadd.f32 %v2396, %v2566
      %v2568 = vpop.f32.mrf.mxu0
      %2569 = vmatprep.mubr.bf16.mxu0 0
      %2570 = vmatmul.mubr.bf16.gmra.mxu0 %v2451
      %v2571 = vpop.f32.mrf.mxu0
      %v2572 = vadd.f32 %v2396, %v2571
      %v2573 = vpop.f32.mrf.mxu0
      %v2574 = vpop.f32.mrf.mxu0
      %v2575 = vadd.f32 %v2396, %v2574
      %v2576 = vpop.f32.mrf.mxu0
      %2577 = vmatprep.mubr.bf16.mxu0 0
      %2578 = vmatmul.mubr.bf16.gmra.mxu0 %v2453
      %v2579 = vpop.f32.mrf.mxu0
      %v2580 = vadd.f32 %v2396, %v2579
      %v2581 = vpop.f32.mrf.mxu0
      %v2582 = vpop.f32.mrf.mxu0
      %v2583 = vadd.f32 %v2396, %v2582
      %v2584 = vpop.f32.mrf.mxu0
      %2585 = vmatprep.mubr.bf16.mxu0 0
      %2586 = vmatmul.mubr.bf16.gmra.mxu0 %v2455
      %v2587 = vpop.f32.mrf.mxu0
      %v2588 = vadd.f32 %v2396, %v2587
      %v2589 = vpop.f32.mrf.mxu0
      %v2590 = vpop.f32.mrf.mxu0
      %v2591 = vadd.f32 %v2396, %v2590
      %v2592 = vpop.f32.mrf.mxu0
      %2593 = vmatprep.mubr.bf16.mxu0 0
      %2594 = vmatmul.mubr.bf16.gmra.mxu0 %v2457
      %v2595 = vpop.f32.mrf.mxu0
      %v2596 = vadd.f32 %v2396, %v2595
      %v2597 = vpop.f32.mrf.mxu0
      %v2598 = vpop.f32.mrf.mxu0
      %v2599 = vadd.f32 %v2396, %v2598
      %v2600 = vpop.f32.mrf.mxu0
      %2601 = vmatprep.mubr.bf16.mxu0 0
      %2602 = vmatmul.mubr.bf16.gmra.mxu0 %v2459
      %v2603 = vpop.f32.mrf.mxu0
      %v2604 = vadd.f32 %v2396, %v2603
      %v2605 = vpop.f32.mrf.mxu0
      %v2606 = vpop.f32.mrf.mxu0
      %v2607 = vadd.f32 %v2396, %v2606
      %v2608 = vpop.f32.mrf.mxu0
      %2609 = vmatprep.mubr.bf16.mxu0 0
      %2610 = vmatmul.mubr.bf16.gmra.mxu0 %v2461
      %v2611 = vpop.f32.mrf.mxu0
      %v2612 = vadd.f32 %v2396, %v2611
      %v2613 = vpop.f32.mrf.mxu0
      %v2614 = vpop.f32.mrf.mxu0
      %v2615 = vadd.f32 %v2396, %v2614
      %v2616 = vpop.f32.mrf.mxu0
      %2617 = vmatprep.mubr.bf16.mxu0 0
      %2618 = vmatmul.mubr.bf16.gmra.mxu0 %v2463
      %v2619 = vpop.f32.mrf.mxu0
      %v2620 = vadd.f32 %v2396, %v2619
      %v2621 = vpop.f32.mrf.mxu0
      %v2622 = vpop.f32.mrf.mxu0
      %v2623 = vadd.f32 %v2396, %v2622
      %v2624 = vpop.f32.mrf.mxu0
      %2625 = vdwg.mxu0
      %v2626 = vmax.f32 %v2500, 0.0
      %v2627 = vmax.f32 %v2503, 0.0
      %v2628 = vmax.f32 %v2508, 0.0
      %v2629 = vmax.f32 %v2511, 0.0
      %v2630 = vmax.f32 %v2516, 0.0
      %v2631 = vmax.f32 %v2519, 0.0
      %v2632 = vmax.f32 %v2524, 0.0
      %v2633 = vmax.f32 %v2527, 0.0
      %v2634 = vmax.f32 %v2532, 0.0
      %v2635 = vmax.f32 %v2535, 0.0
      %v2636 = vmax.f32 %v2540, 0.0
      %v2637 = vmax.f32 %v2543, 0.0
      %v2638 = vmax.f32 %v2548, 0.0
      %v2639 = vmax.f32 %v2551, 0.0
      %v2640 = vmax.f32 %v2556, 0.0
      %v2641 = vmax.f32 %v2559, 0.0
      %v2642 = vmax.f32 %v2564, 0.0
      %v2643 = vmax.f32 %v2567, 0.0
      %v2644 = vmax.f32 %v2572, 0.0
      %v2645 = vmax.f32 %v2575, 0.0
      %v2646 = vmax.f32 %v2580, 0.0
      %v2647 = vmax.f32 %v2583, 0.0
      %v2648 = vmax.f32 %v2588, 0.0
      %v2649 = vmax.f32 %v2591, 0.0
      %v2650 = vmax.f32 %v2596, 0.0
      %v2651 = vmax.f32 %v2599, 0.0
      %v2652 = vmax.f32 %v2604, 0.0
      %v2653 = vmax.f32 %v2607, 0.0
      %v2654 = vmax.f32 %v2612, 0.0
      %v2655 = vmax.f32 %v2615, 0.0
      %v2656 = vmax.f32 %v2620, 0.0
      %v2657 = vmax.f32 %v2623, 0.0
      %v2658 = vpack.c.bf16 %v2627, %v2626
      %v2659 = vpack.c.bf16 %v2629, %v2628
      %v2660 = vpack.c.bf16 %v2631, %v2630
      %v2661 = vpack.c.bf16 %v2633, %v2632
      %v2662 = vpack.c.bf16 %v2635, %v2634
      %v2663 = vpack.c.bf16 %v2637, %v2636
      %v2664 = vpack.c.bf16 %v2639, %v2638
      %v2665 = vpack.c.bf16 %v2641, %v2640
      %v2666 = vpack.c.bf16 %v2643, %v2642
      %v2667 = vpack.c.bf16 %v2645, %v2644
      %v2668 = vpack.c.bf16 %v2647, %v2646
      %v2669 = vpack.c.bf16 %v2649, %v2648
      %v2670 = vpack.c.bf16 %v2651, %v2650
      %v2671 = vpack.c.bf16 %v2653, %v2652
      %v2672 = vpack.c.bf16 %v2655, %v2654
      %v2673 = vpack.c.bf16 %v2657, %v2656
      %v2674 = vlaneseq
      %v2675 = vshrl.u32 %v2674, 7
      %v2676 = vsub.s32 2, %v2675
      %v2677 = vrot.slane %v630, %v2676
      %v2682 = vunpack.c.l.b16 %v626
      %v2683 = vunpack.c.l.b16 %v627
      %v2684 = vunpack.c.l.b16 %v628
      %v2685 = vunpack.c.l.b16 %v629
      %v2686 = vpack.c.b16 %v2683, %v2682
      %v2687 = vpack.c.b16 %v2685, %v2684
      %v2691 = vsel %vm597, %v2658, 0
      %v2694 = vsel %vm597, %v2659, 0
      %v2697 = vsel %vm597, %v2660, 0
      %v2700 = vsel %vm597, %v2661, 0
      %v2703 = vsel %vm597, %v2662, 0
      %v2706 = vsel %vm597, %v2663, 0
      %v2709 = vsel %vm597, %v2664, 0
      %v2712 = vsel %vm597, %v2665, 0
      %v2715 = vsel %vm597, %v2666, 0
      %v2718 = vsel %vm597, %v2667, 0
      %v2721 = vsel %vm597, %v2668, 0
      %v2724 = vsel %vm597, %v2669, 0
      %v2727 = vsel %vm597, %v2670, 0
      %v2730 = vsel %vm597, %v2671, 0
      %v2733 = vsel %vm597, %v2672, 0
      %v2736 = vsel %vm597, %v2673, 0
      %2738 = vmatprep.subr.bf16.mxu0 0
      %2739 = vmatpush1.bf16.msra.mxu0 0
      %2740 = vmatprep.subr.bf16.mxu0 0
      %2741 = vmatpush1.bf16.msra.mxu0 0
      %2742 = vmatprep.subr.bf16.mxu0 0
      %2743 = vmatpush1.bf16.msra.mxu0 0
      %2744 = vmatprep.subr.bf16.mxu0 0
      %2745 = vmatpush1.bf16.msra.mxu0 0
      %2746 = vmatprep.subr.bf16.mxu0 0
      %2747 = vmatpush1.bf16.msra.mxu0 0
      %2748 = vmatprep.subr.bf16.mxu0 0
      %2749 = vmatpush1.bf16.msra.mxu0 0
      %2750 = vmatprep.subr.bf16.mxu0 0
      %2751 = vmatpush1.bf16.msra.mxu0 %v2687
      %2752 = vmatprep.subr.bf16.mxu0 0
      %2753 = vmatpush1.bf16.msra.mxu0 %v2686
      %2754 = vmatprep.subr.bf16.mxu0 0
      %2755 = vmatpush2.bf16.msra.mxu0 0
      %2756 = vmatprep.subr.bf16.mxu0 0
      %2757 = vmatpush2.bf16.msra.mxu0 0
      %2758 = vmatprep.subr.bf16.mxu0 0
      %2759 = vmatpush2.bf16.msra.mxu0 0
      %2760 = vmatprep.subr.bf16.mxu0 0
      %2761 = vmatpush2.bf16.msra.mxu0 0
      %2762 = vmatprep.subr.bf16.mxu0 0
      %2763 = vmatpush2.bf16.msra.mxu0 0
      %2764 = vmatprep.subr.bf16.mxu0 0
      %2765 = vmatpush2.bf16.msra.mxu0 0
      %2766 = vmatprep.subr.bf16.mxu0 0
      %2767 = vmatpush2.bf16.msra.mxu0 0
      %2768 = vmatprep.subr.bf16.mxu0 0
      %2769 = vmatpush2.bf16.msra.mxu0 0
      %2770 = vmatprep.mubr.bf16.mxu0 0
      %2771 = vmatmul.mubr.bf16.gmra.mxu0 %v2691
      %v2772 = vpop.f32.mrf.mxu0
      %v2773 = vadd.f32 %v2677, %v2772
      %v2774 = vpop.f32.mrf.mxu0
      %v2775 = vpop.f32.mrf.mxu0
      %v2776 = vadd.f32 %v2677, %v2775
      %v2777 = vpop.f32.mrf.mxu0
      %2778 = vmatprep.mubr.bf16.mxu0 0
      %2779 = vmatmul.mubr.bf16.gmra.mxu0 %v2694
      %v2780 = vpop.f32.mrf.mxu0
      %v2781 = vadd.f32 %v2677, %v2780
      %v2782 = vpop.f32.mrf.mxu0
      %v2783 = vpop.f32.mrf.mxu0
      %v2784 = vadd.f32 %v2677, %v2783
      %v2785 = vpop.f32.mrf.mxu0
      %2786 = vmatprep.mubr.bf16.mxu0 0
      %2787 = vmatmul.mubr.bf16.gmra.mxu0 %v2697
      %v2788 = vpop.f32.mrf.mxu0
      %v2789 = vadd.f32 %v2677, %v2788
      %v2790 = vpop.f32.mrf.mxu0
      %v2791 = vpop.f32.mrf.mxu0
      %v2792 = vadd.f32 %v2677, %v2791
      %v2793 = vpop.f32.mrf.mxu0
      %2794 = vmatprep.mubr.bf16.mxu0 0
      %2795 = vmatmul.mubr.bf16.gmra.mxu0 %v2700
      %v2796 = vpop.f32.mrf.mxu0
      %v2797 = vadd.f32 %v2677, %v2796
      %v2798 = vpop.f32.mrf.mxu0
      %v2799 = vpop.f32.mrf.mxu0
      %v2800 = vadd.f32 %v2677, %v2799
      %v2801 = vpop.f32.mrf.mxu0
      %2802 = vmatprep.mubr.bf16.mxu0 0
      %2803 = vmatmul.mubr.bf16.gmra.mxu0 %v2703
      %v2804 = vpop.f32.mrf.mxu0
      %v2805 = vadd.f32 %v2677, %v2804
      %v2806 = vpop.f32.mrf.mxu0
      %v2807 = vpop.f32.mrf.mxu0
      %v2808 = vadd.f32 %v2677, %v2807
      %v2809 = vpop.f32.mrf.mxu0
      %2810 = vmatprep.mubr.bf16.mxu0 0
      %2811 = vmatmul.mubr.bf16.gmra.mxu0 %v2706
      %v2812 = vpop.f32.mrf.mxu0
      %v2813 = vadd.f32 %v2677, %v2812
      %v2814 = vpop.f32.mrf.mxu0
      %v2815 = vpop.f32.mrf.mxu0
      %v2816 = vadd.f32 %v2677, %v2815
      %v2817 = vpop.f32.mrf.mxu0
      %2818 = vmatprep.mubr.bf16.mxu0 0
      %2819 = vmatmul.mubr.bf16.gmra.mxu0 %v2709
      %v2820 = vpop.f32.mrf.mxu0
      %v2821 = vadd.f32 %v2677, %v2820
      %v2822 = vpop.f32.mrf.mxu0
      %v2823 = vpop.f32.mrf.mxu0
      %v2824 = vadd.f32 %v2677, %v2823
      %v2825 = vpop.f32.mrf.mxu0
      %2826 = vmatprep.mubr.bf16.mxu0 0
      %2827 = vmatmul.mubr.bf16.gmra.mxu0 %v2712
      %v2828 = vpop.f32.mrf.mxu0
      %v2829 = vadd.f32 %v2677, %v2828
      %v2830 = vpop.f32.mrf.mxu0
      %v2831 = vpop.f32.mrf.mxu0
      %v2832 = vadd.f32 %v2677, %v2831
      %v2833 = vpop.f32.mrf.mxu0
      %2834 = vmatprep.mubr.bf16.mxu0 0
      %2835 = vmatmul.mubr.bf16.gmra.mxu0 %v2715
      %v2836 = vpop.f32.mrf.mxu0
      %v2837 = vadd.f32 %v2677, %v2836
      %v2838 = vpop.f32.mrf.mxu0
      %v2839 = vpop.f32.mrf.mxu0
      %v2840 = vadd.f32 %v2677, %v2839
      %v2841 = vpop.f32.mrf.mxu0
      %2842 = vmatprep.mubr.bf16.mxu0 0
      %2843 = vmatmul.mubr.bf16.gmra.mxu0 %v2718
      %v2844 = vpop.f32.mrf.mxu0
      %v2845 = vadd.f32 %v2677, %v2844
      %v2846 = vpop.f32.mrf.mxu0
      %v2847 = vpop.f32.mrf.mxu0
      %v2848 = vadd.f32 %v2677, %v2847
      %v2849 = vpop.f32.mrf.mxu0
      %2850 = vmatprep.mubr.bf16.mxu0 0
      %2851 = vmatmul.mubr.bf16.gmra.mxu0 %v2721
      %v2852 = vpop.f32.mrf.mxu0
      %v2853 = vadd.f32 %v2677, %v2852
      %v2854 = vpop.f32.mrf.mxu0
      %v2855 = vpop.f32.mrf.mxu0
      %v2856 = vadd.f32 %v2677, %v2855
      %v2857 = vpop.f32.mrf.mxu0
      %2858 = vmatprep.mubr.bf16.mxu0 0
      %2859 = vmatmul.mubr.bf16.gmra.mxu0 %v2724
      %v2860 = vpop.f32.mrf.mxu0
      %v2861 = vadd.f32 %v2677, %v2860
      %v2862 = vpop.f32.mrf.mxu0
      %v2863 = vpop.f32.mrf.mxu0
      %v2864 = vadd.f32 %v2677, %v2863
      %v2865 = vpop.f32.mrf.mxu0
      %2866 = vmatprep.mubr.bf16.mxu0 0
      %2867 = vmatmul.mubr.bf16.gmra.mxu0 %v2727
      %v2868 = vpop.f32.mrf.mxu0
      %v2869 = vadd.f32 %v2677, %v2868
      %v2870 = vpop.f32.mrf.mxu0
      %v2871 = vpop.f32.mrf.mxu0
      %v2872 = vadd.f32 %v2677, %v2871
      %v2873 = vpop.f32.mrf.mxu0
      %2874 = vmatprep.mubr.bf16.mxu0 0
      %2875 = vmatmul.mubr.bf16.gmra.mxu0 %v2730
      %v2876 = vpop.f32.mrf.mxu0
      %v2877 = vadd.f32 %v2677, %v2876
      %v2878 = vpop.f32.mrf.mxu0
      %v2879 = vpop.f32.mrf.mxu0
      %v2880 = vadd.f32 %v2677, %v2879
      %v2881 = vpop.f32.mrf.mxu0
      %2882 = vmatprep.mubr.bf16.mxu0 0
      %2883 = vmatmul.mubr.bf16.gmra.mxu0 %v2733
      %v2884 = vpop.f32.mrf.mxu0
      %v2885 = vadd.f32 %v2677, %v2884
      %v2886 = vpop.f32.mrf.mxu0
      %v2887 = vpop.f32.mrf.mxu0
      %v2888 = vadd.f32 %v2677, %v2887
      %v2889 = vpop.f32.mrf.mxu0
      %2890 = vmatprep.mubr.bf16.mxu0 0
      %2891 = vmatmul.mubr.bf16.gmra.mxu0 %v2736
      %v2892 = vpop.f32.mrf.mxu0
      %v2893 = vadd.f32 %v2677, %v2892
      %v2894 = vpop.f32.mrf.mxu0
      %v2895 = vpop.f32.mrf.mxu0
      %v2896 = vadd.f32 %v2677, %v2895
      %v2897 = vpop.f32.mrf.mxu0
      %2898 = vdwg.mxu0
      %2931 = vrot.lane.b32.xlu0 %v439, 96
      %v2932 = vpop.permute.xlu0 %2931
      %2933 = vrot.lane.b32.xlu0 %v442, 96
      %v2934 = vpop.permute.xlu0 %2933
      %2935 = vrot.lane.b32.xlu0 %v447, 96
      %v2936 = vpop.permute.xlu0 %2935
      %2937 = vrot.lane.b32.xlu0 %v450, 96
      %v2938 = vpop.permute.xlu0 %2937
      %2939 = vrot.lane.b32.xlu0 %v455, 96
      %v2940 = vpop.permute.xlu0 %2939
      %2941 = vrot.lane.b32.xlu0 %v458, 96
      %v2942 = vpop.permute.xlu0 %2941
      %2943 = vrot.lane.b32.xlu0 %v463, 96
      %v2944 = vpop.permute.xlu0 %2943
      %2945 = vrot.lane.b32.xlu0 %v466, 96
      %v2946 = vpop.permute.xlu0 %2945
      %2947 = vrot.lane.b32.xlu0 %v471, 96
      %v2948 = vpop.permute.xlu0 %2947
      %2949 = vrot.lane.b32.xlu0 %v474, 96
      %v2950 = vpop.permute.xlu0 %2949
      %2951 = vrot.lane.b32.xlu0 %v479, 96
      %v2952 = vpop.permute.xlu0 %2951
      %2953 = vrot.lane.b32.xlu0 %v482, 96
      %v2954 = vpop.permute.xlu0 %2953
      %2955 = vrot.lane.b32.xlu0 %v487, 96
      %v2956 = vpop.permute.xlu0 %2955
      %2957 = vrot.lane.b32.xlu0 %v490, 96
      %v2958 = vpop.permute.xlu0 %2957
      %2959 = vrot.lane.b32.xlu0 %v495, 96
      %v2960 = vpop.permute.xlu0 %2959
      %2961 = vrot.lane.b32.xlu0 %v498, 96
      %v2962 = vpop.permute.xlu0 %2961
      %2963 = vrot.lane.b32.xlu0 %v503, 96
      %v2964 = vpop.permute.xlu0 %2963
      %2965 = vrot.lane.b32.xlu0 %v506, 96
      %v2966 = vpop.permute.xlu0 %2965
      %2967 = vrot.lane.b32.xlu0 %v511, 96
      %v2968 = vpop.permute.xlu0 %2967
      %2969 = vrot.lane.b32.xlu0 %v514, 96
      %v2970 = vpop.permute.xlu0 %2969
      %2971 = vrot.lane.b32.xlu0 %v519, 96
      %v2972 = vpop.permute.xlu0 %2971
      %2973 = vrot.lane.b32.xlu0 %v522, 96
      %v2974 = vpop.permute.xlu0 %2973
      %2975 = vrot.lane.b32.xlu0 %v527, 96
      %v2976 = vpop.permute.xlu0 %2975
      %2977 = vrot.lane.b32.xlu0 %v530, 96
      %v2978 = vpop.permute.xlu0 %2977
      %2979 = vrot.lane.b32.xlu0 %v535, 96
      %v2980 = vpop.permute.xlu0 %2979
      %2981 = vrot.lane.b32.xlu0 %v538, 96
      %v2982 = vpop.permute.xlu0 %2981
      %2983 = vrot.lane.b32.xlu0 %v543, 96
      %v2984 = vpop.permute.xlu0 %2983
      %2985 = vrot.lane.b32.xlu0 %v546, 96
      %v2986 = vpop.permute.xlu0 %2985
      %2987 = vrot.lane.b32.xlu0 %v551, 96
      %v2988 = vpop.permute.xlu0 %2987
      %2989 = vrot.lane.b32.xlu0 %v554, 96
      %v2990 = vpop.permute.xlu0 %2989
      %2991 = vrot.lane.b32.xlu0 %v559, 96
      %v2992 = vpop.permute.xlu0 %2991
      %2993 = vrot.lane.b32.xlu0 %v562, 96
      %v2994 = vpop.permute.xlu0 %2993
      %v3027 = vadd.f32 %v2773, %v2932
      %v3028 = vadd.f32 %v2776, %v2934
      %v3029 = vadd.f32 %v2781, %v2936
      %v3030 = vadd.f32 %v2784, %v2938
      %v3031 = vadd.f32 %v2789, %v2940
      %v3032 = vadd.f32 %v2792, %v2942
      %v3033 = vadd.f32 %v2797, %v2944
      %v3034 = vadd.f32 %v2800, %v2946
      %v3035 = vadd.f32 %v2805, %v2948
      %v3036 = vadd.f32 %v2808, %v2950
      %v3037 = vadd.f32 %v2813, %v2952
      %v3038 = vadd.f32 %v2816, %v2954
      %v3039 = vadd.f32 %v2821, %v2956
      %v3040 = vadd.f32 %v2824, %v2958
      %v3041 = vadd.f32 %v2829, %v2960
      %v3042 = vadd.f32 %v2832, %v2962
      %v3043 = vadd.f32 %v2837, %v2964
      %v3044 = vadd.f32 %v2840, %v2966
      %v3045 = vadd.f32 %v2845, %v2968
      %v3046 = vadd.f32 %v2848, %v2970
      %v3047 = vadd.f32 %v2853, %v2972
      %v3048 = vadd.f32 %v2856, %v2974
      %v3049 = vadd.f32 %v2861, %v2976
      %v3050 = vadd.f32 %v2864, %v2978
      %v3051 = vadd.f32 %v2869, %v2980
      %v3052 = vadd.f32 %v2872, %v2982
      %v3053 = vadd.f32 %v2877, %v2984
      %v3054 = vadd.f32 %v2880, %v2986
      %v3055 = vadd.f32 %v2885, %v2988
      %v3056 = vadd.f32 %v2888, %v2990
      %v3057 = vadd.f32 %v2893, %v2992
      %v3058 = vadd.f32 %v2896, %v2994
      %3059 = vst.msk [vmem:[%s224] sm:$0xff] %vm597, %v3027
      %3060 = vst.msk [vmem:[%s224 + $0x8] sm:$0xff] %vm597, %v3028
      %3061 = vst.msk [vmem:[%s224 + $0x10] sm:$0xff] %vm597, %v3029
      %3062 = vst.msk [vmem:[%s224 + $0x18] sm:$0xff] %vm597, %v3030
      %3063 = vst.msk [vmem:[%s224 + $0x20] sm:$0xff] %vm597, %v3031
      %3064 = vst.msk [vmem:[%s224 + $0x28] sm:$0xff] %vm597, %v3032
      %3065 = vst.msk [vmem:[%s224 + $0x30] sm:$0xff] %vm597, %v3033
      %3066 = vst.msk [vmem:[%s224 + $0x38] sm:$0xff] %vm597, %v3034
      %3067 = vst.msk [vmem:[%s224 + $0x40] sm:$0xff] %vm597, %v3035
      %3068 = vst.msk [vmem:[%s224 + $0x48] sm:$0xff] %vm597, %v3036
      %3069 = vst.msk [vmem:[%s224 + $0x50] sm:$0xff] %vm597, %v3037
      %3070 = vst.msk [vmem:[%s224 + $0x58] sm:$0xff] %vm597, %v3038
      %3071 = vst.msk [vmem:[%s224 + $0x60] sm:$0xff] %vm597, %v3039
      %3072 = vst.msk [vmem:[%s224 + $0x68] sm:$0xff] %vm597, %v3040
      %3073 = vst.msk [vmem:[%s224 + $0x70] sm:$0xff] %vm597, %v3041
      %3074 = vst.msk [vmem:[%s224 + $0x78] sm:$0xff] %vm597, %v3042
      %3075 = vst.msk [vmem:[%s224 + $0x80] sm:$0xff] %vm597, %v3043
      %3076 = vst.msk [vmem:[%s224 + $0x88] sm:$0xff] %vm597, %v3044
      %3077 = vst.msk [vmem:[%s224 + $0x90] sm:$0xff] %vm597, %v3045
      %3078 = vst.msk [vmem:[%s224 + $0x98] sm:$0xff] %vm597, %v3046
      %3079 = vst.msk [vmem:[%s224 + $0xa0] sm:$0xff] %vm597, %v3047
      %3080 = vst.msk [vmem:[%s224 + $0xa8] sm:$0xff] %vm597, %v3048
      %3081 = vst.msk [vmem:[%s224 + $0xb0] sm:$0xff] %vm597, %v3049
      %3082 = vst.msk [vmem:[%s224 + $0xb8] sm:$0xff] %vm597, %v3050
      %3083 = vst.msk [vmem:[%s224 + $0xc0] sm:$0xff] %vm597, %v3051
      %3084 = vst.msk [vmem:[%s224 + $0xc8] sm:$0xff] %vm597, %v3052
      %3085 = vst.msk [vmem:[%s224 + $0xd0] sm:$0xff] %vm597, %v3053
      %3086 = vst.msk [vmem:[%s224 + $0xd8] sm:$0xff] %vm597, %v3054
      %3087 = vst.msk [vmem:[%s224 + $0xe0] sm:$0xff] %vm597, %v3055
      %3088 = vst.msk [vmem:[%s224 + $0xe8] sm:$0xff] %vm597, %v3056
      %3089 = vst.msk [vmem:[%s224 + $0xf0] sm:$0xff] %vm597, %v3057
      %3090 = vst.msk [vmem:[%s224 + $0xf8] sm:$0xff] %vm597, %v3058
      %p3091 = scmp.lt.s32.totalorder %s16, 1
      %s3092 = scalar_select %p3091, %s16, 1
      %s3093 = smul.addr %s3092, 32
      %s3094 = smul.addr %s3093, 8
      %s3095 = scalar_lea.vmem %s5, %s3094
      // Predicated region
      $region41: #{tpu_custom_call.1} parent=39 // pred_check
        %p3096 = pneg %p144
      $region42: #{tpu_custom_call.1} parent=39 // pred_check_branch
        %3098 = sbr.rel (%p3096) target = $region44
      $region43: #{tpu_custom_call.1} parent=39 // pred_region
        _
      $region44: #{tpu_custom_call.1} parent=39 // pred_fallthru
        _
    $region40: #{tpu_custom_call.1} parent=5 // pred_fallthru
      _
    %p3099 = scmp.le.s32.totalorder 2, %s11
    // Predicated region
    $region45: #{tpu_custom_call.1} parent=5 // pred_check
      %p3100 = pneg %p3099
    $region46: #{tpu_custom_call.1} parent=5 // pred_check_branch
      %3102 = sbr.rel (%p3100) target = $region48
    $region47: #{tpu_custom_call.1} parent=5 // pred_region
      %s3103 = ssub.s32 %s11, 2
      // Predicated region
      $region49: #{tpu_custom_call.1} parent=47 // pred_check
        %p3104 = pneg %p150
      $region50: #{tpu_custom_call.1} parent=47 // pred_check_branch
        %3106 = sbr.rel (%p3104) target = $region52
      $region51: #{tpu_custom_call.1} parent=47 // pred_region
        %p3107 = scmp.lt.s32.totalorder %s17, 1
        %s3108 = scalar_select %p3107, %s17, 1
        %s3109 = smul.addr %s3108, 32
        %s3110 = smul.addr %s3109, 8
        %s3111 = scalar_lea.vmem %s5, %s3110
      $region52: #{tpu_custom_call.1} parent=47 // pred_fallthru
        _
    $region48: #{tpu_custom_call.1} parent=5 // pred_fallthru
      _
  $region6: #{tpu_custom_call.1} parent=0 // loop_footer
    %s15 = sadd.s32 1, %s11
  $region7: #{tpu_custom_call.1} parent=0 // loop_footer_branch
    %10 = sbr.rel target = $region3
  $region8: #{tpu_custom_call.1} parent=0 // loop_exit
    _

</llo_original>
